<compile_context>
chip_gen: v7x
topology: tpu7x:2x2x1
jax: 0.10.0
libtpu: 0.0.40
codegen_flags: <defaults>
</compile_context>

<pallas_src>
import functools

import jax
import jax.numpy as jnp
import numpy as np
from jax.experimental import pallas as pl
from jax.experimental.pallas import tpu as pltpu


# ---------------------------------------------------------------------------
# Helpers
# ---------------------------------------------------------------------------

def _round_up(a, m):
    return ((a + m - 1) // m) * m


def _pick_tn(cout_p):
    """Output-channel tile: 256 only on 256-wide-MXU parts (v6e/v7x)."""
    try:
        kind = jax.devices()[0].device_kind.lower()
    except Exception:
        kind = ""
    wide_mxu = any(t in kind for t in ("v6", "v7"))
    return 256 if (wide_mxu and cout_p % 256 == 0) else 128


def _pick_th(h, w):
    """Row tile: aim for M = TH*W >= 256 (MXU fill) with TH | H and TH <= 32."""
    cap = min(h, 32, max(1, -(-256 // w)))
    for th in range(cap, 0, -1):
        if h % th == 0:
            return th
    return 1


# ---------------------------------------------------------------------------
# Pallas kernel: fused conv (im2col-free) + folded-BN bias + LeakyReLU
# ---------------------------------------------------------------------------

def _baseconv_kernel(x_ref, w_ref, b_ref, o_ref, acc_ref, *, k, th, w_out, slope):
    """grid = (n_tile, batch, row_tile); no cross-step reduction axis.

    x_ref:   (1, 1, TH+2p, W+2p, Cin_p) bf16  -- haloed input row slab
    w_ref:   (k*k, Cin_p, tn)           bf16  -- BN-scale-folded weights (all taps)
    b_ref:   (1, tn)                    f32   -- folded BN bias
    o_ref:   (1, TH, W, tn)             bf16  -- output row tile
    acc_ref: (TH*W, tn)                 f32   -- VMEM accumulator scratch
    """
    cin_p = x_ref.shape[-1]
    tn = o_ref.shape[-1]
    m = th * w_out

    def tap(t):
        dy, dx = divmod(t, k)
        # Static slice of the haloed slab (dx>0 is a shifted sublane load).
        # TODO(synk): pltpu.roll-based shift if the relayout shows up in the
        # Mosaic dump once the kernel stops being overhead-bound.
        xs = x_ref[0, 0, dy:dy + th, dx:dx + w_out, :].reshape(m, cin_p)
        return jnp.dot(xs, w_ref[t], preferred_element_type=jnp.float32)

    n_taps = k * k
    if n_taps == 1:
        acc = tap(0)
    else:
        acc_ref[...] = tap(0)                      # no zero-fill pass
        for t in range(1, n_taps - 1):
            acc_ref[...] += tap(t)
        acc = acc_ref[...] + tap(n_taps - 1)       # epilogue fused with last tap

    y = acc + b_ref[...]                           # (M, tn) + (1, tn)
    y = jnp.where(y >= 0.0, y, y * slope)          # LeakyReLU
    o_ref[0] = y.reshape(th, w_out, tn).astype(o_ref.dtype)   # single store


# ---------------------------------------------------------------------------
# Host-side parameter preprocessing (outside the per-forward path)
# ---------------------------------------------------------------------------

def prepare_baseconv_params(w_oihw, gamma, beta, mean, var, eps=1e-5):
    """Fold BN into conv weights/bias; weights -> (k*k, Cin_p, Cout_p) bf16."""
    cout, cin, kh, kw = w_oihw.shape
    assert kh == kw, "square kernels only"
    k = int(kh)
    scale = gamma / jnp.sqrt(var + eps)                    # (Cout,)
    bias = beta - mean * scale                             # (Cout,)
    w_hwio = jnp.transpose(w_oihw, (2, 3, 1, 0)) * scale[None, None, None, :]
    cin_p = _round_up(cin, 128)
    cout_p = _round_up(cout, 128)
    w_pad = jnp.pad(w_hwio, ((0, 0), (0, 0), (0, cin_p - cin), (0, cout_p - cout)))
    w_packed = w_pad.reshape(k * k, cin_p, cout_p).astype(jnp.bfloat16)
    bias_p = jnp.pad(bias.astype(jnp.float32), (0, cout_p - cout)).reshape(1, cout_p)
    return w_packed, bias_p


# ---------------------------------------------------------------------------
# NHWC (channel-padded, bf16) path -- the layer-to-layer fast path
# ---------------------------------------------------------------------------

@functools.partial(jax.jit, static_argnames=("k", "stride", "slope"))
def base_conv_apply_nhwc(x_nhwc, w_packed, bias_p, *, k, stride=1, slope=0.01):
    """x_nhwc: (B, H, W, Cin_p) bf16, channels padded to match w_packed.
    Returns (B, H_out, W_out, Cout_p) bf16 (channels still padded)."""
    assert k % 2 == 1, "even kernel sizes not supported"   # TODO(synk): even k
    B, H, W, cin_p = x_nhwc.shape
    kk, cin_p_w, cout_p = w_packed.shape
    assert kk == k * k and cin_p_w == cin_p
    p = k // 2

    tn = _pick_tn(cout_p)
    nt = cout_p // tn
    th = _pick_th(H, W)
    nyt = H // th

    # Spatial 'same' zero pad, then overlapped haloed row slabs (BlockSpec
    # cannot express the +2p row halo of overlapping input blocks).
    x_p = jnp.pad(x_nhwc, ((0, 0), (p, p), (p, p), (0, 0)))
    row_idx = np.arange(nyt)[:, None] * th + np.arange(th + 2 * p)[None, :]
    slab = x_p[:, row_idx]                  # (B, nyt, th+2p, W+2p, cin_p)

    out = pl.pallas_call(
        functools.partial(_baseconv_kernel, k=k, th=th, w_out=W, slope=float(slope)),
        out_shape=jax.ShapeDtypeStruct((B, H, W, cout_p), jnp.bfloat16),
        grid_spec=pltpu.PrefetchScalarGridSpec(
            num_scalar_prefetch=0,
            grid=(nt, B, nyt),
            in_specs=[
                pl.BlockSpec((1, 1, th + 2 * p, W + 2 * p, cin_p),
                             lambda j, b, y: (b, y, 0, 0, 0)),
                # Weight slab's block index depends only on j, so it stays
                # VMEM-resident across the whole (batch, row-tile) sweep.
                pl.BlockSpec((k * k, cin_p, tn), lambda j, b, y: (0, 0, j)),
                pl.BlockSpec((1, tn),            lambda j, b, y: (0, j)),
            ],
            out_specs=pl.BlockSpec((1, th, W, tn), lambda j, b, y: (b, y, 0, j)),
            scratch_shapes=[pltpu.VMEM((th * W, tn), jnp.float32)],
        ),
        compiler_params=pltpu.CompilerParams(
            dimension_semantics=("parallel", "parallel", "parallel"),
            vmem_limit_bytes=32 * 1024 * 1024),
    )(slab, w_packed, bias_p)

    if stride > 1:
        # TODO(synk): true strided kernel; subsampling the fused stride-1
        # output is exact for odd k with pad=k//2 but does stride^2 x extra work.
        out = out[:, ::stride, ::stride, :]
    return out


# ---------------------------------------------------------------------------
# Module-boundary wrapper (NCHW f32 in / NCHW f32 out, matching PyTorch)
# ---------------------------------------------------------------------------

@functools.partial(jax.jit, static_argnames=("k", "cout", "stride", "slope"))
def base_conv_apply(x_nchw, w_packed, bias_p, *, k, cout, stride=1, slope=0.01):
    B, cin, H, W = x_nchw.shape
    _, cin_p, _ = w_packed.shape
    x = jnp.transpose(x_nchw, (0, 2, 3, 1))
    x = jnp.pad(x, ((0, 0), (0, 0), (0, 0), (0, cin_p - cin))).astype(jnp.bfloat16)
    out = base_conv_apply_nhwc(x, w_packed, bias_p, k=k, stride=stride, slope=slope)
    out = out[..., :cout].astype(jnp.float32)              # drop channel padding
    return jnp.transpose(out, (0, 3, 1, 2))                # NHWC -> NCHW


# ---------------------------------------------------------------------------
# Plain-JAX reference (for correctness check)
# ---------------------------------------------------------------------------

def base_conv_reference(x, w, gamma, beta, mean, var, stride=1, slope=0.01, eps=1e-5):
    k = w.shape[-1]
    p = k // 2
    y = jax.lax.conv_general_dilated(
        x, w, window_strides=(stride, stride), padding=[(p, p), (p, p)],
        dimension_numbers=("NCHW", "OIHW", "NCHW"))
    scale = (gamma / jnp.sqrt(var + eps)).reshape(1, -1, 1, 1)
    bias = (beta - mean * gamma / jnp.sqrt(var + eps)).reshape(1, -1, 1, 1)
    y = y * scale + bias
    return jnp.where(y >= 0.0, y, y * slope)


# ---------------------------------------------------------------------------
# Main
# ---------------------------------------------------------------------------

if __name__ == "__main__":
    key = jax.random.PRNGKey(0)
    kx, kw, kg, kb, km, kv = jax.random.split(key, 6)

    B, Cin, H, W = 2, 16, 16, 16
    Cout, ksize, stride = 32, 3, 1

    x = jax.random.normal(kx, (B, Cin, H, W), jnp.float32)
    w = jax.random.normal(kw, (Cout, Cin, ksize, ksize), jnp.float32) / np.sqrt(Cin * ksize * ksize)
    gamma = 1.0 + 0.1 * jax.random.normal(kg, (Cout,), jnp.float32)
    beta = 0.1 * jax.random.normal(kb, (Cout,), jnp.float32)
    mean = 0.1 * jax.random.normal(km, (Cout,), jnp.float32)
    var = 1.0 + 0.1 * jnp.abs(jax.random.normal(kv, (Cout,), jnp.float32))

    # One-time parameter preprocessing (BN fold + weight packing), outside jit.
    w_packed, bias_p = prepare_baseconv_params(w, gamma, beta, mean, var)

    out = base_conv_apply(x, w_packed, bias_p, k=ksize, cout=Cout, stride=stride)
    out = jax.block_until_ready(out)

    assert out.shape == (B, Cout, H, W), out.shape
    assert bool(jnp.all(jnp.isfinite(out)))

    ref = base_conv_reference(x, w, gamma, beta, mean, var, stride=stride)
    abs_err = float(jnp.max(jnp.abs(out - ref)))
    rel_err = abs_err / max(1e-6, float(jnp.max(jnp.abs(ref))))
    assert abs_err < 1e-1, f"max abs err {abs_err}"     # bf16 operands/output, f32 accumulate
    assert rel_err < 5e-2, f"max rel err {rel_err}"

    print("KERNEL_OK")
</pallas_src>

<mosaic_0001>
module attributes {stable_mosaic.version = 11 : i64} {
  func.func @_baseconv_kernel(%arg0: i32, %arg1: i32, %arg2: i32, %arg3: memref<1x1x18x18x128xbf16, #tpu.memory_space<vmem>>, %arg4: memref<9x128x128xbf16, #tpu.memory_space<vmem>>, %arg5: memref<1x128xf32, #tpu.memory_space<vmem>>, %arg6: memref<1x16x16x128xbf16, #tpu.memory_space<vmem>>, %arg7: memref<256x128xf32, #tpu.memory_space<vmem>>) attributes {dimension_semantics = [#tpu.dimension_semantics<parallel>, #tpu.dimension_semantics<parallel>, #tpu.dimension_semantics<parallel>], iteration_bounds = array<i64: 1, 2, 1>, scalar_prefetch = 0 : i64, scratch_operands = 1 : i64, tpu.core_type = #tpu.core_type<tc>, window_params = [{transform_indices = @transform_0, window_bounds = array<i64: 1, 1, 18, 18, 128>}, {transform_indices = @transform_1, window_bounds = array<i64: 9, 128, 128>}, {transform_indices = @transform_2, window_bounds = array<i64: 1, 128>}, {transform_indices = @transform_3, window_bounds = array<i64: 1, 16, 16, 128>}]} {
    %c0 = arith.constant 0 : index
    %c0_0 = arith.constant 0 : index
    %c0_1 = arith.constant 0 : index
    %c0_2 = arith.constant 0 : index
    %c0_3 = arith.constant 0 : index
    %0 = vector.load %arg3[%c0, %c0_0, %c0_1, %c0_2, %c0_3] : memref<1x1x18x18x128xbf16, #tpu.memory_space<vmem>>, vector<1x1x16x16x128xbf16>
    %1 = vector.shape_cast %0 : vector<1x1x16x16x128xbf16> to vector<16x16x128xbf16>
    %2 = vector.shape_cast %1 : vector<16x16x128xbf16> to vector<256x128xbf16>
    %c0_4 = arith.constant 0 : index
    %c0_5 = arith.constant 0 : index
    %c0_6 = arith.constant 0 : index
    %3 = vector.load %arg4[%c0_4, %c0_5, %c0_6] : memref<9x128x128xbf16, #tpu.memory_space<vmem>>, vector<1x128x128xbf16>
    %4 = vector.shape_cast %3 : vector<1x128x128xbf16> to vector<128x128xbf16>
    %cst = arith.constant dense<0.000000e+00> : vector<256x128xf32>
    %5 = tpu.matmul %2, %4, %cst {dimension_numbers = #tpu.dot_dimension_numbers<[1], [0], [0], [1], [0, 0, 1, 1], [], []>} : vector<256x128xbf16>, vector<128x128xbf16>, vector<256x128xf32> -> vector<256x128xf32>
    %c0_7 = arith.constant 0 : index
    %c0_8 = arith.constant 0 : index
    %6 = vector.load %arg7[%c0_7, %c0_8] : memref<256x128xf32, #tpu.memory_space<vmem>>, vector<256x128xf32>
    tpu.vector_store %arg7[%c0_7, %c0_8], %5 {strides = array<i32>} : memref<256x128xf32, #tpu.memory_space<vmem>>, vector<256x128xf32>,
    %c0_9 = arith.constant 0 : index
    %c0_10 = arith.constant 0 : index
    %7 = vector.load %arg7[%c0_9, %c0_10] : memref<256x128xf32, #tpu.memory_space<vmem>>, vector<256x128xf32>
    %c0_11 = arith.constant 0 : index
    %c0_12 = arith.constant 0 : index
    %c0_13 = arith.constant 0 : index
    %c1 = arith.constant 1 : index
    %c0_14 = arith.constant 0 : index
    %8 = vector.load %arg3[%c0_11, %c0_12, %c0_13, %c1, %c0_14] : memref<1x1x18x18x128xbf16, #tpu.memory_space<vmem>>, vector<1x1x16x16x128xbf16>
    %9 = vector.shape_cast %8 : vector<1x1x16x16x128xbf16> to vector<16x16x128xbf16>
    %10 = vector.shape_cast %9 : vector<16x16x128xbf16> to vector<256x128xbf16>
    %c1_15 = arith.constant 1 : index
    %c0_16 = arith.constant 0 : index
    %c0_17 = arith.constant 0 : index
    %11 = vector.load %arg4[%c1_15, %c0_16, %c0_17] : memref<9x128x128xbf16, #tpu.memory_space<vmem>>, vector<1x128x128xbf16>
    %12 = vector.shape_cast %11 : vector<1x128x128xbf16> to vector<128x128xbf16>
    %cst_18 = arith.constant dense<0.000000e+00> : vector<256x128xf32>
    %13 = tpu.matmul %10, %12, %cst_18 {dimension_numbers = #tpu.dot_dimension_numbers<[1], [0], [0], [1], [0, 0, 1, 1], [], []>} : vector<256x128xbf16>, vector<128x128xbf16>, vector<256x128xf32> -> vector<256x128xf32>
    %14 = arith.addf %7, %13 : vector<256x128xf32>
    %c0_19 = arith.constant 0 : index
    %c0_20 = arith.constant 0 : index
    %15 = vector.load %arg7[%c0_19, %c0_20] : memref<256x128xf32, #tpu.memory_space<vmem>>, vector<256x128xf32>
    tpu.vector_store %arg7[%c0_19, %c0_20], %14 {strides = array<i32>} : memref<256x128xf32, #tpu.memory_space<vmem>>, vector<256x128xf32>,
    %c0_21 = arith.constant 0 : index
    %c0_22 = arith.constant 0 : index
    %16 = vector.load %arg7[%c0_21, %c0_22] : memref<256x128xf32, #tpu.memory_space<vmem>>, vector<256x128xf32>
    %c0_23 = arith.constant 0 : index
    %c0_24 = arith.constant 0 : index
    %c0_25 = arith.constant 0 : index
    %c2 = arith.constant 2 : index
    %c0_26 = arith.constant 0 : index
    %17 = vector.load %arg3[%c0_23, %c0_24, %c0_25, %c2, %c0_26] : memref<1x1x18x18x128xbf16, #tpu.memory_space<vmem>>, vector<1x1x16x16x128xbf16>
    %18 = vector.shape_cast %17 : vector<1x1x16x16x128xbf16> to vector<16x16x128xbf16>
    %19 = vector.shape_cast %18 : vector<16x16x128xbf16> to vector<256x128xbf16>
    %c2_27 = arith.constant 2 : index
    %c0_28 = arith.constant 0 : index
    %c0_29 = arith.constant 0 : index
    %20 = vector.load %arg4[%c2_27, %c0_28, %c0_29] : memref<9x128x128xbf16, #tpu.memory_space<vmem>>, vector<1x128x128xbf16>
    %21 = vector.shape_cast %20 : vector<1x128x128xbf16> to vector<128x128xbf16>
    %cst_30 = arith.constant dense<0.000000e+00> : vector<256x128xf32>
    %22 = tpu.matmul %19, %21, %cst_30 {dimension_numbers = #tpu.dot_dimension_numbers<[1], [0], [0], [1], [0, 0, 1, 1], [], []>} : vector<256x128xbf16>, vector<128x128xbf16>, vector<256x128xf32> -> vector<256x128xf32>
    %23 = arith.addf %16, %22 : vector<256x128xf32>
    %c0_31 = arith.constant 0 : index
    %c0_32 = arith.constant 0 : index
    %24 = vector.load %arg7[%c0_31, %c0_32] : memref<256x128xf32, #tpu.memory_space<vmem>>, vector<256x128xf32>
    tpu.vector_store %arg7[%c0_31, %c0_32], %23 {strides = array<i32>} : memref<256x128xf32, #tpu.memory_space<vmem>>, vector<256x128xf32>,
    %c0_33 = arith.constant 0 : index
    %c0_34 = arith.constant 0 : index
    %25 = vector.load %arg7[%c0_33, %c0_34] : memref<256x128xf32, #tpu.memory_space<vmem>>, vector<256x128xf32>
    %c0_35 = arith.constant 0 : index
    %c0_36 = arith.constant 0 : index
    %c1_37 = arith.constant 1 : index
    %c0_38 = arith.constant 0 : index
    %c0_39 = arith.constant 0 : index
    %26 = vector.load %arg3[%c0_35, %c0_36, %c1_37, %c0_38, %c0_39] : memref<1x1x18x18x128xbf16, #tpu.memory_space<vmem>>, vector<1x1x16x16x128xbf16>
    %27 = vector.shape_cast %26 : vector<1x1x16x16x128xbf16> to vector<16x16x128xbf16>
    %28 = vector.shape_cast %27 : vector<16x16x128xbf16> to vector<256x128xbf16>
    %c3 = arith.constant 3 : index
    %c0_40 = arith.constant 0 : index
    %c0_41 = arith.constant 0 : index
    %29 = vector.load %arg4[%c3, %c0_40, %c0_41] : memref<9x128x128xbf16, #tpu.memory_space<vmem>>, vector<1x128x128xbf16>
    %30 = vector.shape_cast %29 : vector<1x128x128xbf16> to vector<128x128xbf16>
    %cst_42 = arith.constant dense<0.000000e+00> : vector<256x128xf32>
    %31 = tpu.matmul %28, %30, %cst_42 {dimension_numbers = #tpu.dot_dimension_numbers<[1], [0], [0], [1], [0, 0, 1, 1], [], []>} : vector<256x128xbf16>, vector<128x128xbf16>, vector<256x128xf32> -> vector<256x128xf32>
    %32 = arith.addf %25, %31 : vector<256x128xf32>
    %c0_43 = arith.constant 0 : index
    %c0_44 = arith.constant 0 : index
    %33 = vector.load %arg7[%c0_43, %c0_44] : memref<256x128xf32, #tpu.memory_space<vmem>>, vector<256x128xf32>
    tpu.vector_store %arg7[%c0_43, %c0_44], %32 {strides = array<i32>} : memref<256x128xf32, #tpu.memory_space<vmem>>, vector<256x128xf32>,
    %c0_45 = arith.constant 0 : index
    %c0_46 = arith.constant 0 : index
    %34 = vector.load %arg7[%c0_45, %c0_46] : memref<256x128xf32, #tpu.memory_space<vmem>>, vector<256x128xf32>
    %c0_47 = arith.constant 0 : index
    %c0_48 = arith.constant 0 : index
    %c1_49 = arith.constant 1 : index
    %c1_50 = arith.constant 1 : index
    %c0_51 = arith.constant 0 : index
    %35 = vector.load %arg3[%c0_47, %c0_48, %c1_49, %c1_50, %c0_51] : memref<1x1x18x18x128xbf16, #tpu.memory_space<vmem>>, vector<1x1x16x16x128xbf16>
    %36 = vector.shape_cast %35 : vector<1x1x16x16x128xbf16> to vector<16x16x128xbf16>
    %37 = vector.shape_cast %36 : vector<16x16x128xbf16> to vector<256x128xbf16>
    %c4 = arith.constant 4 : index
    %c0_52 = arith.constant 0 : index
    %c0_53 = arith.constant 0 : index
    %38 = vector.load %arg4[%c4, %c0_52, %c0_53] : memref<9x128x128xbf16, #tpu.memory_space<vmem>>, vector<1x128x128xbf16>
    %39 = vector.shape_cast %38 : vector<1x128x128xbf16> to vector<128x128xbf16>
    %cst_54 = arith.constant dense<0.000000e+00> : vector<256x128xf32>
    %40 = tpu.matmul %37, %39, %cst_54 {dimension_numbers = #tpu.dot_dimension_numbers<[1], [0], [0], [1], [0, 0, 1, 1], [], []>} : vector<256x128xbf16>, vector<128x128xbf16>, vector<256x128xf32> -> vector<256x128xf32>
    %41 = arith.addf %34, %40 : vector<256x128xf32>
    %c0_55 = arith.constant 0 : index
    %c0_56 = arith.constant 0 : index
    %42 = vector.load %arg7[%c0_55, %c0_56] : memref<256x128xf32, #tpu.memory_space<vmem>>, vector<256x128xf32>
    tpu.vector_store %arg7[%c0_55, %c0_56], %41 {strides = array<i32>} : memref<256x128xf32, #tpu.memory_space<vmem>>, vector<256x128xf32>,
    %c0_57 = arith.constant 0 : index
    %c0_58 = arith.constant 0 : index
    %43 = vector.load %arg7[%c0_57, %c0_58] : memref<256x128xf32, #tpu.memory_space<vmem>>, vector<256x128xf32>
    %c0_59 = arith.constant 0 : index
    %c0_60 = arith.constant 0 : index
    %c1_61 = arith.constant 1 : index
    %c2_62 = arith.constant 2 : index
    %c0_63 = arith.constant 0 : index
    %44 = vector.load %arg3[%c0_59, %c0_60, %c1_61, %c2_62, %c0_63] : memref<1x1x18x18x128xbf16, #tpu.memory_space<vmem>>, vector<1x1x16x16x128xbf16>
    %45 = vector.shape_cast %44 : vector<1x1x16x16x128xbf16> to vector<16x16x128xbf16>
    %46 = vector.shape_cast %45 : vector<16x16x128xbf16> to vector<256x128xbf16>
    %c5 = arith.constant 5 : index
    %c0_64 = arith.constant 0 : index
    %c0_65 = arith.constant 0 : index
    %47 = vector.load %arg4[%c5, %c0_64, %c0_65] : memref<9x128x128xbf16, #tpu.memory_space<vmem>>, vector<1x128x128xbf16>
    %48 = vector.shape_cast %47 : vector<1x128x128xbf16> to vector<128x128xbf16>
    %cst_66 = arith.constant dense<0.000000e+00> : vector<256x128xf32>
    %49 = tpu.matmul %46, %48, %cst_66 {dimension_numbers = #tpu.dot_dimension_numbers<[1], [0], [0], [1], [0, 0, 1, 1], [], []>} : vector<256x128xbf16>, vector<128x128xbf16>, vector<256x128xf32> -> vector<256x128xf32>
    %50 = arith.addf %43, %49 : vector<256x128xf32>
    %c0_67 = arith.constant 0 : index
    %c0_68 = arith.constant 0 : index
    %51 = vector.load %arg7[%c0_67, %c0_68] : memref<256x128xf32, #tpu.memory_space<vmem>>, vector<256x128xf32>
    tpu.vector_store %arg7[%c0_67, %c0_68], %50 {strides = array<i32>} : memref<256x128xf32, #tpu.memory_space<vmem>>, vector<256x128xf32>,
    %c0_69 = arith.constant 0 : index
    %c0_70 = arith.constant 0 : index
    %52 = vector.load %arg7[%c0_69, %c0_70] : memref<256x128xf32, #tpu.memory_space<vmem>>, vector<256x128xf32>
    %c0_71 = arith.constant 0 : index
    %c0_72 = arith.constant 0 : index
    %c2_73 = arith.constant 2 : index
    %c0_74 = arith.constant 0 : index
    %c0_75 = arith.constant 0 : index
    %53 = vector.load %arg3[%c0_71, %c0_72, %c2_73, %c0_74, %c0_75] : memref<1x1x18x18x128xbf16, #tpu.memory_space<vmem>>, vector<1x1x16x16x128xbf16>
    %54 = vector.shape_cast %53 : vector<1x1x16x16x128xbf16> to vector<16x16x128xbf16>
    %55 = vector.shape_cast %54 : vector<16x16x128xbf16> to vector<256x128xbf16>
    %c6 = arith.constant 6 : index
    %c0_76 = arith.constant 0 : index
    %c0_77 = arith.constant 0 : index
    %56 = vector.load %arg4[%c6, %c0_76, %c0_77] : memref<9x128x128xbf16, #tpu.memory_space<vmem>>, vector<1x128x128xbf16>
    %57 = vector.shape_cast %56 : vector<1x128x128xbf16> to vector<128x128xbf16>
    %cst_78 = arith.constant dense<0.000000e+00> : vector<256x128xf32>
    %58 = tpu.matmul %55, %57, %cst_78 {dimension_numbers = #tpu.dot_dimension_numbers<[1], [0], [0], [1], [0, 0, 1, 1], [], []>} : vector<256x128xbf16>, vector<128x128xbf16>, vector<256x128xf32> -> vector<256x128xf32>
    %59 = arith.addf %52, %58 : vector<256x128xf32>
    %c0_79 = arith.constant 0 : index
    %c0_80 = arith.constant 0 : index
    %60 = vector.load %arg7[%c0_79, %c0_80] : memref<256x128xf32, #tpu.memory_space<vmem>>, vector<256x128xf32>
    tpu.vector_store %arg7[%c0_79, %c0_80], %59 {strides = array<i32>} : memref<256x128xf32, #tpu.memory_space<vmem>>, vector<256x128xf32>,
    %c0_81 = arith.constant 0 : index
    %c0_82 = arith.constant 0 : index
    %61 = vector.load %arg7[%c0_81, %c0_82] : memref<256x128xf32, #tpu.memory_space<vmem>>, vector<256x128xf32>
    %c0_83 = arith.constant 0 : index
    %c0_84 = arith.constant 0 : index
    %c2_85 = arith.constant 2 : index
    %c1_86 = arith.constant 1 : index
    %c0_87 = arith.constant 0 : index
    %62 = vector.load %arg3[%c0_83, %c0_84, %c2_85, %c1_86, %c0_87] : memref<1x1x18x18x128xbf16, #tpu.memory_space<vmem>>, vector<1x1x16x16x128xbf16>
    %63 = vector.shape_cast %62 : vector<1x1x16x16x128xbf16> to vector<16x16x128xbf16>
    %64 = vector.shape_cast %63 : vector<16x16x128xbf16> to vector<256x128xbf16>
    %c7 = arith.constant 7 : index
    %c0_88 = arith.constant 0 : index
    %c0_89 = arith.constant 0 : index
    %65 = vector.load %arg4[%c7, %c0_88, %c0_89] : memref<9x128x128xbf16, #tpu.memory_space<vmem>>, vector<1x128x128xbf16>
    %66 = vector.shape_cast %65 : vector<1x128x128xbf16> to vector<128x128xbf16>
    %cst_90 = arith.constant dense<0.000000e+00> : vector<256x128xf32>
    %67 = tpu.matmul %64, %66, %cst_90 {dimension_numbers = #tpu.dot_dimension_numbers<[1], [0], [0], [1], [0, 0, 1, 1], [], []>} : vector<256x128xbf16>, vector<128x128xbf16>, vector<256x128xf32> -> vector<256x128xf32>
    %68 = arith.addf %61, %67 : vector<256x128xf32>
    %c0_91 = arith.constant 0 : index
    %c0_92 = arith.constant 0 : index
    %69 = vector.load %arg7[%c0_91, %c0_92] : memref<256x128xf32, #tpu.memory_space<vmem>>, vector<256x128xf32>
    tpu.vector_store %arg7[%c0_91, %c0_92], %68 {strides = array<i32>} : memref<256x128xf32, #tpu.memory_space<vmem>>, vector<256x128xf32>,
    %c0_93 = arith.constant 0 : index
    %c0_94 = arith.constant 0 : index
    %70 = vector.load %arg7[%c0_93, %c0_94] : memref<256x128xf32, #tpu.memory_space<vmem>>, vector<256x128xf32>
    %c0_95 = arith.constant 0 : index
    %c0_96 = arith.constant 0 : index
    %c2_97 = arith.constant 2 : index
    %c2_98 = arith.constant 2 : index
    %c0_99 = arith.constant 0 : index
    %71 = vector.load %arg3[%c0_95, %c0_96, %c2_97, %c2_98, %c0_99] : memref<1x1x18x18x128xbf16, #tpu.memory_space<vmem>>, vector<1x1x16x16x128xbf16>
    %72 = vector.shape_cast %71 : vector<1x1x16x16x128xbf16> to vector<16x16x128xbf16>
    %73 = vector.shape_cast %72 : vector<16x16x128xbf16> to vector<256x128xbf16>
    %c8 = arith.constant 8 : index
    %c0_100 = arith.constant 0 : index
    %c0_101 = arith.constant 0 : index
    %74 = vector.load %arg4[%c8, %c0_100, %c0_101] : memref<9x128x128xbf16, #tpu.memory_space<vmem>>, vector<1x128x128xbf16>
    %75 = vector.shape_cast %74 : vector<1x128x128xbf16> to vector<128x128xbf16>
    %cst_102 = arith.constant dense<0.000000e+00> : vector<256x128xf32>
    %76 = tpu.matmul %73, %75, %cst_102 {dimension_numbers = #tpu.dot_dimension_numbers<[1], [0], [0], [1], [0, 0, 1, 1], [], []>} : vector<256x128xbf16>, vector<128x128xbf16>, vector<256x128xf32> -> vector<256x128xf32>
    %77 = arith.addf %70, %76 : vector<256x128xf32>
    %c0_103 = arith.constant 0 : index
    %c0_104 = arith.constant 0 : index
    %78 = vector.load %arg5[%c0_103, %c0_104] : memref<1x128xf32, #tpu.memory_space<vmem>>, vector<1x128xf32>
    %79 = vector.broadcast %78 : vector<1x128xf32> to vector<256x128xf32>
    %80 = arith.addf %77, %79 : vector<256x128xf32>
    %cst_105 = arith.constant 0.000000e+00 : f32
    %81 = vector.broadcast %cst_105 : f32 to vector<256x128xf32>
    %82 = arith.cmpf oge, %80, %81 : vector<256x128xf32>
    %cst_106 = arith.constant 0.00999999977 : f32
    %83 = vector.broadcast %cst_106 : f32 to vector<256x128xf32>
    %84 = arith.mulf %80, %83 : vector<256x128xf32>
    %85 = arith.select %82, %80, %84 : vector<256x128xi1>, vector<256x128xf32>
    %86 = vector.shape_cast %85 : vector<256x128xf32> to vector<16x16x128xf32>
    %87 = arith.truncf %86 : vector<16x16x128xf32> to vector<16x16x128xbf16>
    %c0_107 = arith.constant 0 : index
    %c0_108 = arith.constant 0 : index
    %c0_109 = arith.constant 0 : index
    %c0_110 = arith.constant 0 : index
    %88 = vector.load %arg6[%c0_107, %c0_108, %c0_109, %c0_110] : memref<1x16x16x128xbf16, #tpu.memory_space<vmem>>, vector<1x16x16x128xbf16>
    %89 = vector.shape_cast %88 : vector<1x16x16x128xbf16> to vector<16x16x128xbf16>
    %90 = vector.shape_cast %87 : vector<16x16x128xbf16> to vector<1x16x16x128xbf16>
    tpu.vector_store %arg6[%c0_107, %c0_108, %c0_109, %c0_110], %90 {strides = array<i32>} : memref<1x16x16x128xbf16, #tpu.memory_space<vmem>>, vector<1x16x16x128xbf16>,
    return
  }
  func.func @transform_0(%arg0: i32, %arg1: i32, %arg2: i32) -> (i32, i32, i32, i32, i32) {
    %c0_i32 = arith.constant 0 : i32
    %c0_i32_0 = arith.constant 0 : i32
    %c0_i32_1 = arith.constant 0 : i32
    %c0_i32_2 = arith.constant 0 : i32
    return %arg1, %arg2, %c0_i32, %c0_i32_0, %c0_i32_1 : i32, i32, i32, i32, i32
  }
  func.func @transform_1(%arg0: i32, %arg1: i32, %arg2: i32) -> (i32, i32, i32) {
    %c0_i32 = arith.constant 0 : i32
    %c0_i32_0 = arith.constant 0 : i32
    %c0_i32_1 = arith.constant 0 : i32
    return %c0_i32, %c0_i32_0, %arg0 : i32, i32, i32
  }
  func.func @transform_2(%arg0: i32, %arg1: i32, %arg2: i32) -> (i32, i32) {
    %c0_i32 = arith.constant 0 : i32
    %c0_i32_0 = arith.constant 0 : i32
    return %c0_i32, %arg0 : i32, i32
  }
  func.func @transform_3(%arg0: i32, %arg1: i32, %arg2: i32) -> (i32, i32, i32, i32) {
    %c0_i32 = arith.constant 0 : i32
    %c0_i32_0 = arith.constant 0 : i32
    return %arg1, %arg2, %c0_i32, %arg0 : i32, i32, i32, i32
  }
}

</mosaic_0001>

<llo_original>
// kernel: base_conv_apply_nhwc.1
$region0: #{base_conv_apply_nhwc.1}
  #allocation0 [shape = 'u32[]', space=smem, size = 0x4, offset = 0x4, fixed_abs, tag = 'smem constant byte address 0x4 - core index']
  #allocation1 [shape = 'u32[144,128]{1,0:T(1,128)}', space=vmem, size = 0x12000, scoped, tag = 'internal scratch']
  #allocation2 [shape = 'f32[256,128]{1,0:T(8,128)}', space=vmem, size = 0x20000, scoped, tag = 'scratch operand']
  %s0 = inlined_call_operand.vmem [shape: bf16[2,1,18,18,128], index: 0, kind: input, shape index: {}]
  %s1 = inlined_call_operand.vmem [shape: bf16[9,128,128], index: 1, kind: input, shape index: {}]
  %s2 = inlined_call_operand.vmem [shape: f32[1,128], index: 2, kind: input, shape index: {}]
  %s3 = inlined_call_operand.hbm [shape: bf16[2,16,16,128], index: 3, kind: output, shape index: {}]
  %s4 = sld [smem:[#allocation0]]
  $region45: #{base_conv_apply_nhwc.1} parent=0
    _
  %s6 = ssub.s32 1, %s4
  %s7 = scalar_select 0, %s6, %s4
  $region1: #{base_conv_apply_nhwc.1} parent=0
    #allocation3 [shape = 'u8[131072]{0}', space=vmem, size = 0x20000, scoped, tag = 'output window, operand 0']
    #allocation4 [shape = 's32[2]{0}', space=sflag, size = 0x8, scoped, tag = 'scoped memory for base_conv_apply_nhwc.1']
    %8 = vsyncpa [#allocation4], 0
    %s9 = scalar_lea.sflag [#allocation4], 1
    %10 = vsyncpa %s9, 0
    loop: start=0, step=1, limit=4
    $region2: #{base_conv_apply_nhwc.1} parent=1 // loop_pre_header
      _
    $region3: #{base_conv_apply_nhwc.1} parent=1 // loop_header
      %s12 = sphi 0, %s16
      %p13 = scmp.ge.s32.totalorder %s12, 4
      %s19 = sphi 0, %s38
      %s20 = sphi 0, %s34
      %s21 = sphi 0, %s30
      %s22 = sphi 0, %s19
      %s23 = sphi 0, %s20
      %s24 = sphi 0, %s21
      %s25 = sphi 0, %s22
      %s26 = sphi 0, %s23
      %s27 = sphi 0, %s24
      %s43 = sphi 0, %s45
      %s46 = sphi 0, %s43
      %s47 = sphi 0, %s46
      %s63 = sphi 0, %s47
      %s69 = sphi 0, %s71
      %s72 = sphi 0, %s69
      %s73 = sphi 0, %s72
      %s89 = sphi 0, %s73
      %s95 = sphi 0, %s97
      %s98 = sphi 0, %s95
      %s99 = sphi 0, %s98
      %s115 = sphi 0, %s99
      %s125 = sphi 0, %s127
      %s128 = sphi 0, %s125
      %s129 = sphi 0, %s128
      %s145 = sphi 0, %s129
    $region4: #{base_conv_apply_nhwc.1} parent=1 // loop_header_branch
      %15 = sbr.rel (%p13) target = $region8
    $region5: #{base_conv_apply_nhwc.1} parent=1 // loop_body
      %s17 = ssub.s32 %s12, 1
      %s18 = ssub.s32 %s12, 2
      %s28 = sadd.s32 1, %s21
      %p29 = scmp.ge.s32.totalorder %s28, 1
      %s30 = scalar_select %p29, 0, %s28
      %s31 = sadd.s32 1, %s20
      %s32 = scalar_select %p29, %s31, %s20
      %p33 = scmp.ge.s32.totalorder %s32, 2
      %s34 = scalar_select %p33, 0, %s32
      %s35 = sadd.s32 1, %s19
      %s36 = scalar_select %p33, %s35, %s19
      %p37 = scmp.ge.s32.totalorder %s36, 1
      %s38 = scalar_select %p37, 0, %s36
      %s39 = ssub.s32 %s20, %s34
      %s40 = ssub.s32 %s21, %s30
      %s41 = sor.u32 %s39, %s40
      %p42 = scmp.eq.s32.totalorder %s41, 0
      %s44 = sadd.s32 %s43, 1
      %s45 = scalar_select %p42, %s43, %s44
      %p48 = pneg %p42
      %p49 = scmp.eq.s32.totalorder %s12, 1
      %p50 = por %p48, %p49
      %p51 = scmp.ne.s32.totalorder %s43, %s46
      %p52 = scmp.eq.s32.totalorder %s12, 0
      %p53 = por %p51, %p52
      %p54 = scmp.ne.s32.totalorder %s43, %s46
      %p55 = scmp.eq.s32.totalorder %s17, 1
      %p56 = por %p54, %p55
      %p57 = scmp.ne.s32.totalorder %s46, %s47
      %p58 = scmp.eq.s32.totalorder %s17, 0
      %p59 = por %p57, %p58
      %p60 = scmp.ne.s32.totalorder %s46, %s47
      %p61 = scmp.eq.s32.totalorder %s18, 1
      %p62 = por %p60, %p61
      %p64 = scmp.ne.s32.totalorder %s47, %s63
      %p65 = scmp.eq.s32.totalorder %s18, 0
      %p66 = por %p64, %p65
      %s67 = ssub.s32 %s19, %s38
      %p68 = scmp.eq.s32.totalorder %s67, 0
      %s70 = sadd.s32 %s69, 1
      %s71 = scalar_select %p68, %s69, %s70
      %p74 = pneg %p68
      %p75 = scmp.eq.s32.totalorder %s12, 1
      %p76 = por %p74, %p75
      %p77 = scmp.ne.s32.totalorder %s69, %s72
      %p78 = scmp.eq.s32.totalorder %s12, 0
      %p79 = por %p77, %p78
      %p80 = scmp.ne.s32.totalorder %s69, %s72
      %p81 = scmp.eq.s32.totalorder %s17, 1
      %p82 = por %p80, %p81
      %p83 = scmp.ne.s32.totalorder %s72, %s73
      %p84 = scmp.eq.s32.totalorder %s17, 0
      %p85 = por %p83, %p84
      %p86 = scmp.ne.s32.totalorder %s72, %s73
      %p87 = scmp.eq.s32.totalorder %s18, 1
      %p88 = por %p86, %p87
      %p90 = scmp.ne.s32.totalorder %s73, %s89
      %p91 = scmp.eq.s32.totalorder %s18, 0
      %p92 = por %p90, %p91
      %s93 = ssub.s32 %s19, %s38
      %p94 = scmp.eq.s32.totalorder %s93, 0
      %s96 = sadd.s32 %s95, 1
      %s97 = scalar_select %p94, %s95, %s96
      %p100 = pneg %p94
      %p101 = scmp.eq.s32.totalorder %s12, 1
      %p102 = por %p100, %p101
      %p103 = scmp.ne.s32.totalorder %s95, %s98
      %p104 = scmp.eq.s32.totalorder %s12, 0
      %p105 = por %p103, %p104
      %p106 = scmp.ne.s32.totalorder %s95, %s98
      %p107 = scmp.eq.s32.totalorder %s17, 1
      %p108 = por %p106, %p107
      %p109 = scmp.ne.s32.totalorder %s98, %s99
      %p110 = scmp.eq.s32.totalorder %s17, 0
      %p111 = por %p109, %p110
      %p112 = scmp.ne.s32.totalorder %s98, %s99
      %p113 = scmp.eq.s32.totalorder %s18, 1
      %p114 = por %p112, %p113
      %p116 = scmp.ne.s32.totalorder %s99, %s115
      %p117 = scmp.eq.s32.totalorder %s18, 0
      %p118 = por %p116, %p117
      %s119 = ssub.s32 %s20, %s34
      %s120 = ssub.s32 %s21, %s30
      %s121 = sor.u32 %s119, %s120
      %s122 = ssub.s32 %s19, %s38
      %s123 = sor.u32 %s121, %s122
      %p124 = scmp.eq.s32.totalorder %s123, 0
      %s126 = sadd.s32 %s125, 1
      %s127 = scalar_select %p124, %s125, %s126
      %p130 = pneg %p124
      %p131 = scmp.eq.s32.totalorder %s12, 1
      %p132 = por %p130, %p131
      %p133 = scmp.ne.s32.totalorder %s125, %s128
      %p134 = scmp.eq.s32.totalorder %s12, 0
      %p135 = por %p133, %p134
      %p136 = scmp.ne.s32.totalorder %s125, %s128
      %p137 = scmp.eq.s32.totalorder %s17, 1
      %p138 = por %p136, %p137
      %p139 = scmp.ne.s32.totalorder %s128, %s129
      %p140 = scmp.eq.s32.totalorder %s17, 0
      %p141 = por %p139, %p140
      %p142 = scmp.ne.s32.totalorder %s128, %s129
      %p143 = scmp.eq.s32.totalorder %s18, 1
      %p144 = por %p142, %p143
      %p146 = scmp.ne.s32.totalorder %s129, %s145
      %p147 = scmp.eq.s32.totalorder %s18, 0
      %p148 = por %p146, %p147
      %p149 = scmp.le.s32.totalorder 1, %s12
      %p150 = scmp.lt.s32.totalorder %s12, 3
      %p151 = pnand %p149, %p150
      %p152 = pneg %p151
      // Predicated region
      $region9: #{base_conv_apply_nhwc.1} parent=5 // pred_check
        _
      $region10: #{base_conv_apply_nhwc.1} parent=5 // pred_check_branch
        %154 = sbr.rel (%p151) target = $region12
      $region11: #{base_conv_apply_nhwc.1} parent=5 // pred_region
        %s155 = ssub.s32 %s12, 1
        // Predicated region
        $region13: #{base_conv_apply_nhwc.1} parent=11 // pred_check
          %p156 = pneg %p85
        $region14: #{base_conv_apply_nhwc.1} parent=11 // pred_check_branch
          %158 = sbr.rel (%p156) target = $region16
        $region15: #{base_conv_apply_nhwc.1} parent=11 // pred_region
          %p159 = scmp.lt.s32.totalorder %s22, 0
          %s160 = scalar_select %p159, %s22, 0
          %s161 = smul.addr %s160, 4
          %s162 = scalar_lea.vmem %s1, %s161
        $region16: #{base_conv_apply_nhwc.1} parent=11 // pred_fallthru
          _
        // Predicated region
        $region17: #{base_conv_apply_nhwc.1} parent=11 // pred_check
          %p163 = pneg %p111
        $region18: #{base_conv_apply_nhwc.1} parent=11 // pred_check_branch
          %165 = sbr.rel (%p163) target = $region20
        $region19: #{base_conv_apply_nhwc.1} parent=11 // pred_region
          %p166 = scmp.lt.s32.totalorder %s22, 0
          %s167 = scalar_select %p166, %s22, 0
          %s168 = scalar_lea.vmem %s2, %s167
        $region20: #{base_conv_apply_nhwc.1} parent=11 // pred_fallthru
          _
      $region12: #{base_conv_apply_nhwc.1} parent=5 // pred_fallthru
        _
      %p169 = scmp.lt.s32.totalorder %s12, 2
      // Predicated region
      $region21: #{base_conv_apply_nhwc.1} parent=5 // pred_check
        %p170 = pneg %p169
      $region22: #{base_conv_apply_nhwc.1} parent=5 // pred_check_branch
        %172 = sbr.rel (%p170) target = $region24
      $region23: #{base_conv_apply_nhwc.1} parent=5 // pred_region
        // Predicated region
        $region25: #{base_conv_apply_nhwc.1} parent=23 // pred_check
          %p173 = pneg %p53
        $region26: #{base_conv_apply_nhwc.1} parent=23 // pred_check_branch
          %175 = sbr.rel (%p173) target = $region28
        $region27: #{base_conv_apply_nhwc.1} parent=23 // pred_region
          %p176 = scmp.lt.s32.totalorder %s20, 1
          %s177 = scalar_select %p176, %s20, 1
          %p178 = scmp.lt.s32.totalorder %s21, 0
          %s179 = scalar_select %p178, %s21, 0
          %s180 = smul.addr %s179, 54
          %s181 = smul.addr %s177, 54
          %s182 = sadd.s32 %s180, %s181
          %s183 = smul.addr %s182, 4
          %s184 = scalar_lea.vmem %s0, %s183
        $region28: #{base_conv_apply_nhwc.1} parent=23 // pred_fallthru
          _
      $region24: #{base_conv_apply_nhwc.1} parent=5 // pred_fallthru
        _
      %p185 = scmp.le.s32.totalorder 1, %s12
      %p186 = scmp.lt.s32.totalorder %s12, 3
      %p187 = pnand %p185, %p186
      %p188 = pneg %p187
      // Predicated region
      $region29: #{base_conv_apply_nhwc.1} parent=5 // pred_check
        _
      $region30: #{base_conv_apply_nhwc.1} parent=5 // pred_check_branch
        %190 = sbr.rel (%p187) target = $region32
      $region31: #{base_conv_apply_nhwc.1} parent=5 // pred_region
        %s191 = ssub.s32 %s12, 1
        %p192 = scmp.lt.s32.totalorder %s23, 1
        %s193 = scalar_select %p192, %s23, 1
        %p194 = scmp.lt.s32.totalorder %s24, 0
        %s195 = scalar_select %p194, %s24, 0
        %s196 = smul.addr %s195, 54
        %s197 = smul.addr %s193, 54
        %s198 = sadd.s32 %s196, %s197
        %s199 = smul.addr %s198, 4
        %s200 = scalar_lea.vmem %s0, %s199
        %p201 = pneg %p59
        %p202 = pneg %p56
        %p203 = scmp.lt.s32.totalorder %s22, 0
        %s204 = scalar_select %p203, %s22, 0
        %s205 = smul.addr %s204, 4
        %s206 = scalar_lea.vmem %s1, %s205
        %p207 = pneg %p85
        %p208 = pneg %p82
        %p209 = scmp.lt.s32.totalorder %s22, 0
        %s210 = scalar_select %p209, %s22, 0
        %s211 = scalar_lea.vmem %s2, %s210
        %p212 = pneg %p111
        %p213 = pneg %p108
        %p214 = pneg %p141
        %p215 = pneg %p138
        %s216 = sand.u32 %s128, 1
        %s217 = scalar_lea.sflag [#allocation4], %s216
        %s218 = sand.u32 %s128, 1
        %s219 = smul.addr %s218, 128
        %s220 = scalar_lea.vmem [#allocation3], %s219
        %p221 = scmp.lt.s32.totalorder %s23, 1
        %s222 = scalar_select %p221, %s23, 1
        %p223 = scmp.lt.s32.totalorder %s24, 0
        %s224 = scalar_select %p223, %s24, 0
        %s225 = smul.addr %s224, 54
        %s226 = smul.addr %s222, 54
        %s227 = sadd.s32 %s225, %s226
        %s228 = smul.addr %s227, 4
        %s229 = scalar_lea.vmem %s0, %s228
        %p230 = scmp.lt.s32.totalorder %s22, 0
        %s231 = scalar_select %p230, %s22, 0
        %s232 = smul.addr %s231, 4
        %s233 = scalar_lea.vmem %s1, %s232
        %p234 = scmp.lt.s32.totalorder %s22, 0
        %s235 = scalar_select %p234, %s22, 0
        %s236 = scalar_lea.vmem %s2, %s235
        %s237 = smul.u32 16, %s24
        %v239 = vld [vmem:[%s229] sm:$0xf]
        %v240 = vld [vmem:[%s229 + $0x4] sm:$0xf]
        %v241 = vld [vmem:[%s229 + $0xc] sm:$0xf]
        %v242 = vld [vmem:[%s229 + $0x10] sm:$0xf]
        %v243 = vld [vmem:[%s229 + $0x18] sm:$0xf]
        %v244 = vld [vmem:[%s229 + $0x1c] sm:$0xf]
        %v245 = vld [vmem:[%s229 + $0x24] sm:$0xf]
        %v246 = vld [vmem:[%s229 + $0x28] sm:$0xf]
        %v247 = vld [vmem:[%s229 + $0x30] sm:$0xf]
        %v248 = vld [vmem:[%s229 + $0x34] sm:$0xf]
        %v249 = vld [vmem:[%s229 + $0x3c] sm:$0xf]
        %v250 = vld [vmem:[%s229 + $0x40] sm:$0xf]
        %v251 = vld [vmem:[%s229 + $0x48] sm:$0xf]
        %v252 = vld [vmem:[%s229 + $0x4c] sm:$0xf]
        %v253 = vld [vmem:[%s229 + $0x54] sm:$0xf]
        %v254 = vld [vmem:[%s229 + $0x58] sm:$0xf]
        %v255 = vld [vmem:[%s229 + $0x60] sm:$0xf]
        %v256 = vld [vmem:[%s229 + $0x64] sm:$0xf]
        %v257 = vld [vmem:[%s229 + $0x6c] sm:$0xf]
        %v258 = vld [vmem:[%s229 + $0x70] sm:$0xf]
        %v259 = vld [vmem:[%s229 + $0x78] sm:$0xf]
        %v260 = vld [vmem:[%s229 + $0x7c] sm:$0xf]
        %v261 = vld [vmem:[%s229 + $0x84] sm:$0xf]
        %v262 = vld [vmem:[%s229 + $0x88] sm:$0xf]
        %v263 = vld [vmem:[%s229 + $0x90] sm:$0xf]
        %v264 = vld [vmem:[%s229 + $0x94] sm:$0xf]
        %v265 = vld [vmem:[%s229 + $0x9c] sm:$0xf]
        %v266 = vld [vmem:[%s229 + $0xa0] sm:$0xf]
        %v267 = vld [vmem:[%s229 + $0xa8] sm:$0xf]
        %v268 = vld [vmem:[%s229 + $0xac] sm:$0xf]
        %v269 = vld [vmem:[%s229 + $0xb4] sm:$0xf]
        %v270 = vld [vmem:[%s229 + $0xb8] sm:$0xf]
        %v271 = vld [vmem:[%s233] sm:$0xf]
        %v272 = vld [vmem:[%s233 + $0x4] sm:$0xf]
        %v273 = vld [vmem:[%s233 + $0x8] sm:$0xf]
        %v274 = vld [vmem:[%s233 + $0xc] sm:$0xf]
        %v275 = vld [vmem:[%s233 + $0x10] sm:$0xf]
        %v276 = vld [vmem:[%s233 + $0x14] sm:$0xf]
        %v277 = vld [vmem:[%s233 + $0x18] sm:$0xf]
        %v278 = vld [vmem:[%s233 + $0x1c] sm:$0xf]
        %v279 = vld [vmem:[%s233 + $0x20] sm:$0xf]
        %v280 = vld [vmem:[%s233 + $0x24] sm:$0xf]
        %v281 = vld [vmem:[%s233 + $0x28] sm:$0xf]
        %v282 = vld [vmem:[%s233 + $0x2c] sm:$0xf]
        %v283 = vld [vmem:[%s233 + $0x30] sm:$0xf]
        %v284 = vld [vmem:[%s233 + $0x34] sm:$0xf]
        %v285 = vld [vmem:[%s233 + $0x38] sm:$0xf]
        %v286 = vld [vmem:[%s233 + $0x3c] sm:$0xf]
        %v319 = vunpack.c.l.b16 %v239
        %v320 = vunpack.c.l.b16 %v240
        %v321 = vunpack.c.l.b16 %v241
        %v322 = vunpack.c.l.b16 %v242
        %v323 = vunpack.c.l.b16 %v243
        %v324 = vunpack.c.l.b16 %v244
        %v325 = vunpack.c.l.b16 %v245
        %v326 = vunpack.c.l.b16 %v246
        %v327 = vunpack.c.l.b16 %v247
        %v328 = vunpack.c.l.b16 %v248
        %v329 = vunpack.c.l.b16 %v249
        %v330 = vunpack.c.l.b16 %v250
        %v331 = vunpack.c.l.b16 %v251
        %v332 = vunpack.c.l.b16 %v252
        %v333 = vunpack.c.l.b16 %v253
        %v334 = vunpack.c.l.b16 %v254
        %v335 = vunpack.c.l.b16 %v255
        %v336 = vunpack.c.l.b16 %v256
        %v337 = vunpack.c.l.b16 %v257
        %v338 = vunpack.c.l.b16 %v258
        %v339 = vunpack.c.l.b16 %v259
        %v340 = vunpack.c.l.b16 %v260
        %v341 = vunpack.c.l.b16 %v261
        %v342 = vunpack.c.l.b16 %v262
        %v343 = vunpack.c.l.b16 %v263
        %v344 = vunpack.c.l.b16 %v264
        %v345 = vunpack.c.l.b16 %v265
        %v346 = vunpack.c.l.b16 %v266
        %v347 = vunpack.c.l.b16 %v267
        %v348 = vunpack.c.l.b16 %v268
        %v349 = vunpack.c.l.b16 %v269
        %v350 = vunpack.c.l.b16 %v270
        %v351 = vpack.c.b16 %v320, %v319
        %v352 = vpack.c.b16 %v322, %v321
        %v353 = vpack.c.b16 %v324, %v323
        %v354 = vpack.c.b16 %v326, %v325
        %v355 = vpack.c.b16 %v328, %v327
        %v356 = vpack.c.b16 %v330, %v329
        %v357 = vpack.c.b16 %v332, %v331
        %v358 = vpack.c.b16 %v334, %v333
        %v359 = vpack.c.b16 %v336, %v335
        %v360 = vpack.c.b16 %v338, %v337
        %v361 = vpack.c.b16 %v340, %v339
        %v362 = vpack.c.b16 %v342, %v341
        %v363 = vpack.c.b16 %v344, %v343
        %v364 = vpack.c.b16 %v346, %v345
        %v365 = vpack.c.b16 %v348, %v347
        %v366 = vpack.c.b16 %v350, %v349
        %v399 = vunpack.c.l.b16 %v271
        %v400 = vunpack.c.l.b16 %v272
        %v401 = vunpack.c.l.b16 %v273
        %v402 = vunpack.c.l.b16 %v274
        %v403 = vunpack.c.l.b16 %v275
        %v404 = vunpack.c.l.b16 %v276
        %v405 = vunpack.c.l.b16 %v277
        %v406 = vunpack.c.l.b16 %v278
        %v407 = vunpack.c.l.b16 %v279
        %v408 = vunpack.c.l.b16 %v280
        %v409 = vunpack.c.l.b16 %v281
        %v410 = vunpack.c.l.b16 %v282
        %v411 = vunpack.c.l.b16 %v283
        %v412 = vunpack.c.l.b16 %v284
        %v413 = vunpack.c.l.b16 %v285
        %v414 = vunpack.c.l.b16 %v286
        %v415 = vpack.c.b16 %v400, %v399
        %v416 = vpack.c.b16 %v402, %v401
        %v417 = vpack.c.b16 %v404, %v403
        %v418 = vpack.c.b16 %v406, %v405
        %v419 = vpack.c.b16 %v408, %v407
        %v420 = vpack.c.b16 %v410, %v409
        %v421 = vpack.c.b16 %v412, %v411
        %v422 = vpack.c.b16 %v414, %v413
        %431 = vmatprep.subr.bf16.mxu0 0
        %432 = vmatpush1.bf16.msra.mxu0 %v415
        %433 = vmatprep.subr.bf16.mxu0 0
        %434 = vmatpush1.bf16.msra.mxu0 %v416
        %435 = vmatprep.subr.bf16.mxu0 0
        %436 = vmatpush1.bf16.msra.mxu0 %v417
        %437 = vmatprep.subr.bf16.mxu0 0
        %438 = vmatpush1.bf16.msra.mxu0 %v418
        %439 = vmatprep.subr.bf16.mxu0 0
        %440 = vmatpush1.bf16.msra.mxu0 %v419
        %441 = vmatprep.subr.bf16.mxu0 0
        %442 = vmatpush1.bf16.msra.mxu0 %v420
        %443 = vmatprep.subr.bf16.mxu0 0
        %444 = vmatpush1.bf16.msra.mxu0 %v421
        %445 = vmatprep.subr.bf16.mxu0 0
        %446 = vmatpush1.bf16.msra.mxu0 %v422
        %447 = vmatprep.subr.bf16.mxu0 0
        %448 = vmatpush1.bf16.msra.mxu0 0
        %449 = vmatprep.subr.bf16.mxu0 0
        %450 = vmatpush1.bf16.msra.mxu0 0
        %451 = vmatprep.subr.bf16.mxu0 0
        %452 = vmatpush1.bf16.msra.mxu0 0
        %453 = vmatprep.subr.bf16.mxu0 0
        %454 = vmatpush1.bf16.msra.mxu0 0
        %455 = vmatprep.subr.bf16.mxu0 0
        %456 = vmatpush1.bf16.msra.mxu0 0
        %457 = vmatprep.subr.bf16.mxu0 0
        %458 = vmatpush1.bf16.msra.mxu0 0
        %459 = vmatprep.subr.bf16.mxu0 0
        %460 = vmatpush1.bf16.msra.mxu0 0
        %461 = vmatprep.subr.bf16.mxu0 0
        %462 = vmatpush1.bf16.msra.mxu0 0
        %463 = vmatprep.mubr.bf16.mxu0 0
        %464 = vmatmul.mubr.bf16.gmra.mrb[0].mxu0 %v351
        %v465 = vpop.f32.mrb[0].mxu0
        %v466 = vadd.f32 0.0, %v465
        %v467 = vpop.f32.mrb[0].mxu0
        %v468 = vpop.f32.mrb[0].mxu0
        %v469 = vadd.f32 0.0, %v468
        %v470 = vpop.f32.mrb[0].mxu0
        %471 = vmatprep.mubr.bf16.mxu0 0
        %472 = vmatmul.mubr.bf16.gmra.mrb[0].mxu0 %v352
        %v473 = vpop.f32.mrb[0].mxu0
        %v474 = vadd.f32 0.0, %v473
        %v475 = vpop.f32.mrb[0].mxu0
        %v476 = vpop.f32.mrb[0].mxu0
        %v477 = vadd.f32 0.0, %v476
        %v478 = vpop.f32.mrb[0].mxu0
        %479 = vmatprep.mubr.bf16.mxu0 0
        %480 = vmatmul.mubr.bf16.gmra.mrb[0].mxu0 %v353
        %v481 = vpop.f32.mrb[0].mxu0
        %v482 = vadd.f32 0.0, %v481
        %v483 = vpop.f32.mrb[0].mxu0
        %v484 = vpop.f32.mrb[0].mxu0
        %v485 = vadd.f32 0.0, %v484
        %v486 = vpop.f32.mrb[0].mxu0
        %487 = vmatprep.mubr.bf16.mxu0 0
        %488 = vmatmul.mubr.bf16.gmra.mrb[0].mxu0 %v354
        %v489 = vpop.f32.mrb[0].mxu0
        %v490 = vadd.f32 0.0, %v489
        %v491 = vpop.f32.mrb[0].mxu0
        %v492 = vpop.f32.mrb[0].mxu0
        %v493 = vadd.f32 0.0, %v492
        %v494 = vpop.f32.mrb[0].mxu0
        %495 = vmatprep.mubr.bf16.mxu0 0
        %496 = vmatmul.mubr.bf16.gmra.mrb[0].mxu0 %v355
        %v497 = vpop.f32.mrb[0].mxu0
        %v498 = vadd.f32 0.0, %v497
        %v499 = vpop.f32.mrb[0].mxu0
        %v500 = vpop.f32.mrb[0].mxu0
        %v501 = vadd.f32 0.0, %v500
        %v502 = vpop.f32.mrb[0].mxu0
        %503 = vmatprep.mubr.bf16.mxu0 0
        %504 = vmatmul.mubr.bf16.gmra.mrb[0].mxu0 %v356
        %v505 = vpop.f32.mrb[0].mxu0
        %v506 = vadd.f32 0.0, %v505
        %v507 = vpop.f32.mrb[0].mxu0
        %v508 = vpop.f32.mrb[0].mxu0
        %v509 = vadd.f32 0.0, %v508
        %v510 = vpop.f32.mrb[0].mxu0
        %511 = vmatprep.mubr.bf16.mxu0 0
        %512 = vmatmul.mubr.bf16.gmra.mrb[0].mxu0 %v357
        %v513 = vpop.f32.mrb[0].mxu0
        %v514 = vadd.f32 0.0, %v513
        %v515 = vpop.f32.mrb[0].mxu0
        %v516 = vpop.f32.mrb[0].mxu0
        %v517 = vadd.f32 0.0, %v516
        %v518 = vpop.f32.mrb[0].mxu0
        %519 = vmatprep.mubr.bf16.mxu0 0
        %520 = vmatmul.mubr.bf16.gmra.mrb[0].mxu0 %v358
        %v521 = vpop.f32.mrb[0].mxu0
        %v522 = vadd.f32 0.0, %v521
        %v523 = vpop.f32.mrb[0].mxu0
        %v524 = vpop.f32.mrb[0].mxu0
        %v525 = vadd.f32 0.0, %v524
        %v526 = vpop.f32.mrb[0].mxu0
        %527 = vmatprep.mubr.bf16.mxu0 0
        %528 = vmatmul.mubr.bf16.gmra.mrb[0].mxu0 %v359
        %v529 = vpop.f32.mrb[0].mxu0
        %v530 = vadd.f32 0.0, %v529
        %v531 = vpop.f32.mrb[0].mxu0
        %v532 = vpop.f32.mrb[0].mxu0
        %v533 = vadd.f32 0.0, %v532
        %v534 = vpop.f32.mrb[0].mxu0
        %535 = vmatprep.mubr.bf16.mxu0 0
        %536 = vmatmul.mubr.bf16.gmra.mrb[0].mxu0 %v360
        %v537 = vpop.f32.mrb[0].mxu0
        %v538 = vadd.f32 0.0, %v537
        %v539 = vpop.f32.mrb[0].mxu0
        %v540 = vpop.f32.mrb[0].mxu0
        %v541 = vadd.f32 0.0, %v540
        %v542 = vpop.f32.mrb[0].mxu0
        %543 = vmatprep.mubr.bf16.mxu0 0
        %544 = vmatmul.mubr.bf16.gmra.mrb[0].mxu0 %v361
        %v545 = vpop.f32.mrb[0].mxu0
        %v546 = vadd.f32 0.0, %v545
        %v547 = vpop.f32.mrb[0].mxu0
        %v548 = vpop.f32.mrb[0].mxu0
        %v549 = vadd.f32 0.0, %v548
        %v550 = vpop.f32.mrb[0].mxu0
        %551 = vmatprep.mubr.bf16.mxu0 0
        %552 = vmatmul.mubr.bf16.gmra.mrb[0].mxu0 %v362
        %v553 = vpop.f32.mrb[0].mxu0
        %v554 = vadd.f32 0.0, %v553
        %v555 = vpop.f32.mrb[0].mxu0
        %v556 = vpop.f32.mrb[0].mxu0
        %v557 = vadd.f32 0.0, %v556
        %v558 = vpop.f32.mrb[0].mxu0
        %559 = vmatprep.mubr.bf16.mxu0 0
        %560 = vmatmul.mubr.bf16.gmra.mrb[0].mxu0 %v363
        %v561 = vpop.f32.mrb[0].mxu0
        %v562 = vadd.f32 0.0, %v561
        %v563 = vpop.f32.mrb[0].mxu0
        %v564 = vpop.f32.mrb[0].mxu0
        %v565 = vadd.f32 0.0, %v564
        %v566 = vpop.f32.mrb[0].mxu0
        %567 = vmatprep.mubr.bf16.mxu0 0
        %568 = vmatmul.mubr.bf16.gmra.mrb[0].mxu0 %v364
        %v569 = vpop.f32.mrb[0].mxu0
        %v570 = vadd.f32 0.0, %v569
        %v571 = vpop.f32.mrb[0].mxu0
        %v572 = vpop.f32.mrb[0].mxu0
        %v573 = vadd.f32 0.0, %v572
        %v574 = vpop.f32.mrb[0].mxu0
        %575 = vmatprep.mubr.bf16.mxu0 0
        %576 = vmatmul.mubr.bf16.gmra.mrb[0].mxu0 %v365
        %v577 = vpop.f32.mrb[0].mxu0
        %v578 = vadd.f32 0.0, %v577
        %v579 = vpop.f32.mrb[0].mxu0
        %v580 = vpop.f32.mrb[0].mxu0
        %v581 = vadd.f32 0.0, %v580
        %v582 = vpop.f32.mrb[0].mxu0
        %583 = vmatprep.mubr.bf16.mxu0 0
        %584 = vmatmul.mubr.bf16.gmra.mrb[0].mxu0 %v366
        %v585 = vpop.f32.mrb[0].mxu0
        %v586 = vadd.f32 0.0, %v585
        %v587 = vpop.f32.mrb[0].mxu0
        %v588 = vpop.f32.mrb[0].mxu0
        %v589 = vadd.f32 0.0, %v588
        %v590 = vpop.f32.mrb[0].mxu0
        %591 = vdwg.mxu0
        %592 = vst [vmem:[#allocation2] sm:$0xff] %v466
        %593 = vst [vmem:[#allocation2 + $0x8] sm:$0xff] %v469
        %594 = vst [vmem:[#allocation2 + $0x10] sm:$0xff] %v474
        %595 = vst [vmem:[#allocation2 + $0x18] sm:$0xff] %v477
        %596 = vst [vmem:[#allocation2 + $0x20] sm:$0xff] %v482
        %597 = vst [vmem:[#allocation2 + $0x28] sm:$0xff] %v485
        %598 = vst [vmem:[#allocation2 + $0x30] sm:$0xff] %v490
        %599 = vst [vmem:[#allocation2 + $0x38] sm:$0xff] %v493
        %600 = vst [vmem:[#allocation2 + $0x40] sm:$0xff] %v498
        %601 = vst [vmem:[#allocation2 + $0x48] sm:$0xff] %v501
        %602 = vst [vmem:[#allocation2 + $0x50] sm:$0xff] %v506
        %603 = vst [vmem:[#allocation2 + $0x58] sm:$0xff] %v509
        %604 = vst [vmem:[#allocation2 + $0x60] sm:$0xff] %v514
        %605 = vst [vmem:[#allocation2 + $0x68] sm:$0xff] %v517
        %606 = vst [vmem:[#allocation2 + $0x70] sm:$0xff] %v522
        %607 = vst [vmem:[#allocation2 + $0x78] sm:$0xff] %v525
        %608 = vst [vmem:[#allocation2 + $0x80] sm:$0xff] %v530
        %609 = vst [vmem:[#allocation2 + $0x88] sm:$0xff] %v533
        %610 = vst [vmem:[#allocation2 + $0x90] sm:$0xff] %v538
        %611 = vst [vmem:[#allocation2 + $0x98] sm:$0xff] %v541
        %612 = vst [vmem:[#allocation2 + $0xa0] sm:$0xff] %v546
        %613 = vst [vmem:[#allocation2 + $0xa8] sm:$0xff] %v549
        %614 = vst [vmem:[#allocation2 + $0xb0] sm:$0xff] %v554
        %615 = vst [vmem:[#allocation2 + $0xb8] sm:$0xff] %v557
        %616 = vst [vmem:[#allocation2 + $0xc0] sm:$0xff] %v562
        %617 = vst [vmem:[#allocation2 + $0xc8] sm:$0xff] %v565
        %618 = vst [vmem:[#allocation2 + $0xd0] sm:$0xff] %v570
        %619 = vst [vmem:[#allocation2 + $0xd8] sm:$0xff] %v573
        %620 = vst [vmem:[#allocation2 + $0xe0] sm:$0xff] %v578
        %621 = vst [vmem:[#allocation2 + $0xe8] sm:$0xff] %v581
        %622 = vst [vmem:[#allocation2 + $0xf0] sm:$0xff] %v586
        %623 = vst [vmem:[#allocation2 + $0xf8] sm:$0xff] %v589
        %v624 = vld [vmem:[#allocation2] sm:$0xff]
        %v625 = vld [vmem:[#allocation2 + $0x8] sm:$0xff]
        %v626 = vld [vmem:[#allocation2 + $0x10] sm:$0xff]
        %v627 = vld [vmem:[#allocation2 + $0x18] sm:$0xff]
        %v628 = vld [vmem:[#allocation2 + $0x20] sm:$0xff]
        %v629 = vld [vmem:[#allocation2 + $0x28] sm:$0xff]
        %v630 = vld [vmem:[#allocation2 + $0x30] sm:$0xff]
        %v631 = vld [vmem:[#allocation2 + $0x38] sm:$0xff]
        %v632 = vld [vmem:[#allocation2 + $0x40] sm:$0xff]
        %v633 = vld [vmem:[#allocation2 + $0x48] sm:$0xff]
        %v634 = vld [vmem:[#allocation2 + $0x50] sm:$0xff]
        %v635 = vld [vmem:[#allocation2 + $0x58] sm:$0xff]
        %v636 = vld [vmem:[#allocation2 + $0x60] sm:$0xff]
        %v637 = vld [vmem:[#allocation2 + $0x68] sm:$0xff]
        %v638 = vld [vmem:[#allocation2 + $0x70] sm:$0xff]
        %v639 = vld [vmem:[#allocation2 + $0x78] sm:$0xff]
        %v640 = vld [vmem:[#allocation2 + $0x80] sm:$0xff]
        %v641 = vld [vmem:[#allocation2 + $0x88] sm:$0xff]
        %v642 = vld [vmem:[#allocation2 + $0x90] sm:$0xff]
        %v643 = vld [vmem:[#allocation2 + $0x98] sm:$0xff]
        %v644 = vld [vmem:[#allocation2 + $0xa0] sm:$0xff]
        %v645 = vld [vmem:[#allocation2 + $0xa8] sm:$0xff]
        %v646 = vld [vmem:[#allocation2 + $0xb0] sm:$0xff]
        %v647 = vld [vmem:[#allocation2 + $0xb8] sm:$0xff]
        %v648 = vld [vmem:[#allocation2 + $0xc0] sm:$0xff]
        %v649 = vld [vmem:[#allocation2 + $0xc8] sm:$0xff]
        %v650 = vld [vmem:[#allocation2 + $0xd0] sm:$0xff]
        %v651 = vld [vmem:[#allocation2 + $0xd8] sm:$0xff]
        %v652 = vld [vmem:[#allocation2 + $0xe0] sm:$0xff]
        %v653 = vld [vmem:[#allocation2 + $0xe8] sm:$0xff]
        %v654 = vld [vmem:[#allocation2 + $0xf0] sm:$0xff]
        %v655 = vld [vmem:[#allocation2 + $0xf8] sm:$0xff]
        %v656 = vld [vmem:[%s229] sm:$0xf]
        %v657 = vld [vmem:[%s229 + $0x4] sm:$0xf]
        %v658 = vld [vmem:[%s229 + $0x8] sm:$0x1]
        %v659 = vld [vmem:[%s229 + $0xc] sm:$0xf]
        %v660 = vld [vmem:[%s229 + $0x10] sm:$0xf]
        %v661 = vld [vmem:[%s229 + $0x14] sm:$0x1]
        %v662 = vld [vmem:[%s229 + $0x18] sm:$0xf]
        %v663 = vld [vmem:[%s229 + $0x1c] sm:$0xf]
        %v664 = vld [vmem:[%s229 + $0x20] sm:$0x1]
        %v665 = vld [vmem:[%s229 + $0x24] sm:$0xf]
        %v666 = vld [vmem:[%s229 + $0x28] sm:$0xf]
        %v667 = vld [vmem:[%s229 + $0x2c] sm:$0x1]
        %v668 = vld [vmem:[%s229 + $0x30] sm:$0xf]
        %v669 = vld [vmem:[%s229 + $0x34] sm:$0xf]
        %v670 = vld [vmem:[%s229 + $0x38] sm:$0x1]
        %v671 = vld [vmem:[%s229 + $0x3c] sm:$0xf]
        %v672 = vld [vmem:[%s229 + $0x40] sm:$0xf]
        %v673 = vld [vmem:[%s229 + $0x44] sm:$0x1]
        %v674 = vld [vmem:[%s229 + $0x48] sm:$0xf]
        %v675 = vld [vmem:[%s229 + $0x4c] sm:$0xf]
        %v676 = vld [vmem:[%s229 + $0x50] sm:$0x1]
        %v677 = vld [vmem:[%s229 + $0x54] sm:$0xf]
        %v678 = vld [vmem:[%s229 + $0x58] sm:$0xf]
        %v679 = vld [vmem:[%s229 + $0x5c] sm:$0x1]
        %v680 = vld [vmem:[%s229 + $0x60] sm:$0xf]
        %v681 = vld [vmem:[%s229 + $0x64] sm:$0xf]
        %v682 = vld [vmem:[%s229 + $0x68] sm:$0x1]
        %v683 = vld [vmem:[%s229 + $0x6c] sm:$0xf]
        %v684 = vld [vmem:[%s229 + $0x70] sm:$0xf]
        %v685 = vld [vmem:[%s229 + $0x74] sm:$0x1]
        %v686 = vld [vmem:[%s229 + $0x78] sm:$0xf]
        %v687 = vld [vmem:[%s229 + $0x7c] sm:$0xf]
        %v688 = vld [vmem:[%s229 + $0x80] sm:$0x1]
        %v689 = vld [vmem:[%s229 + $0x84] sm:$0xf]
        %v690 = vld [vmem:[%s229 + $0x88] sm:$0xf]
        %v691 = vld [vmem:[%s229 + $0x8c] sm:$0x1]
        %v692 = vld [vmem:[%s229 + $0x90] sm:$0xf]
        %v693 = vld [vmem:[%s229 + $0x94] sm:$0xf]
        %v694 = vld [vmem:[%s229 + $0x98] sm:$0x1]
        %v695 = vld [vmem:[%s229 + $0x9c] sm:$0xf]
        %v696 = vld [vmem:[%s229 + $0xa0] sm:$0xf]
        %v697 = vld [vmem:[%s229 + $0xa4] sm:$0x1]
        %v698 = vld [vmem:[%s229 + $0xa8] sm:$0xf]
        %v699 = vld [vmem:[%s229 + $0xac] sm:$0xf]
        %v700 = vld [vmem:[%s229 + $0xb0] sm:$0x1]
        %v701 = vld [vmem:[%s229 + $0xb4] sm:$0xf]
        %v702 = vld [vmem:[%s229 + $0xb8] sm:$0xf]
        %v703 = vld [vmem:[%s229 + $0xbc] sm:$0x1]
        %vm704 = vsmask.f32 3328
        %vm705 = vsmask.f32 7440
        %vm706 = vmor %vm704, %vm705
        %v708 = vshrl.u32 %v656, 16
        %v710 = vrot.slane %v708, 4
        %v711 = vshll.u32 %v656, 16
        %v713 = vrot.slane %v711, 5
        %v714 = vor.u32 %v710, %v713
        %v715 = vrot.slane %v714, 4
        %v717 = vshll.u32 %v657, 16
        %v719 = vrot.slane %v717, 5
        %v720 = vsel %vm706, %v715, %v719
        %v721 = vshrl.u32 %v657, 16
        %v723 = vrot.slane %v721, 4
        %v724 = vor.u32 %v723, %v719
        %v725 = vrot.slane %v724, 4
        %v727 = vshll.u32 %v658, 16
        %v729 = vrot.slane %v727, 5
        %v730 = vsel %vm706, %v725, %v729
        %v732 = vshrl.u32 %v659, 16
        %v734 = vrot.slane %v732, 4
        %v735 = vshll.u32 %v659, 16
        %v737 = vrot.slane %v735, 5
        %v738 = vor.u32 %v734, %v737
        %v739 = vrot.slane %v738, 4
        %v741 = vshll.u32 %v660, 16
        %v743 = vrot.slane %v741, 5
        %v744 = vsel %vm706, %v739, %v743
        %v745 = vshrl.u32 %v660, 16
        %v747 = vrot.slane %v745, 4
        %v748 = vor.u32 %v747, %v743
        %v749 = vrot.slane %v748, 4
        %v751 = vshll.u32 %v661, 16
        %v753 = vrot.slane %v751, 5
        %v754 = vsel %vm706, %v749, %v753
        %v756 = vshrl.u32 %v662, 16
        %v758 = vrot.slane %v756, 4
        %v759 = vshll.u32 %v662, 16
        %v761 = vrot.slane %v759, 5
        %v762 = vor.u32 %v758, %v761
        %v763 = vrot.slane %v762, 4
        %v765 = vshll.u32 %v663, 16
        %v767 = vrot.slane %v765, 5
        %v768 = vsel %vm706, %v763, %v767
        %v769 = vshrl.u32 %v663, 16
        %v771 = vrot.slane %v769, 4
        %v772 = vor.u32 %v771, %v767
        %v773 = vrot.slane %v772, 4
        %v775 = vshll.u32 %v664, 16
        %v777 = vrot.slane %v775, 5
        %v778 = vsel %vm706, %v773, %v777
        %v780 = vshrl.u32 %v665, 16
        %v782 = vrot.slane %v780, 4
        %v783 = vshll.u32 %v665, 16
        %v785 = vrot.slane %v783, 5
        %v786 = vor.u32 %v782, %v785
        %v787 = vrot.slane %v786, 4
        %v789 = vshll.u32 %v666, 16
        %v791 = vrot.slane %v789, 5
        %v792 = vsel %vm706, %v787, %v791
        %v793 = vshrl.u32 %v666, 16
        %v795 = vrot.slane %v793, 4
        %v796 = vor.u32 %v795, %v791
        %v797 = vrot.slane %v796, 4
        %v799 = vshll.u32 %v667, 16
        %v801 = vrot.slane %v799, 5
        %v802 = vsel %vm706, %v797, %v801
        %v804 = vshrl.u32 %v668, 16
        %v806 = vrot.slane %v804, 4
        %v807 = vshll.u32 %v668, 16
        %v809 = vrot.slane %v807, 5
        %v810 = vor.u32 %v806, %v809
        %v811 = vrot.slane %v810, 4
        %v813 = vshll.u32 %v669, 16
        %v815 = vrot.slane %v813, 5
        %v816 = vsel %vm706, %v811, %v815
        %v817 = vshrl.u32 %v669, 16
        %v819 = vrot.slane %v817, 4
        %v820 = vor.u32 %v819, %v815
        %v821 = vrot.slane %v820, 4
        %v823 = vshll.u32 %v670, 16
        %v825 = vrot.slane %v823, 5
        %v826 = vsel %vm706, %v821, %v825
        %v828 = vshrl.u32 %v671, 16
        %v830 = vrot.slane %v828, 4
        %v831 = vshll.u32 %v671, 16
        %v833 = vrot.slane %v831, 5
        %v834 = vor.u32 %v830, %v833
        %v835 = vrot.slane %v834, 4
        %v837 = vshll.u32 %v672, 16
        %v839 = vrot.slane %v837, 5
        %v840 = vsel %vm706, %v835, %v839
        %v841 = vshrl.u32 %v672, 16
        %v843 = vrot.slane %v841, 4
        %v844 = vor.u32 %v843, %v839
        %v845 = vrot.slane %v844, 4
        %v847 = vshll.u32 %v673, 16
        %v849 = vrot.slane %v847, 5
        %v850 = vsel %vm706, %v845, %v849
        %v852 = vshrl.u32 %v674, 16
        %v854 = vrot.slane %v852, 4
        %v855 = vshll.u32 %v674, 16
        %v857 = vrot.slane %v855, 5
        %v858 = vor.u32 %v854, %v857
        %v859 = vrot.slane %v858, 4
        %v861 = vshll.u32 %v675, 16
        %v863 = vrot.slane %v861, 5
        %v864 = vsel %vm706, %v859, %v863
        %v865 = vshrl.u32 %v675, 16
        %v867 = vrot.slane %v865, 4
        %v868 = vor.u32 %v867, %v863
        %v869 = vrot.slane %v868, 4
        %v871 = vshll.u32 %v676, 16
        %v873 = vrot.slane %v871, 5
        %v874 = vsel %vm706, %v869, %v873
        %v876 = vshrl.u32 %v677, 16
        %v878 = vrot.slane %v876, 4
        %v879 = vshll.u32 %v677, 16
        %v881 = vrot.slane %v879, 5
        %v882 = vor.u32 %v878, %v881
        %v883 = vrot.slane %v882, 4
        %v885 = vshll.u32 %v678, 16
        %v887 = vrot.slane %v885, 5
        %v888 = vsel %vm706, %v883, %v887
        %v889 = vshrl.u32 %v678, 16
        %v891 = vrot.slane %v889, 4
        %v892 = vor.u32 %v891, %v887
        %v893 = vrot.slane %v892, 4
        %v895 = vshll.u32 %v679, 16
        %v897 = vrot.slane %v895, 5
        %v898 = vsel %vm706, %v893, %v897
        %v900 = vshrl.u32 %v680, 16
        %v902 = vrot.slane %v900, 4
        %v903 = vshll.u32 %v680, 16
        %v905 = vrot.slane %v903, 5
        %v906 = vor.u32 %v902, %v905
        %v907 = vrot.slane %v906, 4
        %v909 = vshll.u32 %v681, 16
        %v911 = vrot.slane %v909, 5
        %v912 = vsel %vm706, %v907, %v911
        %v913 = vshrl.u32 %v681, 16
        %v915 = vrot.slane %v913, 4
        %v916 = vor.u32 %v915, %v911
        %v917 = vrot.slane %v916, 4
        %v919 = vshll.u32 %v682, 16
        %v921 = vrot.slane %v919, 5
        %v922 = vsel %vm706, %v917, %v921
        %v924 = vshrl.u32 %v683, 16
        %v926 = vrot.slane %v924, 4
        %v927 = vshll.u32 %v683, 16
        %v929 = vrot.slane %v927, 5
        %v930 = vor.u32 %v926, %v929
        %v931 = vrot.slane %v930, 4
        %v933 = vshll.u32 %v684, 16
        %v935 = vrot.slane %v933, 5
        %v936 = vsel %vm706, %v931, %v935
        %v937 = vshrl.u32 %v684, 16
        %v939 = vrot.slane %v937, 4
        %v940 = vor.u32 %v939, %v935
        %v941 = vrot.slane %v940, 4
        %v943 = vshll.u32 %v685, 16
        %v945 = vrot.slane %v943, 5
        %v946 = vsel %vm706, %v941, %v945
        %v948 = vshrl.u32 %v686, 16
        %v950 = vrot.slane %v948, 4
        %v951 = vshll.u32 %v686, 16
        %v953 = vrot.slane %v951, 5
        %v954 = vor.u32 %v950, %v953
        %v955 = vrot.slane %v954, 4
        %v957 = vshll.u32 %v687, 16
        %v959 = vrot.slane %v957, 5
        %v960 = vsel %vm706, %v955, %v959
        %v961 = vshrl.u32 %v687, 16
        %v963 = vrot.slane %v961, 4
        %v964 = vor.u32 %v963, %v959
        %v965 = vrot.slane %v964, 4
        %v967 = vshll.u32 %v688, 16
        %v969 = vrot.slane %v967, 5
        %v970 = vsel %vm706, %v965, %v969
        %v972 = vshrl.u32 %v689, 16
        %v974 = vrot.slane %v972, 4
        %v975 = vshll.u32 %v689, 16
        %v977 = vrot.slane %v975, 5
        %v978 = vor.u32 %v974, %v977
        %v979 = vrot.slane %v978, 4
        %v981 = vshll.u32 %v690, 16
        %v983 = vrot.slane %v981, 5
        %v984 = vsel %vm706, %v979, %v983
        %v985 = vshrl.u32 %v690, 16
        %v987 = vrot.slane %v985, 4
        %v988 = vor.u32 %v987, %v983
        %v989 = vrot.slane %v988, 4
        %v991 = vshll.u32 %v691, 16
        %v993 = vrot.slane %v991, 5
        %v994 = vsel %vm706, %v989, %v993
        %v996 = vshrl.u32 %v692, 16
        %v998 = vrot.slane %v996, 4
        %v999 = vshll.u32 %v692, 16
        %v1001 = vrot.slane %v999, 5
        %v1002 = vor.u32 %v998, %v1001
        %v1003 = vrot.slane %v1002, 4
        %v1005 = vshll.u32 %v693, 16
        %v1007 = vrot.slane %v1005, 5
        %v1008 = vsel %vm706, %v1003, %v1007
        %v1009 = vshrl.u32 %v693, 16
        %v1011 = vrot.slane %v1009, 4
        %v1012 = vor.u32 %v1011, %v1007
        %v1013 = vrot.slane %v1012, 4
        %v1015 = vshll.u32 %v694, 16
        %v1017 = vrot.slane %v1015, 5
        %v1018 = vsel %vm706, %v1013, %v1017
        %v1020 = vshrl.u32 %v695, 16
        %v1022 = vrot.slane %v1020, 4
        %v1023 = vshll.u32 %v695, 16
        %v1025 = vrot.slane %v1023, 5
        %v1026 = vor.u32 %v1022, %v1025
        %v1027 = vrot.slane %v1026, 4
        %v1029 = vshll.u32 %v696, 16
        %v1031 = vrot.slane %v1029, 5
        %v1032 = vsel %vm706, %v1027, %v1031
        %v1033 = vshrl.u32 %v696, 16
        %v1035 = vrot.slane %v1033, 4
        %v1036 = vor.u32 %v1035, %v1031
        %v1037 = vrot.slane %v1036, 4
        %v1039 = vshll.u32 %v697, 16
        %v1041 = vrot.slane %v1039, 5
        %v1042 = vsel %vm706, %v1037, %v1041
        %v1044 = vshrl.u32 %v698, 16
        %v1046 = vrot.slane %v1044, 4
        %v1047 = vshll.u32 %v698, 16
        %v1049 = vrot.slane %v1047, 5
        %v1050 = vor.u32 %v1046, %v1049
        %v1051 = vrot.slane %v1050, 4
        %v1053 = vshll.u32 %v699, 16
        %v1055 = vrot.slane %v1053, 5
        %v1056 = vsel %vm706, %v1051, %v1055
        %v1057 = vshrl.u32 %v699, 16
        %v1059 = vrot.slane %v1057, 4
        %v1060 = vor.u32 %v1059, %v1055
        %v1061 = vrot.slane %v1060, 4
        %v1063 = vshll.u32 %v700, 16
        %v1065 = vrot.slane %v1063, 5
        %v1066 = vsel %vm706, %v1061, %v1065
        %v1068 = vshrl.u32 %v701, 16
        %v1070 = vrot.slane %v1068, 4
        %v1071 = vshll.u32 %v701, 16
        %v1073 = vrot.slane %v1071, 5
        %v1074 = vor.u32 %v1070, %v1073
        %v1075 = vrot.slane %v1074, 4
        %v1077 = vshll.u32 %v702, 16
        %v1079 = vrot.slane %v1077, 5
        %v1080 = vsel %vm706, %v1075, %v1079
        %v1081 = vshrl.u32 %v702, 16
        %v1083 = vrot.slane %v1081, 4
        %v1084 = vor.u32 %v1083, %v1079
        %v1085 = vrot.slane %v1084, 4
        %v1087 = vshll.u32 %v703, 16
        %v1089 = vrot.slane %v1087, 5
        %v1090 = vsel %vm706, %v1085, %v1089
        %s1091 = scalar_lea.vmem %s233, 64
        %v1092 = vld [vmem:[%s1091] sm:$0xf]
        %v1093 = vld [vmem:[%s1091 + $0x4] sm:$0xf]
        %v1094 = vld [vmem:[%s1091 + $0x8] sm:$0xf]
        %v1095 = vld [vmem:[%s1091 + $0xc] sm:$0xf]
        %v1096 = vld [vmem:[%s1091 + $0x10] sm:$0xf]
        %v1097 = vld [vmem:[%s1091 + $0x14] sm:$0xf]
        %v1098 = vld [vmem:[%s1091 + $0x18] sm:$0xf]
        %v1099 = vld [vmem:[%s1091 + $0x1c] sm:$0xf]
        %v1100 = vld [vmem:[%s1091 + $0x20] sm:$0xf]
        %v1101 = vld [vmem:[%s1091 + $0x24] sm:$0xf]
        %v1102 = vld [vmem:[%s1091 + $0x28] sm:$0xf]
        %v1103 = vld [vmem:[%s1091 + $0x2c] sm:$0xf]
        %v1104 = vld [vmem:[%s1091 + $0x30] sm:$0xf]
        %v1105 = vld [vmem:[%s1091 + $0x34] sm:$0xf]
        %v1106 = vld [vmem:[%s1091 + $0x38] sm:$0xf]
        %v1107 = vld [vmem:[%s1091 + $0x3c] sm:$0xf]
        %v1108 = vunpack.c.l.b16 %v720
        %v1109 = vunpack.c.l.b16 %v730
        %v1110 = vunpack.c.l.b16 %v744
        %v1111 = vunpack.c.l.b16 %v754
        %v1112 = vunpack.c.l.b16 %v768
        %v1113 = vunpack.c.l.b16 %v778
        %v1114 = vunpack.c.l.b16 %v792
        %v1115 = vunpack.c.l.b16 %v802
        %v1116 = vunpack.c.l.b16 %v816
        %v1117 = vunpack.c.l.b16 %v826
        %v1118 = vunpack.c.l.b16 %v840
        %v1119 = vunpack.c.l.b16 %v850
        %v1120 = vunpack.c.l.b16 %v864
        %v1121 = vunpack.c.l.b16 %v874
        %v1122 = vunpack.c.l.b16 %v888
        %v1123 = vunpack.c.l.b16 %v898
        %v1124 = vunpack.c.l.b16 %v912
        %v1125 = vunpack.c.l.b16 %v922
        %v1126 = vunpack.c.l.b16 %v936
        %v1127 = vunpack.c.l.b16 %v946
        %v1128 = vunpack.c.l.b16 %v960
        %v1129 = vunpack.c.l.b16 %v970
        %v1130 = vunpack.c.l.b16 %v984
        %v1131 = vunpack.c.l.b16 %v994
        %v1132 = vunpack.c.l.b16 %v1008
        %v1133 = vunpack.c.l.b16 %v1018
        %v1134 = vunpack.c.l.b16 %v1032
        %v1135 = vunpack.c.l.b16 %v1042
        %v1136 = vunpack.c.l.b16 %v1056
        %v1137 = vunpack.c.l.b16 %v1066
        %v1138 = vunpack.c.l.b16 %v1080
        %v1139 = vunpack.c.l.b16 %v1090
        %v1140 = vpack.c.b16 %v1109, %v1108
        %v1141 = vpack.c.b16 %v1111, %v1110
        %v1142 = vpack.c.b16 %v1113, %v1112
        %v1143 = vpack.c.b16 %v1115, %v1114
        %v1144 = vpack.c.b16 %v1117, %v1116
        %v1145 = vpack.c.b16 %v1119, %v1118
        %v1146 = vpack.c.b16 %v1121, %v1120
        %v1147 = vpack.c.b16 %v1123, %v1122
        %v1148 = vpack.c.b16 %v1125, %v1124
        %v1149 = vpack.c.b16 %v1127, %v1126
        %v1150 = vpack.c.b16 %v1129, %v1128
        %v1151 = vpack.c.b16 %v1131, %v1130
        %v1152 = vpack.c.b16 %v1133, %v1132
        %v1153 = vpack.c.b16 %v1135, %v1134
        %v1154 = vpack.c.b16 %v1137, %v1136
        %v1155 = vpack.c.b16 %v1139, %v1138
        %v1188 = vunpack.c.l.b16 %v1092
        %v1189 = vunpack.c.l.b16 %v1093
        %v1190 = vunpack.c.l.b16 %v1094
        %v1191 = vunpack.c.l.b16 %v1095
        %v1192 = vunpack.c.l.b16 %v1096
        %v1193 = vunpack.c.l.b16 %v1097
        %v1194 = vunpack.c.l.b16 %v1098
        %v1195 = vunpack.c.l.b16 %v1099
        %v1196 = vunpack.c.l.b16 %v1100
        %v1197 = vunpack.c.l.b16 %v1101
        %v1198 = vunpack.c.l.b16 %v1102
        %v1199 = vunpack.c.l.b16 %v1103
        %v1200 = vunpack.c.l.b16 %v1104
        %v1201 = vunpack.c.l.b16 %v1105
        %v1202 = vunpack.c.l.b16 %v1106
        %v1203 = vunpack.c.l.b16 %v1107
        %v1204 = vpack.c.b16 %v1189, %v1188
        %v1205 = vpack.c.b16 %v1191, %v1190
        %v1206 = vpack.c.b16 %v1193, %v1192
        %v1207 = vpack.c.b16 %v1195, %v1194
        %v1208 = vpack.c.b16 %v1197, %v1196
        %v1209 = vpack.c.b16 %v1199, %v1198
        %v1210 = vpack.c.b16 %v1201, %v1200
        %v1211 = vpack.c.b16 %v1203, %v1202
        %1220 = vmatprep.subr.bf16.mxu0 0
        %1221 = vmatpush1.bf16.msra.mxu0 %v1204
        %1222 = vmatprep.subr.bf16.mxu0 0
        %1223 = vmatpush1.bf16.msra.mxu0 %v1205
        %1224 = vmatprep.subr.bf16.mxu0 0
        %1225 = vmatpush1.bf16.msra.mxu0 %v1206
        %1226 = vmatprep.subr.bf16.mxu0 0
        %1227 = vmatpush1.bf16.msra.mxu0 %v1207
        %1228 = vmatprep.subr.bf16.mxu0 0
        %1229 = vmatpush1.bf16.msra.mxu0 %v1208
        %1230 = vmatprep.subr.bf16.mxu0 0
        %1231 = vmatpush1.bf16.msra.mxu0 %v1209
        %1232 = vmatprep.subr.bf16.mxu0 0
        %1233 = vmatpush1.bf16.msra.mxu0 %v1210
        %1234 = vmatprep.subr.bf16.mxu0 0
        %1235 = vmatpush1.bf16.msra.mxu0 %v1211
        %1236 = vmatprep.subr.bf16.mxu0 0
        %1237 = vmatpush1.bf16.msra.mxu0 0
        %1238 = vmatprep.subr.bf16.mxu0 0
        %1239 = vmatpush1.bf16.msra.mxu0 0
        %1240 = vmatprep.subr.bf16.mxu0 0
        %1241 = vmatpush1.bf16.msra.mxu0 0
        %1242 = vmatprep.subr.bf16.mxu0 0
        %1243 = vmatpush1.bf16.msra.mxu0 0
        %1244 = vmatprep.subr.bf16.mxu0 0
        %1245 = vmatpush1.bf16.msra.mxu0 0
        %1246 = vmatprep.subr.bf16.mxu0 0
        %1247 = vmatpush1.bf16.msra.mxu0 0
        %1248 = vmatprep.subr.bf16.mxu0 0
        %1249 = vmatpush1.bf16.msra.mxu0 0
        %1250 = vmatprep.subr.bf16.mxu0 0
        %1251 = vmatpush1.bf16.msra.mxu0 0
        %1252 = vmatprep.mubr.bf16.mxu0 0
        %1253 = vmatmul.mubr.bf16.gmra.mrb[0].mxu0 %v1140
        %v1254 = vpop.f32.mrb[0].mxu0
        %v1255 = vadd.f32 0.0, %v1254
        %v1256 = vpop.f32.mrb[0].mxu0
        %v1257 = vpop.f32.mrb[0].mxu0
        %v1258 = vadd.f32 0.0, %v1257
        %v1259 = vpop.f32.mrb[0].mxu0
        %1260 = vmatprep.mubr.bf16.mxu0 0
        %1261 = vmatmul.mubr.bf16.gmra.mrb[0].mxu0 %v1141
        %v1262 = vpop.f32.mrb[0].mxu0
        %v1263 = vadd.f32 0.0, %v1262
        %v1264 = vpop.f32.mrb[0].mxu0
        %v1265 = vpop.f32.mrb[0].mxu0
        %v1266 = vadd.f32 0.0, %v1265
        %v1267 = vpop.f32.mrb[0].mxu0
        %1268 = vmatprep.mubr.bf16.mxu0 0
        %1269 = vmatmul.mubr.bf16.gmra.mrb[0].mxu0 %v1142
        %v1270 = vpop.f32.mrb[0].mxu0
        %v1271 = vadd.f32 0.0, %v1270
        %v1272 = vpop.f32.mrb[0].mxu0
        %v1273 = vpop.f32.mrb[0].mxu0
        %v1274 = vadd.f32 0.0, %v1273
        %v1275 = vpop.f32.mrb[0].mxu0
        %1276 = vmatprep.mubr.bf16.mxu0 0
        %1277 = vmatmul.mubr.bf16.gmra.mrb[0].mxu0 %v1143
        %v1278 = vpop.f32.mrb[0].mxu0
        %v1279 = vadd.f32 0.0, %v1278
        %v1280 = vpop.f32.mrb[0].mxu0
        %v1281 = vpop.f32.mrb[0].mxu0
        %v1282 = vadd.f32 0.0, %v1281
        %v1283 = vpop.f32.mrb[0].mxu0
        %1284 = vmatprep.mubr.bf16.mxu0 0
        %1285 = vmatmul.mubr.bf16.gmra.mrb[0].mxu0 %v1144
        %v1286 = vpop.f32.mrb[0].mxu0
        %v1287 = vadd.f32 0.0, %v1286
        %v1288 = vpop.f32.mrb[0].mxu0
        %v1289 = vpop.f32.mrb[0].mxu0
        %v1290 = vadd.f32 0.0, %v1289
        %v1291 = vpop.f32.mrb[0].mxu0
        %1292 = vmatprep.mubr.bf16.mxu0 0
        %1293 = vmatmul.mubr.bf16.gmra.mrb[0].mxu0 %v1145
        %v1294 = vpop.f32.mrb[0].mxu0
        %v1295 = vadd.f32 0.0, %v1294
        %v1296 = vpop.f32.mrb[0].mxu0
        %v1297 = vpop.f32.mrb[0].mxu0
        %v1298 = vadd.f32 0.0, %v1297
        %v1299 = vpop.f32.mrb[0].mxu0
        %1300 = vmatprep.mubr.bf16.mxu0 0
        %1301 = vmatmul.mubr.bf16.gmra.mrb[0].mxu0 %v1146
        %v1302 = vpop.f32.mrb[0].mxu0
        %v1303 = vadd.f32 0.0, %v1302
        %v1304 = vpop.f32.mrb[0].mxu0
        %v1305 = vpop.f32.mrb[0].mxu0
        %v1306 = vadd.f32 0.0, %v1305
        %v1307 = vpop.f32.mrb[0].mxu0
        %1308 = vmatprep.mubr.bf16.mxu0 0
        %1309 = vmatmul.mubr.bf16.gmra.mrb[0].mxu0 %v1147
        %v1310 = vpop.f32.mrb[0].mxu0
        %v1311 = vadd.f32 0.0, %v1310
        %v1312 = vpop.f32.mrb[0].mxu0
        %v1313 = vpop.f32.mrb[0].mxu0
        %v1314 = vadd.f32 0.0, %v1313
        %v1315 = vpop.f32.mrb[0].mxu0
        %1316 = vmatprep.mubr.bf16.mxu0 0
        %1317 = vmatmul.mubr.bf16.gmra.mrb[0].mxu0 %v1148
        %v1318 = vpop.f32.mrb[0].mxu0
        %v1319 = vadd.f32 0.0, %v1318
        %v1320 = vpop.f32.mrb[0].mxu0
        %v1321 = vpop.f32.mrb[0].mxu0
        %v1322 = vadd.f32 0.0, %v1321
        %v1323 = vpop.f32.mrb[0].mxu0
        %1324 = vmatprep.mubr.bf16.mxu0 0
        %1325 = vmatmul.mubr.bf16.gmra.mrb[0].mxu0 %v1149
        %v1326 = vpop.f32.mrb[0].mxu0
        %v1327 = vadd.f32 0.0, %v1326
        %v1328 = vpop.f32.mrb[0].mxu0
        %v1329 = vpop.f32.mrb[0].mxu0
        %v1330 = vadd.f32 0.0, %v1329
        %v1331 = vpop.f32.mrb[0].mxu0
        %1332 = vmatprep.mubr.bf16.mxu0 0
        %1333 = vmatmul.mubr.bf16.gmra.mrb[0].mxu0 %v1150
        %v1334 = vpop.f32.mrb[0].mxu0
        %v1335 = vadd.f32 0.0, %v1334
        %v1336 = vpop.f32.mrb[0].mxu0
        %v1337 = vpop.f32.mrb[0].mxu0
        %v1338 = vadd.f32 0.0, %v1337
        %v1339 = vpop.f32.mrb[0].mxu0
        %1340 = vmatprep.mubr.bf16.mxu0 0
        %1341 = vmatmul.mubr.bf16.gmra.mrb[0].mxu0 %v1151
        %v1342 = vpop.f32.mrb[0].mxu0
        %v1343 = vadd.f32 0.0, %v1342
        %v1344 = vpop.f32.mrb[0].mxu0
        %v1345 = vpop.f32.mrb[0].mxu0
        %v1346 = vadd.f32 0.0, %v1345
        %v1347 = vpop.f32.mrb[0].mxu0
        %1348 = vmatprep.mubr.bf16.mxu0 0
        %1349 = vmatmul.mubr.bf16.gmra.mrb[0].mxu0 %v1152
        %v1350 = vpop.f32.mrb[0].mxu0
        %v1351 = vadd.f32 0.0, %v1350
        %v1352 = vpop.f32.mrb[0].mxu0
        %v1353 = vpop.f32.mrb[0].mxu0
        %v1354 = vadd.f32 0.0, %v1353
        %v1355 = vpop.f32.mrb[0].mxu0
        %1356 = vmatprep.mubr.bf16.mxu0 0
        %1357 = vmatmul.mubr.bf16.gmra.mrb[0].mxu0 %v1153
        %v1358 = vpop.f32.mrb[0].mxu0
        %v1359 = vadd.f32 0.0, %v1358
        %v1360 = vpop.f32.mrb[0].mxu0
        %v1361 = vpop.f32.mrb[0].mxu0
        %v1362 = vadd.f32 0.0, %v1361
        %v1363 = vpop.f32.mrb[0].mxu0
        %1364 = vmatprep.mubr.bf16.mxu0 0
        %1365 = vmatmul.mubr.bf16.gmra.mrb[0].mxu0 %v1154
        %v1366 = vpop.f32.mrb[0].mxu0
        %v1367 = vadd.f32 0.0, %v1366
        %v1368 = vpop.f32.mrb[0].mxu0
        %v1369 = vpop.f32.mrb[0].mxu0
        %v1370 = vadd.f32 0.0, %v1369
        %v1371 = vpop.f32.mrb[0].mxu0
        %1372 = vmatprep.mubr.bf16.mxu0 0
        %1373 = vmatmul.mubr.bf16.gmra.mrb[0].mxu0 %v1155
        %v1374 = vpop.f32.mrb[0].mxu0
        %v1375 = vadd.f32 0.0, %v1374
        %v1376 = vpop.f32.mrb[0].mxu0
        %v1377 = vpop.f32.mrb[0].mxu0
        %v1378 = vadd.f32 0.0, %v1377
        %v1379 = vpop.f32.mrb[0].mxu0
        %1380 = vdwg.mxu0
        %v1381 = vadd.f32 %v624, %v1255
        %v1382 = vadd.f32 %v625, %v1258
        %v1383 = vadd.f32 %v626, %v1263
        %v1384 = vadd.f32 %v627, %v1266
        %v1385 = vadd.f32 %v628, %v1271
        %v1386 = vadd.f32 %v629, %v1274
        %v1387 = vadd.f32 %v630, %v1279
        %v1388 = vadd.f32 %v631, %v1282
        %v1389 = vadd.f32 %v632, %v1287
        %v1390 = vadd.f32 %v633, %v1290
        %v1391 = vadd.f32 %v634, %v1295
        %v1392 = vadd.f32 %v635, %v1298
        %v1393 = vadd.f32 %v636, %v1303
        %v1394 = vadd.f32 %v637, %v1306
        %v1395 = vadd.f32 %v638, %v1311
        %v1396 = vadd.f32 %v639, %v1314
        %v1397 = vadd.f32 %v640, %v1319
        %v1398 = vadd.f32 %v641, %v1322
        %v1399 = vadd.f32 %v642, %v1327
        %v1400 = vadd.f32 %v643, %v1330
        %v1401 = vadd.f32 %v644, %v1335
        %v1402 = vadd.f32 %v645, %v1338
        %v1403 = vadd.f32 %v646, %v1343
        %v1404 = vadd.f32 %v647, %v1346
        %v1405 = vadd.f32 %v648, %v1351
        %v1406 = vadd.f32 %v649, %v1354
        %v1407 = vadd.f32 %v650, %v1359
        %v1408 = vadd.f32 %v651, %v1362
        %v1409 = vadd.f32 %v652, %v1367
        %v1410 = vadd.f32 %v653, %v1370
        %v1411 = vadd.f32 %v654, %v1375
        %v1412 = vadd.f32 %v655, %v1378
        %1413 = vst [vmem:[#allocation2] sm:$0xff] %v1381
        %1414 = vst [vmem:[#allocation2 + $0x8] sm:$0xff] %v1382
        %1415 = vst [vmem:[#allocation2 + $0x10] sm:$0xff] %v1383
        %1416 = vst [vmem:[#allocation2 + $0x18] sm:$0xff] %v1384
        %1417 = vst [vmem:[#allocation2 + $0x20] sm:$0xff] %v1385
        %1418 = vst [vmem:[#allocation2 + $0x28] sm:$0xff] %v1386
        %1419 = vst [vmem:[#allocation2 + $0x30] sm:$0xff] %v1387
        %1420 = vst [vmem:[#allocation2 + $0x38] sm:$0xff] %v1388
        %1421 = vst [vmem:[#allocation2 + $0x40] sm:$0xff] %v1389
        %1422 = vst [vmem:[#allocation2 + $0x48] sm:$0xff] %v1390
        %1423 = vst [vmem:[#allocation2 + $0x50] sm:$0xff] %v1391
        %1424 = vst [vmem:[#allocation2 + $0x58] sm:$0xff] %v1392
        %1425 = vst [vmem:[#allocation2 + $0x60] sm:$0xff] %v1393
        %1426 = vst [vmem:[#allocation2 + $0x68] sm:$0xff] %v1394
        %1427 = vst [vmem:[#allocation2 + $0x70] sm:$0xff] %v1395
        %1428 = vst [vmem:[#allocation2 + $0x78] sm:$0xff] %v1396
        %1429 = vst [vmem:[#allocation2 + $0x80] sm:$0xff] %v1397
        %1430 = vst [vmem:[#allocation2 + $0x88] sm:$0xff] %v1398
        %1431 = vst [vmem:[#allocation2 + $0x90] sm:$0xff] %v1399
        %1432 = vst [vmem:[#allocation2 + $0x98] sm:$0xff] %v1400
        %1433 = vst [vmem:[#allocation2 + $0xa0] sm:$0xff] %v1401
        %1434 = vst [vmem:[#allocation2 + $0xa8] sm:$0xff] %v1402
        %1435 = vst [vmem:[#allocation2 + $0xb0] sm:$0xff] %v1403
        %1436 = vst [vmem:[#allocation2 + $0xb8] sm:$0xff] %v1404
        %1437 = vst [vmem:[#allocation2 + $0xc0] sm:$0xff] %v1405
        %1438 = vst [vmem:[#allocation2 + $0xc8] sm:$0xff] %v1406
        %1439 = vst [vmem:[#allocation2 + $0xd0] sm:$0xff] %v1407
        %1440 = vst [vmem:[#allocation2 + $0xd8] sm:$0xff] %v1408
        %1441 = vst [vmem:[#allocation2 + $0xe0] sm:$0xff] %v1409
        %1442 = vst [vmem:[#allocation2 + $0xe8] sm:$0xff] %v1410
        %1443 = vst [vmem:[#allocation2 + $0xf0] sm:$0xff] %v1411
        %1444 = vst [vmem:[#allocation2 + $0xf8] sm:$0xff] %v1412
        %v1445 = vld [vmem:[#allocation2] sm:$0xff]
        %v1446 = vld [vmem:[#allocation2 + $0x8] sm:$0xff]
        %v1447 = vld [vmem:[#allocation2 + $0x10] sm:$0xff]
        %v1448 = vld [vmem:[#allocation2 + $0x18] sm:$0xff]
        %v1449 = vld [vmem:[#allocation2 + $0x20] sm:$0xff]
        %v1450 = vld [vmem:[#allocation2 + $0x28] sm:$0xff]
        %v1451 = vld [vmem:[#allocation2 + $0x30] sm:$0xff]
        %v1452 = vld [vmem:[#allocation2 + $0x38] sm:$0xff]
        %v1453 = vld [vmem:[#allocation2 + $0x40] sm:$0xff]
        %v1454 = vld [vmem:[#allocation2 + $0x48] sm:$0xff]
        %v1455 = vld [vmem:[#allocation2 + $0x50] sm:$0xff]
        %v1456 = vld [vmem:[#allocation2 + $0x58] sm:$0xff]
        %v1457 = vld [vmem:[#allocation2 + $0x60] sm:$0xff]
        %v1458 = vld [vmem:[#allocation2 + $0x68] sm:$0xff]
        %v1459 = vld [vmem:[#allocation2 + $0x70] sm:$0xff]
        %v1460 = vld [vmem:[#allocation2 + $0x78] sm:$0xff]
        %v1461 = vld [vmem:[#allocation2 + $0x80] sm:$0xff]
        %v1462 = vld [vmem:[#allocation2 + $0x88] sm:$0xff]
        %v1463 = vld [vmem:[#allocation2 + $0x90] sm:$0xff]
        %v1464 = vld [vmem:[#allocation2 + $0x98] sm:$0xff]
        %v1465 = vld [vmem:[#allocation2 + $0xa0] sm:$0xff]
        %v1466 = vld [vmem:[#allocation2 + $0xa8] sm:$0xff]
        %v1467 = vld [vmem:[#allocation2 + $0xb0] sm:$0xff]
        %v1468 = vld [vmem:[#allocation2 + $0xb8] sm:$0xff]
        %v1469 = vld [vmem:[#allocation2 + $0xc0] sm:$0xff]
        %v1470 = vld [vmem:[#allocation2 + $0xc8] sm:$0xff]
        %v1471 = vld [vmem:[#allocation2 + $0xd0] sm:$0xff]
        %v1472 = vld [vmem:[#allocation2 + $0xd8] sm:$0xff]
        %v1473 = vld [vmem:[#allocation2 + $0xe0] sm:$0xff]
        %v1474 = vld [vmem:[#allocation2 + $0xe8] sm:$0xff]
        %v1475 = vld [vmem:[#allocation2 + $0xf0] sm:$0xff]
        %v1476 = vld [vmem:[#allocation2 + $0xf8] sm:$0xff]
        %v1477 = vld [vmem:[%s229] sm:$0xe]
        %v1478 = vld [vmem:[%s229 + $0x4] sm:$0xf]
        %v1479 = vld [vmem:[%s229 + $0x8] sm:$0x1]
        %v1480 = vld [vmem:[%s229 + $0xc] sm:$0xe]
        %v1481 = vld [vmem:[%s229 + $0x10] sm:$0xf]
        %v1482 = vld [vmem:[%s229 + $0x14] sm:$0x1]
        %v1483 = vld [vmem:[%s229 + $0x18] sm:$0xe]
        %v1484 = vld [vmem:[%s229 + $0x1c] sm:$0xf]
        %v1485 = vld [vmem:[%s229 + $0x20] sm:$0x1]
        %v1486 = vld [vmem:[%s229 + $0x24] sm:$0xe]
        %v1487 = vld [vmem:[%s229 + $0x28] sm:$0xf]
        %v1488 = vld [vmem:[%s229 + $0x2c] sm:$0x1]
        %v1489 = vld [vmem:[%s229 + $0x30] sm:$0xe]
        %v1490 = vld [vmem:[%s229 + $0x34] sm:$0xf]
        %v1491 = vld [vmem:[%s229 + $0x38] sm:$0x1]
        %v1492 = vld [vmem:[%s229 + $0x3c] sm:$0xe]
        %v1493 = vld [vmem:[%s229 + $0x40] sm:$0xf]
        %v1494 = vld [vmem:[%s229 + $0x44] sm:$0x1]
        %v1495 = vld [vmem:[%s229 + $0x48] sm:$0xe]
        %v1496 = vld [vmem:[%s229 + $0x4c] sm:$0xf]
        %v1497 = vld [vmem:[%s229 + $0x50] sm:$0x1]
        %v1498 = vld [vmem:[%s229 + $0x54] sm:$0xe]
        %v1499 = vld [vmem:[%s229 + $0x58] sm:$0xf]
        %v1500 = vld [vmem:[%s229 + $0x5c] sm:$0x1]
        %v1501 = vld [vmem:[%s229 + $0x60] sm:$0xe]
        %v1502 = vld [vmem:[%s229 + $0x64] sm:$0xf]
        %v1503 = vld [vmem:[%s229 + $0x68] sm:$0x1]
        %v1504 = vld [vmem:[%s229 + $0x6c] sm:$0xe]
        %v1505 = vld [vmem:[%s229 + $0x70] sm:$0xf]
        %v1506 = vld [vmem:[%s229 + $0x74] sm:$0x1]
        %v1507 = vld [vmem:[%s229 + $0x78] sm:$0xe]
        %v1508 = vld [vmem:[%s229 + $0x7c] sm:$0xf]
        %v1509 = vld [vmem:[%s229 + $0x80] sm:$0x1]
        %v1510 = vld [vmem:[%s229 + $0x84] sm:$0xe]
        %v1511 = vld [vmem:[%s229 + $0x88] sm:$0xf]
        %v1512 = vld [vmem:[%s229 + $0x8c] sm:$0x1]
        %v1513 = vld [vmem:[%s229 + $0x90] sm:$0xe]
        %v1514 = vld [vmem:[%s229 + $0x94] sm:$0xf]
        %v1515 = vld [vmem:[%s229 + $0x98] sm:$0x1]
        %v1516 = vld [vmem:[%s229 + $0x9c] sm:$0xe]
        %v1517 = vld [vmem:[%s229 + $0xa0] sm:$0xf]
        %v1518 = vld [vmem:[%s229 + $0xa4] sm:$0x1]
        %v1519 = vld [vmem:[%s229 + $0xa8] sm:$0xe]
        %v1520 = vld [vmem:[%s229 + $0xac] sm:$0xf]
        %v1521 = vld [vmem:[%s229 + $0xb0] sm:$0x1]
        %v1522 = vld [vmem:[%s229 + $0xb4] sm:$0xe]
        %v1523 = vld [vmem:[%s229 + $0xb8] sm:$0xf]
        %v1524 = vld [vmem:[%s229 + $0xbc] sm:$0x1]
        %vm1573 = vcmask 1042432
        %vm1574 = vcmask 1046532
        %vm1575 = vmor %vm1573, %vm1574
        %v1576 = vrot.slane %v1477, 5
        %v1577 = vrot.slane %v1576, 4
        %v1578 = vrot.slane %v1478, 5
        %v1579 = vsel %vm1575, %v1577, %v1578
        %v1580 = vrot.slane %v1578, 4
        %v1581 = vrot.slane %v1479, 5
        %v1582 = vsel %vm1575, %v1580, %v1581
        %v1583 = vrot.slane %v1480, 5
        %v1584 = vrot.slane %v1583, 4
        %v1585 = vrot.slane %v1481, 5
        %v1586 = vsel %vm1575, %v1584, %v1585
        %v1587 = vrot.slane %v1585, 4
        %v1588 = vrot.slane %v1482, 5
        %v1589 = vsel %vm1575, %v1587, %v1588
        %v1590 = vrot.slane %v1483, 5
        %v1591 = vrot.slane %v1590, 4
        %v1592 = vrot.slane %v1484, 5
        %v1593 = vsel %vm1575, %v1591, %v1592
        %v1594 = vrot.slane %v1592, 4
        %v1595 = vrot.slane %v1485, 5
        %v1596 = vsel %vm1575, %v1594, %v1595
        %v1597 = vrot.slane %v1486, 5
        %v1598 = vrot.slane %v1597, 4
        %v1599 = vrot.slane %v1487, 5
        %v1600 = vsel %vm1575, %v1598, %v1599
        %v1601 = vrot.slane %v1599, 4
        %v1602 = vrot.slane %v1488, 5
        %v1603 = vsel %vm1575, %v1601, %v1602
        %v1604 = vrot.slane %v1489, 5
        %v1605 = vrot.slane %v1604, 4
        %v1606 = vrot.slane %v1490, 5
        %v1607 = vsel %vm1575, %v1605, %v1606
        %v1608 = vrot.slane %v1606, 4
        %v1609 = vrot.slane %v1491, 5
        %v1610 = vsel %vm1575, %v1608, %v1609
        %v1611 = vrot.slane %v1492, 5
        %v1612 = vrot.slane %v1611, 4
        %v1613 = vrot.slane %v1493, 5
        %v1614 = vsel %vm1575, %v1612, %v1613
        %v1615 = vrot.slane %v1613, 4
        %v1616 = vrot.slane %v1494, 5
        %v1617 = vsel %vm1575, %v1615, %v1616
        %v1618 = vrot.slane %v1495, 5
        %v1619 = vrot.slane %v1618, 4
        %v1620 = vrot.slane %v1496, 5
        %v1621 = vsel %vm1575, %v1619, %v1620
        %v1622 = vrot.slane %v1620, 4
        %v1623 = vrot.slane %v1497, 5
        %v1624 = vsel %vm1575, %v1622, %v1623
        %v1625 = vrot.slane %v1498, 5
        %v1626 = vrot.slane %v1625, 4
        %v1627 = vrot.slane %v1499, 5
        %v1628 = vsel %vm1575, %v1626, %v1627
        %v1629 = vrot.slane %v1627, 4
        %v1630 = vrot.slane %v1500, 5
        %v1631 = vsel %vm1575, %v1629, %v1630
        %v1632 = vrot.slane %v1501, 5
        %v1633 = vrot.slane %v1632, 4
        %v1634 = vrot.slane %v1502, 5
        %v1635 = vsel %vm1575, %v1633, %v1634
        %v1636 = vrot.slane %v1634, 4
        %v1637 = vrot.slane %v1503, 5
        %v1638 = vsel %vm1575, %v1636, %v1637
        %v1639 = vrot.slane %v1504, 5
        %v1640 = vrot.slane %v1639, 4
        %v1641 = vrot.slane %v1505, 5
        %v1642 = vsel %vm1575, %v1640, %v1641
        %v1643 = vrot.slane %v1641, 4
        %v1644 = vrot.slane %v1506, 5
        %v1645 = vsel %vm1575, %v1643, %v1644
        %v1646 = vrot.slane %v1507, 5
        %v1647 = vrot.slane %v1646, 4
        %v1648 = vrot.slane %v1508, 5
        %v1649 = vsel %vm1575, %v1647, %v1648
        %v1650 = vrot.slane %v1648, 4
        %v1651 = vrot.slane %v1509, 5
        %v1652 = vsel %vm1575, %v1650, %v1651
        %v1653 = vrot.slane %v1510, 5
        %v1654 = vrot.slane %v1653, 4
        %v1655 = vrot.slane %v1511, 5
        %v1656 = vsel %vm1575, %v1654, %v1655
        %v1657 = vrot.slane %v1655, 4
        %v1658 = vrot.slane %v1512, 5
        %v1659 = vsel %vm1575, %v1657, %v1658
        %v1660 = vrot.slane %v1513, 5
        %v1661 = vrot.slane %v1660, 4
        %v1662 = vrot.slane %v1514, 5
        %v1663 = vsel %vm1575, %v1661, %v1662
        %v1664 = vrot.slane %v1662, 4
        %v1665 = vrot.slane %v1515, 5
        %v1666 = vsel %vm1575, %v1664, %v1665
        %v1667 = vrot.slane %v1516, 5
        %v1668 = vrot.slane %v1667, 4
        %v1669 = vrot.slane %v1517, 5
        %v1670 = vsel %vm1575, %v1668, %v1669
        %v1671 = vrot.slane %v1669, 4
        %v1672 = vrot.slane %v1518, 5
        %v1673 = vsel %vm1575, %v1671, %v1672
        %v1674 = vrot.slane %v1519, 5
        %v1675 = vrot.slane %v1674, 4
        %v1676 = vrot.slane %v1520, 5
        %v1677 = vsel %vm1575, %v1675, %v1676
        %v1678 = vrot.slane %v1676, 4
        %v1679 = vrot.slane %v1521, 5
        %v1680 = vsel %vm1575, %v1678, %v1679
        %v1681 = vrot.slane %v1522, 5
        %v1682 = vrot.slane %v1681, 4
        %v1683 = vrot.slane %v1523, 5
        %v1684 = vsel %vm1575, %v1682, %v1683
        %v1685 = vrot.slane %v1683, 4
        %v1686 = vrot.slane %v1524, 5
        %v1687 = vsel %vm1575, %v1685, %v1686
        %s1688 = scalar_lea.vmem %s233, 128
        %v1689 = vld [vmem:[%s1688] sm:$0xf]
        %v1690 = vld [vmem:[%s1688 + $0x4] sm:$0xf]
        %v1691 = vld [vmem:[%s1688 + $0x8] sm:$0xf]
        %v1692 = vld [vmem:[%s1688 + $0xc] sm:$0xf]
        %v1693 = vld [vmem:[%s1688 + $0x10] sm:$0xf]
        %v1694 = vld [vmem:[%s1688 + $0x14] sm:$0xf]
        %v1695 = vld [vmem:[%s1688 + $0x18] sm:$0xf]
        %v1696 = vld [vmem:[%s1688 + $0x1c] sm:$0xf]
        %v1697 = vld [vmem:[%s1688 + $0x20] sm:$0xf]
        %v1698 = vld [vmem:[%s1688 + $0x24] sm:$0xf]
        %v1699 = vld [vmem:[%s1688 + $0x28] sm:$0xf]
        %v1700 = vld [vmem:[%s1688 + $0x2c] sm:$0xf]
        %v1701 = vld [vmem:[%s1688 + $0x30] sm:$0xf]
        %v1702 = vld [vmem:[%s1688 + $0x34] sm:$0xf]
        %v1703 = vld [vmem:[%s1688 + $0x38] sm:$0xf]
        %v1704 = vld [vmem:[%s1688 + $0x3c] sm:$0xf]
        %v1705 = vunpack.c.l.b16 %v1579
        %v1706 = vunpack.c.l.b16 %v1582
        %v1707 = vunpack.c.l.b16 %v1586
        %v1708 = vunpack.c.l.b16 %v1589
        %v1709 = vunpack.c.l.b16 %v1593
        %v1710 = vunpack.c.l.b16 %v1596
        %v1711 = vunpack.c.l.b16 %v1600
        %v1712 = vunpack.c.l.b16 %v1603
        %v1713 = vunpack.c.l.b16 %v1607
        %v1714 = vunpack.c.l.b16 %v1610
        %v1715 = vunpack.c.l.b16 %v1614
        %v1716 = vunpack.c.l.b16 %v1617
        %v1717 = vunpack.c.l.b16 %v1621
        %v1718 = vunpack.c.l.b16 %v1624
        %v1719 = vunpack.c.l.b16 %v1628
        %v1720 = vunpack.c.l.b16 %v1631
        %v1721 = vunpack.c.l.b16 %v1635
        %v1722 = vunpack.c.l.b16 %v1638
        %v1723 = vunpack.c.l.b16 %v1642
        %v1724 = vunpack.c.l.b16 %v1645
        %v1725 = vunpack.c.l.b16 %v1649
        %v1726 = vunpack.c.l.b16 %v1652
        %v1727 = vunpack.c.l.b16 %v1656
        %v1728 = vunpack.c.l.b16 %v1659
        %v1729 = vunpack.c.l.b16 %v1663
        %v1730 = vunpack.c.l.b16 %v1666
        %v1731 = vunpack.c.l.b16 %v1670
        %v1732 = vunpack.c.l.b16 %v1673
        %v1733 = vunpack.c.l.b16 %v1677
        %v1734 = vunpack.c.l.b16 %v1680
        %v1735 = vunpack.c.l.b16 %v1684
        %v1736 = vunpack.c.l.b16 %v1687
        %v1737 = vpack.c.b16 %v1706, %v1705
        %v1738 = vpack.c.b16 %v1708, %v1707
        %v1739 = vpack.c.b16 %v1710, %v1709
        %v1740 = vpack.c.b16 %v1712, %v1711
        %v1741 = vpack.c.b16 %v1714, %v1713
        %v1742 = vpack.c.b16 %v1716, %v1715
        %v1743 = vpack.c.b16 %v1718, %v1717
        %v1744 = vpack.c.b16 %v1720, %v1719
        %v1745 = vpack.c.b16 %v1722, %v1721
        %v1746 = vpack.c.b16 %v1724, %v1723
        %v1747 = vpack.c.b16 %v1726, %v1725
        %v1748 = vpack.c.b16 %v1728, %v1727
        %v1749 = vpack.c.b16 %v1730, %v1729
        %v1750 = vpack.c.b16 %v1732, %v1731
        %v1751 = vpack.c.b16 %v1734, %v1733
        %v1752 = vpack.c.b16 %v1736, %v1735
        %v1785 = vunpack.c.l.b16 %v1689
        %v1786 = vunpack.c.l.b16 %v1690
        %v1787 = vunpack.c.l.b16 %v1691
        %v1788 = vunpack.c.l.b16 %v1692
        %v1789 = vunpack.c.l.b16 %v1693
        %v1790 = vunpack.c.l.b16 %v1694
        %v1791 = vunpack.c.l.b16 %v1695
        %v1792 = vunpack.c.l.b16 %v1696
        %v1793 = vunpack.c.l.b16 %v1697
        %v1794 = vunpack.c.l.b16 %v1698
        %v1795 = vunpack.c.l.b16 %v1699
        %v1796 = vunpack.c.l.b16 %v1700
        %v1797 = vunpack.c.l.b16 %v1701
        %v1798 = vunpack.c.l.b16 %v1702
        %v1799 = vunpack.c.l.b16 %v1703
        %v1800 = vunpack.c.l.b16 %v1704
        %v1801 = vpack.c.b16 %v1786, %v1785
        %v1802 = vpack.c.b16 %v1788, %v1787
        %v1803 = vpack.c.b16 %v1790, %v1789
        %v1804 = vpack.c.b16 %v1792, %v1791
        %v1805 = vpack.c.b16 %v1794, %v1793
        %v1806 = vpack.c.b16 %v1796, %v1795
        %v1807 = vpack.c.b16 %v1798, %v1797
        %v1808 = vpack.c.b16 %v1800, %v1799
        %1817 = vmatprep.subr.bf16.mxu0 0
        %1818 = vmatpush1.bf16.msra.mxu0 %v1801
        %1819 = vmatprep.subr.bf16.mxu0 0
        %1820 = vmatpush1.bf16.msra.mxu0 %v1802
        %1821 = vmatprep.subr.bf16.mxu0 0
        %1822 = vmatpush1.bf16.msra.mxu0 %v1803
        %1823 = vmatprep.subr.bf16.mxu0 0
        %1824 = vmatpush1.bf16.msra.mxu0 %v1804
        %1825 = vmatprep.subr.bf16.mxu0 0
        %1826 = vmatpush1.bf16.msra.mxu0 %v1805
        %1827 = vmatprep.subr.bf16.mxu0 0
        %1828 = vmatpush1.bf16.msra.mxu0 %v1806
        %1829 = vmatprep.subr.bf16.mxu0 0
        %1830 = vmatpush1.bf16.msra.mxu0 %v1807
        %1831 = vmatprep.subr.bf16.mxu0 0
        %1832 = vmatpush1.bf16.msra.mxu0 %v1808
        %1833 = vmatprep.subr.bf16.mxu0 0
        %1834 = vmatpush1.bf16.msra.mxu0 0
        %1835 = vmatprep.subr.bf16.mxu0 0
        %1836 = vmatpush1.bf16.msra.mxu0 0
        %1837 = vmatprep.subr.bf16.mxu0 0
        %1838 = vmatpush1.bf16.msra.mxu0 0
        %1839 = vmatprep.subr.bf16.mxu0 0
        %1840 = vmatpush1.bf16.msra.mxu0 0
        %1841 = vmatprep.subr.bf16.mxu0 0
        %1842 = vmatpush1.bf16.msra.mxu0 0
        %1843 = vmatprep.subr.bf16.mxu0 0
        %1844 = vmatpush1.bf16.msra.mxu0 0
        %1845 = vmatprep.subr.bf16.mxu0 0
        %1846 = vmatpush1.bf16.msra.mxu0 0
        %1847 = vmatprep.subr.bf16.mxu0 0
        %1848 = vmatpush1.bf16.msra.mxu0 0
        %1849 = vmatprep.mubr.bf16.mxu0 0
        %1850 = vmatmul.mubr.bf16.gmra.mrb[0].mxu0 %v1737
        %v1851 = vpop.f32.mrb[0].mxu0
        %v1852 = vadd.f32 0.0, %v1851
        %v1853 = vpop.f32.mrb[0].mxu0
        %v1854 = vpop.f32.mrb[0].mxu0
        %v1855 = vadd.f32 0.0, %v1854
        %v1856 = vpop.f32.mrb[0].mxu0
        %1857 = vmatprep.mubr.bf16.mxu0 0
        %1858 = vmatmul.mubr.bf16.gmra.mrb[0].mxu0 %v1738
        %v1859 = vpop.f32.mrb[0].mxu0
        %v1860 = vadd.f32 0.0, %v1859
        %v1861 = vpop.f32.mrb[0].mxu0
        %v1862 = vpop.f32.mrb[0].mxu0
        %v1863 = vadd.f32 0.0, %v1862
        %v1864 = vpop.f32.mrb[0].mxu0
        %1865 = vmatprep.mubr.bf16.mxu0 0
        %1866 = vmatmul.mubr.bf16.gmra.mrb[0].mxu0 %v1739
        %v1867 = vpop.f32.mrb[0].mxu0
        %v1868 = vadd.f32 0.0, %v1867
        %v1869 = vpop.f32.mrb[0].mxu0
        %v1870 = vpop.f32.mrb[0].mxu0
        %v1871 = vadd.f32 0.0, %v1870
        %v1872 = vpop.f32.mrb[0].mxu0
        %1873 = vmatprep.mubr.bf16.mxu0 0
        %1874 = vmatmul.mubr.bf16.gmra.mrb[0].mxu0 %v1740
        %v1875 = vpop.f32.mrb[0].mxu0
        %v1876 = vadd.f32 0.0, %v1875
        %v1877 = vpop.f32.mrb[0].mxu0
        %v1878 = vpop.f32.mrb[0].mxu0
        %v1879 = vadd.f32 0.0, %v1878
        %v1880 = vpop.f32.mrb[0].mxu0
        %1881 = vmatprep.mubr.bf16.mxu0 0
        %1882 = vmatmul.mubr.bf16.gmra.mrb[0].mxu0 %v1741
        %v1883 = vpop.f32.mrb[0].mxu0
        %v1884 = vadd.f32 0.0, %v1883
        %v1885 = vpop.f32.mrb[0].mxu0
        %v1886 = vpop.f32.mrb[0].mxu0
        %v1887 = vadd.f32 0.0, %v1886
        %v1888 = vpop.f32.mrb[0].mxu0
        %1889 = vmatprep.mubr.bf16.mxu0 0
        %1890 = vmatmul.mubr.bf16.gmra.mrb[0].mxu0 %v1742
        %v1891 = vpop.f32.mrb[0].mxu0
        %v1892 = vadd.f32 0.0, %v1891
        %v1893 = vpop.f32.mrb[0].mxu0
        %v1894 = vpop.f32.mrb[0].mxu0
        %v1895 = vadd.f32 0.0, %v1894
        %v1896 = vpop.f32.mrb[0].mxu0
        %1897 = vmatprep.mubr.bf16.mxu0 0
        %1898 = vmatmul.mubr.bf16.gmra.mrb[0].mxu0 %v1743
        %v1899 = vpop.f32.mrb[0].mxu0
        %v1900 = vadd.f32 0.0, %v1899
        %v1901 = vpop.f32.mrb[0].mxu0
        %v1902 = vpop.f32.mrb[0].mxu0
        %v1903 = vadd.f32 0.0, %v1902
        %v1904 = vpop.f32.mrb[0].mxu0
        %1905 = vmatprep.mubr.bf16.mxu0 0
        %1906 = vmatmul.mubr.bf16.gmra.mrb[0].mxu0 %v1744
        %v1907 = vpop.f32.mrb[0].mxu0
        %v1908 = vadd.f32 0.0, %v1907
        %v1909 = vpop.f32.mrb[0].mxu0
        %v1910 = vpop.f32.mrb[0].mxu0
        %v1911 = vadd.f32 0.0, %v1910
        %v1912 = vpop.f32.mrb[0].mxu0
        %1913 = vmatprep.mubr.bf16.mxu0 0
        %1914 = vmatmul.mubr.bf16.gmra.mrb[0].mxu0 %v1745
        %v1915 = vpop.f32.mrb[0].mxu0
        %v1916 = vadd.f32 0.0, %v1915
        %v1917 = vpop.f32.mrb[0].mxu0
        %v1918 = vpop.f32.mrb[0].mxu0
        %v1919 = vadd.f32 0.0, %v1918
        %v1920 = vpop.f32.mrb[0].mxu0
        %1921 = vmatprep.mubr.bf16.mxu0 0
        %1922 = vmatmul.mubr.bf16.gmra.mrb[0].mxu0 %v1746
        %v1923 = vpop.f32.mrb[0].mxu0
        %v1924 = vadd.f32 0.0, %v1923
        %v1925 = vpop.f32.mrb[0].mxu0
        %v1926 = vpop.f32.mrb[0].mxu0
        %v1927 = vadd.f32 0.0, %v1926
        %v1928 = vpop.f32.mrb[0].mxu0
        %1929 = vmatprep.mubr.bf16.mxu0 0
        %1930 = vmatmul.mubr.bf16.gmra.mrb[0].mxu0 %v1747
        %v1931 = vpop.f32.mrb[0].mxu0
        %v1932 = vadd.f32 0.0, %v1931
        %v1933 = vpop.f32.mrb[0].mxu0
        %v1934 = vpop.f32.mrb[0].mxu0
        %v1935 = vadd.f32 0.0, %v1934
        %v1936 = vpop.f32.mrb[0].mxu0
        %1937 = vmatprep.mubr.bf16.mxu0 0
        %1938 = vmatmul.mubr.bf16.gmra.mrb[0].mxu0 %v1748
        %v1939 = vpop.f32.mrb[0].mxu0
        %v1940 = vadd.f32 0.0, %v1939
        %v1941 = vpop.f32.mrb[0].mxu0
        %v1942 = vpop.f32.mrb[0].mxu0
        %v1943 = vadd.f32 0.0, %v1942
        %v1944 = vpop.f32.mrb[0].mxu0
        %1945 = vmatprep.mubr.bf16.mxu0 0
        %1946 = vmatmul.mubr.bf16.gmra.mrb[0].mxu0 %v1749
        %v1947 = vpop.f32.mrb[0].mxu0
        %v1948 = vadd.f32 0.0, %v1947
        %v1949 = vpop.f32.mrb[0].mxu0
        %v1950 = vpop.f32.mrb[0].mxu0
        %v1951 = vadd.f32 0.0, %v1950
        %v1952 = vpop.f32.mrb[0].mxu0
        %1953 = vmatprep.mubr.bf16.mxu0 0
        %1954 = vmatmul.mubr.bf16.gmra.mrb[0].mxu0 %v1750
        %v1955 = vpop.f32.mrb[0].mxu0
        %v1956 = vadd.f32 0.0, %v1955
        %v1957 = vpop.f32.mrb[0].mxu0
        %v1958 = vpop.f32.mrb[0].mxu0
        %v1959 = vadd.f32 0.0, %v1958
        %v1960 = vpop.f32.mrb[0].mxu0
        %1961 = vmatprep.mubr.bf16.mxu0 0
        %1962 = vmatmul.mubr.bf16.gmra.mrb[0].mxu0 %v1751
        %v1963 = vpop.f32.mrb[0].mxu0
        %v1964 = vadd.f32 0.0, %v1963
        %v1965 = vpop.f32.mrb[0].mxu0
        %v1966 = vpop.f32.mrb[0].mxu0
        %v1967 = vadd.f32 0.0, %v1966
        %v1968 = vpop.f32.mrb[0].mxu0
        %1969 = vmatprep.mubr.bf16.mxu0 0
        %1970 = vmatmul.mubr.bf16.gmra.mrb[0].mxu0 %v1752
        %v1971 = vpop.f32.mrb[0].mxu0
        %v1972 = vadd.f32 0.0, %v1971
        %v1973 = vpop.f32.mrb[0].mxu0
        %v1974 = vpop.f32.mrb[0].mxu0
        %v1975 = vadd.f32 0.0, %v1974
        %v1976 = vpop.f32.mrb[0].mxu0
        %1977 = vdwg.mxu0
        %v1978 = vadd.f32 %v1445, %v1852
        %v1979 = vadd.f32 %v1446, %v1855
        %v1980 = vadd.f32 %v1447, %v1860
        %v1981 = vadd.f32 %v1448, %v1863
        %v1982 = vadd.f32 %v1449, %v1868
        %v1983 = vadd.f32 %v1450, %v1871
        %v1984 = vadd.f32 %v1451, %v1876
        %v1985 = vadd.f32 %v1452, %v1879
        %v1986 = vadd.f32 %v1453, %v1884
        %v1987 = vadd.f32 %v1454, %v1887
        %v1988 = vadd.f32 %v1455, %v1892
        %v1989 = vadd.f32 %v1456, %v1895
        %v1990 = vadd.f32 %v1457, %v1900
        %v1991 = vadd.f32 %v1458, %v1903
        %v1992 = vadd.f32 %v1459, %v1908
        %v1993 = vadd.f32 %v1460, %v1911
        %v1994 = vadd.f32 %v1461, %v1916
        %v1995 = vadd.f32 %v1462, %v1919
        %v1996 = vadd.f32 %v1463, %v1924
        %v1997 = vadd.f32 %v1464, %v1927
        %v1998 = vadd.f32 %v1465, %v1932
        %v1999 = vadd.f32 %v1466, %v1935
        %v2000 = vadd.f32 %v1467, %v1940
        %v2001 = vadd.f32 %v1468, %v1943
        %v2002 = vadd.f32 %v1469, %v1948
        %v2003 = vadd.f32 %v1470, %v1951
        %v2004 = vadd.f32 %v1471, %v1956
        %v2005 = vadd.f32 %v1472, %v1959
        %v2006 = vadd.f32 %v1473, %v1964
        %v2007 = vadd.f32 %v1474, %v1967
        %v2008 = vadd.f32 %v1475, %v1972
        %v2009 = vadd.f32 %v1476, %v1975
        %2010 = vst [vmem:[#allocation2] sm:$0xff] %v1978
        %2011 = vst [vmem:[#allocation2 + $0x8] sm:$0xff] %v1979
        %2012 = vst [vmem:[#allocation2 + $0x10] sm:$0xff] %v1980
        %2013 = vst [vmem:[#allocation2 + $0x18] sm:$0xff] %v1981
        %2014 = vst [vmem:[#allocation2 + $0x20] sm:$0xff] %v1982
        %2015 = vst [vmem:[#allocation2 + $0x28] sm:$0xff] %v1983
        %2016 = vst [vmem:[#allocation2 + $0x30] sm:$0xff] %v1984
        %2017 = vst [vmem:[#allocation2 + $0x38] sm:$0xff] %v1985
        %2018 = vst [vmem:[#allocation2 + $0x40] sm:$0xff] %v1986
        %2019 = vst [vmem:[#allocation2 + $0x48] sm:$0xff] %v1987
        %2020 = vst [vmem:[#allocation2 + $0x50] sm:$0xff] %v1988
        %2021 = vst [vmem:[#allocation2 + $0x58] sm:$0xff] %v1989
        %2022 = vst [vmem:[#allocation2 + $0x60] sm:$0xff] %v1990
        %2023 = vst [vmem:[#allocation2 + $0x68] sm:$0xff] %v1991
        %2024 = vst [vmem:[#allocation2 + $0x70] sm:$0xff] %v1992
        %2025 = vst [vmem:[#allocation2 + $0x78] sm:$0xff] %v1993
        %2026 = vst [vmem:[#allocation2 + $0x80] sm:$0xff] %v1994
        %2027 = vst [vmem:[#allocation2 + $0x88] sm:$0xff] %v1995
        %2028 = vst [vmem:[#allocation2 + $0x90] sm:$0xff] %v1996
        %2029 = vst [vmem:[#allocation2 + $0x98] sm:$0xff] %v1997
        %2030 = vst [vmem:[#allocation2 + $0xa0] sm:$0xff] %v1998
        %2031 = vst [vmem:[#allocation2 + $0xa8] sm:$0xff] %v1999
        %2032 = vst [vmem:[#allocation2 + $0xb0] sm:$0xff] %v2000
        %2033 = vst [vmem:[#allocation2 + $0xb8] sm:$0xff] %v2001
        %2034 = vst [vmem:[#allocation2 + $0xc0] sm:$0xff] %v2002
        %2035 = vst [vmem:[#allocation2 + $0xc8] sm:$0xff] %v2003
        %2036 = vst [vmem:[#allocation2 + $0xd0] sm:$0xff] %v2004
        %2037 = vst [vmem:[#allocation2 + $0xd8] sm:$0xff] %v2005
        %2038 = vst [vmem:[#allocation2 + $0xe0] sm:$0xff] %v2006
        %2039 = vst [vmem:[#allocation2 + $0xe8] sm:$0xff] %v2007
        %2040 = vst [vmem:[#allocation2 + $0xf0] sm:$0xff] %v2008
        %2041 = vst [vmem:[#allocation2 + $0xf8] sm:$0xff] %v2009
        %v2042 = vld [vmem:[#allocation2] sm:$0xff]
        %v2043 = vld [vmem:[#allocation2 + $0x8] sm:$0xff]
        %v2044 = vld [vmem:[#allocation2 + $0x10] sm:$0xff]
        %v2045 = vld [vmem:[#allocation2 + $0x18] sm:$0xff]
        %v2046 = vld [vmem:[#allocation2 + $0x20] sm:$0xff]
        %v2047 = vld [vmem:[#allocation2 + $0x28] sm:$0xff]
        %v2048 = vld [vmem:[#allocation2 + $0x30] sm:$0xff]
        %v2049 = vld [vmem:[#allocation2 + $0x38] sm:$0xff]
        %v2050 = vld [vmem:[#allocation2 + $0x40] sm:$0xff]
        %v2051 = vld [vmem:[#allocation2 + $0x48] sm:$0xff]
        %v2052 = vld [vmem:[#allocation2 + $0x50] sm:$0xff]
        %v2053 = vld [vmem:[#allocation2 + $0x58] sm:$0xff]
        %v2054 = vld [vmem:[#allocation2 + $0x60] sm:$0xff]
        %v2055 = vld [vmem:[#allocation2 + $0x68] sm:$0xff]
        %v2056 = vld [vmem:[#allocation2 + $0x70] sm:$0xff]
        %v2057 = vld [vmem:[#allocation2 + $0x78] sm:$0xff]
        %v2058 = vld [vmem:[#allocation2 + $0x80] sm:$0xff]
        %v2059 = vld [vmem:[#allocation2 + $0x88] sm:$0xff]
        %v2060 = vld [vmem:[#allocation2 + $0x90] sm:$0xff]
        %v2061 = vld [vmem:[#allocation2 + $0x98] sm:$0xff]
        %v2062 = vld [vmem:[#allocation2 + $0xa0] sm:$0xff]
        %v2063 = vld [vmem:[#allocation2 + $0xa8] sm:$0xff]
        %v2064 = vld [vmem:[#allocation2 + $0xb0] sm:$0xff]
        %v2065 = vld [vmem:[#allocation2 + $0xb8] sm:$0xff]
        %v2066 = vld [vmem:[#allocation2 + $0xc0] sm:$0xff]
        %v2067 = vld [vmem:[#allocation2 + $0xc8] sm:$0xff]
        %v2068 = vld [vmem:[#allocation2 + $0xd0] sm:$0xff]
        %v2069 = vld [vmem:[#allocation2 + $0xd8] sm:$0xff]
        %v2070 = vld [vmem:[#allocation2 + $0xe0] sm:$0xff]
        %v2071 = vld [vmem:[#allocation2 + $0xe8] sm:$0xff]
        %v2072 = vld [vmem:[#allocation2 + $0xf0] sm:$0xff]
        %v2073 = vld [vmem:[#allocation2 + $0xf8] sm:$0xff]
        %s2074 = scalar_lea.vmem %s229, 12
        %v2075 = vld [vmem:[%s2074] sm:$0xf]
        %v2076 = vld [vmem:[%s2074 + $0x4] sm:$0xf]
        %v2077 = vld [vmem:[%s2074 + $0xc] sm:$0xf]
        %v2078 = vld [vmem:[%s2074 + $0x10] sm:$0xf]
        %v2079 = vld [vmem:[%s2074 + $0x18] sm:$0xf]
        %v2080 = vld [vmem:[%s2074 + $0x1c] sm:$0xf]
        %v2081 = vld [vmem:[%s2074 + $0x24] sm:$0xf]
        %v2082 = vld [vmem:[%s2074 + $0x28] sm:$0xf]
        %v2083 = vld [vmem:[%s2074 + $0x30] sm:$0xf]
        %v2084 = vld [vmem:[%s2074 + $0x34] sm:$0xf]
        %v2085 = vld [vmem:[%s2074 + $0x3c] sm:$0xf]
        %v2086 = vld [vmem:[%s2074 + $0x40] sm:$0xf]
        %v2087 = vld [vmem:[%s2074 + $0x48] sm:$0xf]
        %v2088 = vld [vmem:[%s2074 + $0x4c] sm:$0xf]
        %v2089 = vld [vmem:[%s2074 + $0x54] sm:$0xf]
        %v2090 = vld [vmem:[%s2074 + $0x58] sm:$0xf]
        %v2091 = vld [vmem:[%s2074 + $0x60] sm:$0xf]
        %v2092 = vld [vmem:[%s2074 + $0x64] sm:$0xf]
        %v2093 = vld [vmem:[%s2074 + $0x6c] sm:$0xf]
        %v2094 = vld [vmem:[%s2074 + $0x70] sm:$0xf]
        %v2095 = vld [vmem:[%s2074 + $0x78] sm:$0xf]
        %v2096 = vld [vmem:[%s2074 + $0x7c] sm:$0xf]
        %v2097 = vld [vmem:[%s2074 + $0x84] sm:$0xf]
        %v2098 = vld [vmem:[%s2074 + $0x88] sm:$0xf]
        %v2099 = vld [vmem:[%s2074 + $0x90] sm:$0xf]
        %v2100 = vld [vmem:[%s2074 + $0x94] sm:$0xf]
        %v2101 = vld [vmem:[%s2074 + $0x9c] sm:$0xf]
        %v2102 = vld [vmem:[%s2074 + $0xa0] sm:$0xf]
        %v2103 = vld [vmem:[%s2074 + $0xa8] sm:$0xf]
        %v2104 = vld [vmem:[%s2074 + $0xac] sm:$0xf]
        %v2105 = vld [vmem:[%s2074 + $0xb4] sm:$0xf]
        %v2106 = vld [vmem:[%s2074 + $0xb8] sm:$0xf]
        %s2107 = scalar_lea.vmem %s233, 192
        %v2108 = vld [vmem:[%s2107] sm:$0xf]
        %v2109 = vld [vmem:[%s2107 + $0x4] sm:$0xf]
        %v2110 = vld [vmem:[%s2107 + $0x8] sm:$0xf]
        %v2111 = vld [vmem:[%s2107 + $0xc] sm:$0xf]
        %v2112 = vld [vmem:[%s2107 + $0x10] sm:$0xf]
        %v2113 = vld [vmem:[%s2107 + $0x14] sm:$0xf]
        %v2114 = vld [vmem:[%s2107 + $0x18] sm:$0xf]
        %v2115 = vld [vmem:[%s2107 + $0x1c] sm:$0xf]
        %v2116 = vld [vmem:[%s2107 + $0x20] sm:$0xf]
        %v2117 = vld [vmem:[%s2107 + $0x24] sm:$0xf]
        %v2118 = vld [vmem:[%s2107 + $0x28] sm:$0xf]
        %v2119 = vld [vmem:[%s2107 + $0x2c] sm:$0xf]
        %v2120 = vld [vmem:[%s2107 + $0x30] sm:$0xf]
        %v2121 = vld [vmem:[%s2107 + $0x34] sm:$0xf]
        %v2122 = vld [vmem:[%s2107 + $0x38] sm:$0xf]
        %v2123 = vld [vmem:[%s2107 + $0x3c] sm:$0xf]
        %v2156 = vunpack.c.l.b16 %v2075
        %v2157 = vunpack.c.l.b16 %v2076
        %v2158 = vunpack.c.l.b16 %v2077
        %v2159 = vunpack.c.l.b16 %v2078
        %v2160 = vunpack.c.l.b16 %v2079
        %v2161 = vunpack.c.l.b16 %v2080
        %v2162 = vunpack.c.l.b16 %v2081
        %v2163 = vunpack.c.l.b16 %v2082
        %v2164 = vunpack.c.l.b16 %v2083
        %v2165 = vunpack.c.l.b16 %v2084
        %v2166 = vunpack.c.l.b16 %v2085
        %v2167 = vunpack.c.l.b16 %v2086
        %v2168 = vunpack.c.l.b16 %v2087
        %v2169 = vunpack.c.l.b16 %v2088
        %v2170 = vunpack.c.l.b16 %v2089
        %v2171 = vunpack.c.l.b16 %v2090
        %v2172 = vunpack.c.l.b16 %v2091
        %v2173 = vunpack.c.l.b16 %v2092
        %v2174 = vunpack.c.l.b16 %v2093
        %v2175 = vunpack.c.l.b16 %v2094
        %v2176 = vunpack.c.l.b16 %v2095
        %v2177 = vunpack.c.l.b16 %v2096
        %v2178 = vunpack.c.l.b16 %v2097
        %v2179 = vunpack.c.l.b16 %v2098
        %v2180 = vunpack.c.l.b16 %v2099
        %v2181 = vunpack.c.l.b16 %v2100
        %v2182 = vunpack.c.l.b16 %v2101
        %v2183 = vunpack.c.l.b16 %v2102
        %v2184 = vunpack.c.l.b16 %v2103
        %v2185 = vunpack.c.l.b16 %v2104
        %v2186 = vunpack.c.l.b16 %v2105
        %v2187 = vunpack.c.l.b16 %v2106
        %v2188 = vpack.c.b16 %v2157, %v2156
        %v2189 = vpack.c.b16 %v2159, %v2158
        %v2190 = vpack.c.b16 %v2161, %v2160
        %v2191 = vpack.c.b16 %v2163, %v2162
        %v2192 = vpack.c.b16 %v2165, %v2164
        %v2193 = vpack.c.b16 %v2167, %v2166
        %v2194 = vpack.c.b16 %v2169, %v2168
        %v2195 = vpack.c.b16 %v2171, %v2170
        %v2196 = vpack.c.b16 %v2173, %v2172
        %v2197 = vpack.c.b16 %v2175, %v2174
        %v2198 = vpack.c.b16 %v2177, %v2176
        %v2199 = vpack.c.b16 %v2179, %v2178
        %v2200 = vpack.c.b16 %v2181, %v2180
        %v2201 = vpack.c.b16 %v2183, %v2182
        %v2202 = vpack.c.b16 %v2185, %v2184
        %v2203 = vpack.c.b16 %v2187, %v2186
        %v2236 = vunpack.c.l.b16 %v2108
        %v2237 = vunpack.c.l.b16 %v2109
        %v2238 = vunpack.c.l.b16 %v2110
        %v2239 = vunpack.c.l.b16 %v2111
        %v2240 = vunpack.c.l.b16 %v2112
        %v2241 = vunpack.c.l.b16 %v2113
        %v2242 = vunpack.c.l.b16 %v2114
        %v2243 = vunpack.c.l.b16 %v2115
        %v2244 = vunpack.c.l.b16 %v2116
        %v2245 = vunpack.c.l.b16 %v2117
        %v2246 = vunpack.c.l.b16 %v2118
        %v2247 = vunpack.c.l.b16 %v2119
        %v2248 = vunpack.c.l.b16 %v2120
        %v2249 = vunpack.c.l.b16 %v2121
        %v2250 = vunpack.c.l.b16 %v2122
        %v2251 = vunpack.c.l.b16 %v2123
        %v2252 = vpack.c.b16 %v2237, %v2236
        %v2253 = vpack.c.b16 %v2239, %v2238
        %v2254 = vpack.c.b16 %v2241, %v2240
        %v2255 = vpack.c.b16 %v2243, %v2242
        %v2256 = vpack.c.b16 %v2245, %v2244
        %v2257 = vpack.c.b16 %v2247, %v2246
        %v2258 = vpack.c.b16 %v2249, %v2248
        %v2259 = vpack.c.b16 %v2251, %v2250
        %2268 = vmatprep.subr.bf16.mxu0 0
        %2269 = vmatpush1.bf16.msra.mxu0 %v2252
        %2270 = vmatprep.subr.bf16.mxu0 0
        %2271 = vmatpush1.bf16.msra.mxu0 %v2253
        %2272 = vmatprep.subr.bf16.mxu0 0
        %2273 = vmatpush1.bf16.msra.mxu0 %v2254
        %2274 = vmatprep.subr.bf16.mxu0 0
        %2275 = vmatpush1.bf16.msra.mxu0 %v2255
        %2276 = vmatprep.subr.bf16.mxu0 0
        %2277 = vmatpush1.bf16.msra.mxu0 %v2256
        %2278 = vmatprep.subr.bf16.mxu0 0
        %2279 = vmatpush1.bf16.msra.mxu0 %v2257
        %2280 = vmatprep.subr.bf16.mxu0 0
        %2281 = vmatpush1.bf16.msra.mxu0 %v2258
        %2282 = vmatprep.subr.bf16.mxu0 0
        %2283 = vmatpush1.bf16.msra.mxu0 %v2259
        %2284 = vmatprep.subr.bf16.mxu0 0
        %2285 = vmatpush1.bf16.msra.mxu0 0
        %2286 = vmatprep.subr.bf16.mxu0 0
        %2287 = vmatpush1.bf16.msra.mxu0 0
        %2288 = vmatprep.subr.bf16.mxu0 0
        %2289 = vmatpush1.bf16.msra.mxu0 0
        %2290 = vmatprep.subr.bf16.mxu0 0
        %2291 = vmatpush1.bf16.msra.mxu0 0
        %2292 = vmatprep.subr.bf16.mxu0 0
        %2293 = vmatpush1.bf16.msra.mxu0 0
        %2294 = vmatprep.subr.bf16.mxu0 0
        %2295 = vmatpush1.bf16.msra.mxu0 0
        %2296 = vmatprep.subr.bf16.mxu0 0
        %2297 = vmatpush1.bf16.msra.mxu0 0
        %2298 = vmatprep.subr.bf16.mxu0 0
        %2299 = vmatpush1.bf16.msra.mxu0 0
        %2300 = vmatprep.mubr.bf16.mxu0 0
        %2301 = vmatmul.mubr.bf16.gmra.mrb[0].mxu0 %v2188
        %v2302 = vpop.f32.mrb[0].mxu0
        %v2303 = vadd.f32 0.0, %v2302
        %v2304 = vpop.f32.mrb[0].mxu0
        %v2305 = vpop.f32.mrb[0].mxu0
        %v2306 = vadd.f32 0.0, %v2305
        %v2307 = vpop.f32.mrb[0].mxu0
        %2308 = vmatprep.mubr.bf16.mxu0 0
        %2309 = vmatmul.mubr.bf16.gmra.mrb[0].mxu0 %v2189
        %v2310 = vpop.f32.mrb[0].mxu0
        %v2311 = vadd.f32 0.0, %v2310
        %v2312 = vpop.f32.mrb[0].mxu0
        %v2313 = vpop.f32.mrb[0].mxu0
        %v2314 = vadd.f32 0.0, %v2313
        %v2315 = vpop.f32.mrb[0].mxu0
        %2316 = vmatprep.mubr.bf16.mxu0 0
        %2317 = vmatmul.mubr.bf16.gmra.mrb[0].mxu0 %v2190
        %v2318 = vpop.f32.mrb[0].mxu0
        %v2319 = vadd.f32 0.0, %v2318
        %v2320 = vpop.f32.mrb[0].mxu0
        %v2321 = vpop.f32.mrb[0].mxu0
        %v2322 = vadd.f32 0.0, %v2321
        %v2323 = vpop.f32.mrb[0].mxu0
        %2324 = vmatprep.mubr.bf16.mxu0 0
        %2325 = vmatmul.mubr.bf16.gmra.mrb[0].mxu0 %v2191
        %v2326 = vpop.f32.mrb[0].mxu0
        %v2327 = vadd.f32 0.0, %v2326
        %v2328 = vpop.f32.mrb[0].mxu0
        %v2329 = vpop.f32.mrb[0].mxu0
        %v2330 = vadd.f32 0.0, %v2329
        %v2331 = vpop.f32.mrb[0].mxu0
        %2332 = vmatprep.mubr.bf16.mxu0 0
        %2333 = vmatmul.mubr.bf16.gmra.mrb[0].mxu0 %v2192
        %v2334 = vpop.f32.mrb[0].mxu0
        %v2335 = vadd.f32 0.0, %v2334
        %v2336 = vpop.f32.mrb[0].mxu0
        %v2337 = vpop.f32.mrb[0].mxu0
        %v2338 = vadd.f32 0.0, %v2337
        %v2339 = vpop.f32.mrb[0].mxu0
        %2340 = vmatprep.mubr.bf16.mxu0 0
        %2341 = vmatmul.mubr.bf16.gmra.mrb[0].mxu0 %v2193
        %v2342 = vpop.f32.mrb[0].mxu0
        %v2343 = vadd.f32 0.0, %v2342
        %v2344 = vpop.f32.mrb[0].mxu0
        %v2345 = vpop.f32.mrb[0].mxu0
        %v2346 = vadd.f32 0.0, %v2345
        %v2347 = vpop.f32.mrb[0].mxu0
        %2348 = vmatprep.mubr.bf16.mxu0 0
        %2349 = vmatmul.mubr.bf16.gmra.mrb[0].mxu0 %v2194
        %v2350 = vpop.f32.mrb[0].mxu0
        %v2351 = vadd.f32 0.0, %v2350
        %v2352 = vpop.f32.mrb[0].mxu0
        %v2353 = vpop.f32.mrb[0].mxu0
        %v2354 = vadd.f32 0.0, %v2353
        %v2355 = vpop.f32.mrb[0].mxu0
        %2356 = vmatprep.mubr.bf16.mxu0 0
        %2357 = vmatmul.mubr.bf16.gmra.mrb[0].mxu0 %v2195
        %v2358 = vpop.f32.mrb[0].mxu0
        %v2359 = vadd.f32 0.0, %v2358
        %v2360 = vpop.f32.mrb[0].mxu0
        %v2361 = vpop.f32.mrb[0].mxu0
        %v2362 = vadd.f32 0.0, %v2361
        %v2363 = vpop.f32.mrb[0].mxu0
        %2364 = vmatprep.mubr.bf16.mxu0 0
        %2365 = vmatmul.mubr.bf16.gmra.mrb[0].mxu0 %v2196
        %v2366 = vpop.f32.mrb[0].mxu0
        %v2367 = vadd.f32 0.0, %v2366
        %v2368 = vpop.f32.mrb[0].mxu0
        %v2369 = vpop.f32.mrb[0].mxu0
        %v2370 = vadd.f32 0.0, %v2369
        %v2371 = vpop.f32.mrb[0].mxu0
        %2372 = vmatprep.mubr.bf16.mxu0 0
        %2373 = vmatmul.mubr.bf16.gmra.mrb[0].mxu0 %v2197
        %v2374 = vpop.f32.mrb[0].mxu0
        %v2375 = vadd.f32 0.0, %v2374
        %v2376 = vpop.f32.mrb[0].mxu0
        %v2377 = vpop.f32.mrb[0].mxu0
        %v2378 = vadd.f32 0.0, %v2377
        %v2379 = vpop.f32.mrb[0].mxu0
        %2380 = vmatprep.mubr.bf16.mxu0 0
        %2381 = vmatmul.mubr.bf16.gmra.mrb[0].mxu0 %v2198
        %v2382 = vpop.f32.mrb[0].mxu0
        %v2383 = vadd.f32 0.0, %v2382
        %v2384 = vpop.f32.mrb[0].mxu0
        %v2385 = vpop.f32.mrb[0].mxu0
        %v2386 = vadd.f32 0.0, %v2385
        %v2387 = vpop.f32.mrb[0].mxu0
        %2388 = vmatprep.mubr.bf16.mxu0 0
        %2389 = vmatmul.mubr.bf16.gmra.mrb[0].mxu0 %v2199
        %v2390 = vpop.f32.mrb[0].mxu0
        %v2391 = vadd.f32 0.0, %v2390
        %v2392 = vpop.f32.mrb[0].mxu0
        %v2393 = vpop.f32.mrb[0].mxu0
        %v2394 = vadd.f32 0.0, %v2393
        %v2395 = vpop.f32.mrb[0].mxu0
        %2396 = vmatprep.mubr.bf16.mxu0 0
        %2397 = vmatmul.mubr.bf16.gmra.mrb[0].mxu0 %v2200
        %v2398 = vpop.f32.mrb[0].mxu0
        %v2399 = vadd.f32 0.0, %v2398
        %v2400 = vpop.f32.mrb[0].mxu0
        %v2401 = vpop.f32.mrb[0].mxu0
        %v2402 = vadd.f32 0.0, %v2401
        %v2403 = vpop.f32.mrb[0].mxu0
        %2404 = vmatprep.mubr.bf16.mxu0 0
        %2405 = vmatmul.mubr.bf16.gmra.mrb[0].mxu0 %v2201
        %v2406 = vpop.f32.mrb[0].mxu0
        %v2407 = vadd.f32 0.0, %v2406
        %v2408 = vpop.f32.mrb[0].mxu0
        %v2409 = vpop.f32.mrb[0].mxu0
        %v2410 = vadd.f32 0.0, %v2409
        %v2411 = vpop.f32.mrb[0].mxu0
        %2412 = vmatprep.mubr.bf16.mxu0 0
        %2413 = vmatmul.mubr.bf16.gmra.mrb[0].mxu0 %v2202
        %v2414 = vpop.f32.mrb[0].mxu0
        %v2415 = vadd.f32 0.0, %v2414
        %v2416 = vpop.f32.mrb[0].mxu0
        %v2417 = vpop.f32.mrb[0].mxu0
        %v2418 = vadd.f32 0.0, %v2417
        %v2419 = vpop.f32.mrb[0].mxu0
        %2420 = vmatprep.mubr.bf16.mxu0 0
        %2421 = vmatmul.mubr.bf16.gmra.mrb[0].mxu0 %v2203
        %v2422 = vpop.f32.mrb[0].mxu0
        %v2423 = vadd.f32 0.0, %v2422
        %v2424 = vpop.f32.mrb[0].mxu0
        %v2425 = vpop.f32.mrb[0].mxu0
        %v2426 = vadd.f32 0.0, %v2425
        %v2427 = vpop.f32.mrb[0].mxu0
        %2428 = vdwg.mxu0
        %v2429 = vadd.f32 %v2042, %v2303
        %v2430 = vadd.f32 %v2043, %v2306
        %v2431 = vadd.f32 %v2044, %v2311
        %v2432 = vadd.f32 %v2045, %v2314
        %v2433 = vadd.f32 %v2046, %v2319
        %v2434 = vadd.f32 %v2047, %v2322
        %v2435 = vadd.f32 %v2048, %v2327
        %v2436 = vadd.f32 %v2049, %v2330
        %v2437 = vadd.f32 %v2050, %v2335
        %v2438 = vadd.f32 %v2051, %v2338
        %v2439 = vadd.f32 %v2052, %v2343
        %v2440 = vadd.f32 %v2053, %v2346
        %v2441 = vadd.f32 %v2054, %v2351
        %v2442 = vadd.f32 %v2055, %v2354
        %v2443 = vadd.f32 %v2056, %v2359
        %v2444 = vadd.f32 %v2057, %v2362
        %v2445 = vadd.f32 %v2058, %v2367
        %v2446 = vadd.f32 %v2059, %v2370
        %v2447 = vadd.f32 %v2060, %v2375
        %v2448 = vadd.f32 %v2061, %v2378
        %v2449 = vadd.f32 %v2062, %v2383
        %v2450 = vadd.f32 %v2063, %v2386
        %v2451 = vadd.f32 %v2064, %v2391
        %v2452 = vadd.f32 %v2065, %v2394
        %v2453 = vadd.f32 %v2066, %v2399
        %v2454 = vadd.f32 %v2067, %v2402
        %v2455 = vadd.f32 %v2068, %v2407
        %v2456 = vadd.f32 %v2069, %v2410
        %v2457 = vadd.f32 %v2070, %v2415
        %v2458 = vadd.f32 %v2071, %v2418
        %v2459 = vadd.f32 %v2072, %v2423
        %v2460 = vadd.f32 %v2073, %v2426
        %2461 = vst [vmem:[#allocation2] sm:$0xff] %v2429
        %2462 = vst [vmem:[#allocation2 + $0x8] sm:$0xff] %v2430
        %2463 = vst [vmem:[#allocation2 + $0x10] sm:$0xff] %v2431
        %2464 = vst [vmem:[#allocation2 + $0x18] sm:$0xff] %v2432
        %2465 = vst [vmem:[#allocation2 + $0x20] sm:$0xff] %v2433
        %2466 = vst [vmem:[#allocation2 + $0x28] sm:$0xff] %v2434
        %2467 = vst [vmem:[#allocation2 + $0x30] sm:$0xff] %v2435
        %2468 = vst [vmem:[#allocation2 + $0x38] sm:$0xff] %v2436
        %2469 = vst [vmem:[#allocation2 + $0x40] sm:$0xff] %v2437
        %2470 = vst [vmem:[#allocation2 + $0x48] sm:$0xff] %v2438
        %2471 = vst [vmem:[#allocation2 + $0x50] sm:$0xff] %v2439
        %2472 = vst [vmem:[#allocation2 + $0x58] sm:$0xff] %v2440
        %2473 = vst [vmem:[#allocation2 + $0x60] sm:$0xff] %v2441
        %2474 = vst [vmem:[#allocation2 + $0x68] sm:$0xff] %v2442
        %2475 = vst [vmem:[#allocation2 + $0x70] sm:$0xff] %v2443
        %2476 = vst [vmem:[#allocation2 + $0x78] sm:$0xff] %v2444
        %2477 = vst [vmem:[#allocation2 + $0x80] sm:$0xff] %v2445
        %2478 = vst [vmem:[#allocation2 + $0x88] sm:$0xff] %v2446
        %2479 = vst [vmem:[#allocation2 + $0x90] sm:$0xff] %v2447
        %2480 = vst [vmem:[#allocation2 + $0x98] sm:$0xff] %v2448
        %2481 = vst [vmem:[#allocation2 + $0xa0] sm:$0xff] %v2449
        %2482 = vst [vmem:[#allocation2 + $0xa8] sm:$0xff] %v2450
        %2483 = vst [vmem:[#allocation2 + $0xb0] sm:$0xff] %v2451
        %2484 = vst [vmem:[#allocation2 + $0xb8] sm:$0xff] %v2452
        %2485 = vst [vmem:[#allocation2 + $0xc0] sm:$0xff] %v2453
        %2486 = vst [vmem:[#allocation2 + $0xc8] sm:$0xff] %v2454
        %2487 = vst [vmem:[#allocation2 + $0xd0] sm:$0xff] %v2455
        %2488 = vst [vmem:[#allocation2 + $0xd8] sm:$0xff] %v2456
        %2489 = vst [vmem:[#allocation2 + $0xe0] sm:$0xff] %v2457
        %2490 = vst [vmem:[#allocation2 + $0xe8] sm:$0xff] %v2458
        %2491 = vst [vmem:[#allocation2 + $0xf0] sm:$0xff] %v2459
        %2492 = vst [vmem:[#allocation2 + $0xf8] sm:$0xff] %v2460
        %v2493 = vld [vmem:[#allocation2] sm:$0xff]
        %v2494 = vld [vmem:[#allocation2 + $0x8] sm:$0xff]
        %v2495 = vld [vmem:[#allocation2 + $0x10] sm:$0xff]
        %v2496 = vld [vmem:[#allocation2 + $0x18] sm:$0xff]
        %v2497 = vld [vmem:[#allocation2 + $0x20] sm:$0xff]
        %v2498 = vld [vmem:[#allocation2 + $0x28] sm:$0xff]
        %v2499 = vld [vmem:[#allocation2 + $0x30] sm:$0xff]
        %v2500 = vld [vmem:[#allocation2 + $0x38] sm:$0xff]
        %v2501 = vld [vmem:[#allocation2 + $0x40] sm:$0xff]
        %v2502 = vld [vmem:[#allocation2 + $0x48] sm:$0xff]
        %v2503 = vld [vmem:[#allocation2 + $0x50] sm:$0xff]
        %v2504 = vld [vmem:[#allocation2 + $0x58] sm:$0xff]
        %v2505 = vld [vmem:[#allocation2 + $0x60] sm:$0xff]
        %v2506 = vld [vmem:[#allocation2 + $0x68] sm:$0xff]
        %v2507 = vld [vmem:[#allocation2 + $0x70] sm:$0xff]
        %v2508 = vld [vmem:[#allocation2 + $0x78] sm:$0xff]
        %v2509 = vld [vmem:[#allocation2 + $0x80] sm:$0xff]
        %v2510 = vld [vmem:[#allocation2 + $0x88] sm:$0xff]
        %v2511 = vld [vmem:[#allocation2 + $0x90] sm:$0xff]
        %v2512 = vld [vmem:[#allocation2 + $0x98] sm:$0xff]
        %v2513 = vld [vmem:[#allocation2 + $0xa0] sm:$0xff]
        %v2514 = vld [vmem:[#allocation2 + $0xa8] sm:$0xff]
        %v2515 = vld [vmem:[#allocation2 + $0xb0] sm:$0xff]
        %v2516 = vld [vmem:[#allocation2 + $0xb8] sm:$0xff]
        %v2517 = vld [vmem:[#allocation2 + $0xc0] sm:$0xff]
        %v2518 = vld [vmem:[#allocation2 + $0xc8] sm:$0xff]
        %v2519 = vld [vmem:[#allocation2 + $0xd0] sm:$0xff]
        %v2520 = vld [vmem:[#allocation2 + $0xd8] sm:$0xff]
        %v2521 = vld [vmem:[#allocation2 + $0xe0] sm:$0xff]
        %v2522 = vld [vmem:[#allocation2 + $0xe8] sm:$0xff]
        %v2523 = vld [vmem:[#allocation2 + $0xf0] sm:$0xff]
        %v2524 = vld [vmem:[#allocation2 + $0xf8] sm:$0xff]
        %v2525 = vld [vmem:[%s2074] sm:$0xf]
        %v2526 = vld [vmem:[%s2074 + $0x4] sm:$0xf]
        %v2527 = vld [vmem:[%s2074 + $0x8] sm:$0x1]
        %v2528 = vld [vmem:[%s2074 + $0xc] sm:$0xf]
        %v2529 = vld [vmem:[%s2074 + $0x10] sm:$0xf]
        %v2530 = vld [vmem:[%s2074 + $0x14] sm:$0x1]
        %v2531 = vld [vmem:[%s2074 + $0x18] sm:$0xf]
        %v2532 = vld [vmem:[%s2074 + $0x1c] sm:$0xf]
        %v2533 = vld [vmem:[%s2074 + $0x20] sm:$0x1]
        %v2534 = vld [vmem:[%s2074 + $0x24] sm:$0xf]
        %v2535 = vld [vmem:[%s2074 + $0x28] sm:$0xf]
        %v2536 = vld [vmem:[%s2074 + $0x2c] sm:$0x1]
        %v2537 = vld [vmem:[%s2074 + $0x30] sm:$0xf]
        %v2538 = vld [vmem:[%s2074 + $0x34] sm:$0xf]
        %v2539 = vld [vmem:[%s2074 + $0x38] sm:$0x1]
        %v2540 = vld [vmem:[%s2074 + $0x3c] sm:$0xf]
        %v2541 = vld [vmem:[%s2074 + $0x40] sm:$0xf]
        %v2542 = vld [vmem:[%s2074 + $0x44] sm:$0x1]
        %v2543 = vld [vmem:[%s2074 + $0x48] sm:$0xf]
        %v2544 = vld [vmem:[%s2074 + $0x4c] sm:$0xf]
        %v2545 = vld [vmem:[%s2074 + $0x50] sm:$0x1]
        %v2546 = vld [vmem:[%s2074 + $0x54] sm:$0xf]
        %v2547 = vld [vmem:[%s2074 + $0x58] sm:$0xf]
        %v2548 = vld [vmem:[%s2074 + $0x5c] sm:$0x1]
        %v2549 = vld [vmem:[%s2074 + $0x60] sm:$0xf]
        %v2550 = vld [vmem:[%s2074 + $0x64] sm:$0xf]
        %v2551 = vld [vmem:[%s2074 + $0x68] sm:$0x1]
        %v2552 = vld [vmem:[%s2074 + $0x6c] sm:$0xf]
        %v2553 = vld [vmem:[%s2074 + $0x70] sm:$0xf]
        %v2554 = vld [vmem:[%s2074 + $0x74] sm:$0x1]
        %v2555 = vld [vmem:[%s2074 + $0x78] sm:$0xf]
        %v2556 = vld [vmem:[%s2074 + $0x7c] sm:$0xf]
        %v2557 = vld [vmem:[%s2074 + $0x80] sm:$0x1]
        %v2558 = vld [vmem:[%s2074 + $0x84] sm:$0xf]
        %v2559 = vld [vmem:[%s2074 + $0x88] sm:$0xf]
        %v2560 = vld [vmem:[%s2074 + $0x8c] sm:$0x1]
        %v2561 = vld [vmem:[%s2074 + $0x90] sm:$0xf]
        %v2562 = vld [vmem:[%s2074 + $0x94] sm:$0xf]
        %v2563 = vld [vmem:[%s2074 + $0x98] sm:$0x1]
        %v2564 = vld [vmem:[%s2074 + $0x9c] sm:$0xf]
        %v2565 = vld [vmem:[%s2074 + $0xa0] sm:$0xf]
        %v2566 = vld [vmem:[%s2074 + $0xa4] sm:$0x1]
        %v2567 = vld [vmem:[%s2074 + $0xa8] sm:$0xf]
        %v2568 = vld [vmem:[%s2074 + $0xac] sm:$0xf]
        %v2569 = vld [vmem:[%s2074 + $0xb0] sm:$0x1]
        %v2570 = vld [vmem:[%s2074 + $0xb4] sm:$0xf]
        %v2571 = vld [vmem:[%s2074 + $0xb8] sm:$0xf]
        %v2572 = vld [vmem:[%s2074 + $0xbc] sm:$0x1]
        %v2574 = vshrl.u32 %v2525, 16
        %v2576 = vrot.slane %v2574, 4
        %v2577 = vshll.u32 %v2525, 16
        %v2579 = vrot.slane %v2577, 5
        %v2580 = vor.u32 %v2576, %v2579
        %v2581 = vrot.slane %v2580, 4
        %v2583 = vshll.u32 %v2526, 16
        %v2585 = vrot.slane %v2583, 5
        %v2586 = vsel %vm706, %v2581, %v2585
        %v2587 = vshrl.u32 %v2526, 16
        %v2589 = vrot.slane %v2587, 4
        %v2590 = vor.u32 %v2589, %v2585
        %v2591 = vrot.slane %v2590, 4
        %v2593 = vshll.u32 %v2527, 16
        %v2595 = vrot.slane %v2593, 5
        %v2596 = vsel %vm706, %v2591, %v2595
        %v2598 = vshrl.u32 %v2528, 16
        %v2600 = vrot.slane %v2598, 4
        %v2601 = vshll.u32 %v2528, 16
        %v2603 = vrot.slane %v2601, 5
        %v2604 = vor.u32 %v2600, %v2603
        %v2605 = vrot.slane %v2604, 4
        %v2607 = vshll.u32 %v2529, 16
        %v2609 = vrot.slane %v2607, 5
        %v2610 = vsel %vm706, %v2605, %v2609
        %v2611 = vshrl.u32 %v2529, 16
        %v2613 = vrot.slane %v2611, 4
        %v2614 = vor.u32 %v2613, %v2609
        %v2615 = vrot.slane %v2614, 4
        %v2617 = vshll.u32 %v2530, 16
        %v2619 = vrot.slane %v2617, 5
        %v2620 = vsel %vm706, %v2615, %v2619
        %v2622 = vshrl.u32 %v2531, 16
        %v2624 = vrot.slane %v2622, 4
        %v2625 = vshll.u32 %v2531, 16
        %v2627 = vrot.slane %v2625, 5
        %v2628 = vor.u32 %v2624, %v2627
        %v2629 = vrot.slane %v2628, 4
        %v2631 = vshll.u32 %v2532, 16
        %v2633 = vrot.slane %v2631, 5
        %v2634 = vsel %vm706, %v2629, %v2633
        %v2635 = vshrl.u32 %v2532, 16
        %v2637 = vrot.slane %v2635, 4
        %v2638 = vor.u32 %v2637, %v2633
        %v2639 = vrot.slane %v2638, 4
        %v2641 = vshll.u32 %v2533, 16
        %v2643 = vrot.slane %v2641, 5
        %v2644 = vsel %vm706, %v2639, %v2643
        %v2646 = vshrl.u32 %v2534, 16
        %v2648 = vrot.slane %v2646, 4
        %v2649 = vshll.u32 %v2534, 16
        %v2651 = vrot.slane %v2649, 5
        %v2652 = vor.u32 %v2648, %v2651
        %v2653 = vrot.slane %v2652, 4
        %v2655 = vshll.u32 %v2535, 16
        %v2657 = vrot.slane %v2655, 5
        %v2658 = vsel %vm706, %v2653, %v2657
        %v2659 = vshrl.u32 %v2535, 16
        %v2661 = vrot.slane %v2659, 4
        %v2662 = vor.u32 %v2661, %v2657
        %v2663 = vrot.slane %v2662, 4
        %v2665 = vshll.u32 %v2536, 16
        %v2667 = vrot.slane %v2665, 5
        %v2668 = vsel %vm706, %v2663, %v2667
        %v2670 = vshrl.u32 %v2537, 16
        %v2672 = vrot.slane %v2670, 4
        %v2673 = vshll.u32 %v2537, 16
        %v2675 = vrot.slane %v2673, 5
        %v2676 = vor.u32 %v2672, %v2675
        %v2677 = vrot.slane %v2676, 4
        %v2679 = vshll.u32 %v2538, 16
        %v2681 = vrot.slane %v2679, 5
        %v2682 = vsel %vm706, %v2677, %v2681
        %v2683 = vshrl.u32 %v2538, 16
        %v2685 = vrot.slane %v2683, 4
        %v2686 = vor.u32 %v2685, %v2681
        %v2687 = vrot.slane %v2686, 4
        %v2689 = vshll.u32 %v2539, 16
        %v2691 = vrot.slane %v2689, 5
        %v2692 = vsel %vm706, %v2687, %v2691
        %v2694 = vshrl.u32 %v2540, 16
        %v2696 = vrot.slane %v2694, 4
        %v2697 = vshll.u32 %v2540, 16
        %v2699 = vrot.slane %v2697, 5
        %v2700 = vor.u32 %v2696, %v2699
        %v2701 = vrot.slane %v2700, 4
        %v2703 = vshll.u32 %v2541, 16
        %v2705 = vrot.slane %v2703, 5
        %v2706 = vsel %vm706, %v2701, %v2705
        %v2707 = vshrl.u32 %v2541, 16
        %v2709 = vrot.slane %v2707, 4
        %v2710 = vor.u32 %v2709, %v2705
        %v2711 = vrot.slane %v2710, 4
        %v2713 = vshll.u32 %v2542, 16
        %v2715 = vrot.slane %v2713, 5
        %v2716 = vsel %vm706, %v2711, %v2715
        %v2718 = vshrl.u32 %v2543, 16
        %v2720 = vrot.slane %v2718, 4
        %v2721 = vshll.u32 %v2543, 16
        %v2723 = vrot.slane %v2721, 5
        %v2724 = vor.u32 %v2720, %v2723
        %v2725 = vrot.slane %v2724, 4
        %v2727 = vshll.u32 %v2544, 16
        %v2729 = vrot.slane %v2727, 5
        %v2730 = vsel %vm706, %v2725, %v2729
        %v2731 = vshrl.u32 %v2544, 16
        %v2733 = vrot.slane %v2731, 4
        %v2734 = vor.u32 %v2733, %v2729
        %v2735 = vrot.slane %v2734, 4
        %v2737 = vshll.u32 %v2545, 16
        %v2739 = vrot.slane %v2737, 5
        %v2740 = vsel %vm706, %v2735, %v2739
        %v2742 = vshrl.u32 %v2546, 16
        %v2744 = vrot.slane %v2742, 4
        %v2745 = vshll.u32 %v2546, 16
        %v2747 = vrot.slane %v2745, 5
        %v2748 = vor.u32 %v2744, %v2747
        %v2749 = vrot.slane %v2748, 4
        %v2751 = vshll.u32 %v2547, 16
        %v2753 = vrot.slane %v2751, 5
        %v2754 = vsel %vm706, %v2749, %v2753
        %v2755 = vshrl.u32 %v2547, 16
        %v2757 = vrot.slane %v2755, 4
        %v2758 = vor.u32 %v2757, %v2753
        %v2759 = vrot.slane %v2758, 4
        %v2761 = vshll.u32 %v2548, 16
        %v2763 = vrot.slane %v2761, 5
        %v2764 = vsel %vm706, %v2759, %v2763
        %v2766 = vshrl.u32 %v2549, 16
        %v2768 = vrot.slane %v2766, 4
        %v2769 = vshll.u32 %v2549, 16
        %v2771 = vrot.slane %v2769, 5
        %v2772 = vor.u32 %v2768, %v2771
        %v2773 = vrot.slane %v2772, 4
        %v2775 = vshll.u32 %v2550, 16
        %v2777 = vrot.slane %v2775, 5
        %v2778 = vsel %vm706, %v2773, %v2777
        %v2779 = vshrl.u32 %v2550, 16
        %v2781 = vrot.slane %v2779, 4
        %v2782 = vor.u32 %v2781, %v2777
        %v2783 = vrot.slane %v2782, 4
        %v2785 = vshll.u32 %v2551, 16
        %v2787 = vrot.slane %v2785, 5
        %v2788 = vsel %vm706, %v2783, %v2787
        %v2790 = vshrl.u32 %v2552, 16
        %v2792 = vrot.slane %v2790, 4
        %v2793 = vshll.u32 %v2552, 16
        %v2795 = vrot.slane %v2793, 5
        %v2796 = vor.u32 %v2792, %v2795
        %v2797 = vrot.slane %v2796, 4
        %v2799 = vshll.u32 %v2553, 16
        %v2801 = vrot.slane %v2799, 5
        %v2802 = vsel %vm706, %v2797, %v2801
        %v2803 = vshrl.u32 %v2553, 16
        %v2805 = vrot.slane %v2803, 4
        %v2806 = vor.u32 %v2805, %v2801
        %v2807 = vrot.slane %v2806, 4
        %v2809 = vshll.u32 %v2554, 16
        %v2811 = vrot.slane %v2809, 5
        %v2812 = vsel %vm706, %v2807, %v2811
        %v2814 = vshrl.u32 %v2555, 16
        %v2816 = vrot.slane %v2814, 4
        %v2817 = vshll.u32 %v2555, 16
        %v2819 = vrot.slane %v2817, 5
        %v2820 = vor.u32 %v2816, %v2819
        %v2821 = vrot.slane %v2820, 4
        %v2823 = vshll.u32 %v2556, 16
        %v2825 = vrot.slane %v2823, 5
        %v2826 = vsel %vm706, %v2821, %v2825
        %v2827 = vshrl.u32 %v2556, 16
        %v2829 = vrot.slane %v2827, 4
        %v2830 = vor.u32 %v2829, %v2825
        %v2831 = vrot.slane %v2830, 4
        %v2833 = vshll.u32 %v2557, 16
        %v2835 = vrot.slane %v2833, 5
        %v2836 = vsel %vm706, %v2831, %v2835
        %v2838 = vshrl.u32 %v2558, 16
        %v2840 = vrot.slane %v2838, 4
        %v2841 = vshll.u32 %v2558, 16
        %v2843 = vrot.slane %v2841, 5
        %v2844 = vor.u32 %v2840, %v2843
        %v2845 = vrot.slane %v2844, 4
        %v2847 = vshll.u32 %v2559, 16
        %v2849 = vrot.slane %v2847, 5
        %v2850 = vsel %vm706, %v2845, %v2849
        %v2851 = vshrl.u32 %v2559, 16
        %v2853 = vrot.slane %v2851, 4
        %v2854 = vor.u32 %v2853, %v2849
        %v2855 = vrot.slane %v2854, 4
        %v2857 = vshll.u32 %v2560, 16
        %v2859 = vrot.slane %v2857, 5
        %v2860 = vsel %vm706, %v2855, %v2859
        %v2862 = vshrl.u32 %v2561, 16
        %v2864 = vrot.slane %v2862, 4
        %v2865 = vshll.u32 %v2561, 16
        %v2867 = vrot.slane %v2865, 5
        %v2868 = vor.u32 %v2864, %v2867
        %v2869 = vrot.slane %v2868, 4
        %v2871 = vshll.u32 %v2562, 16
        %v2873 = vrot.slane %v2871, 5
        %v2874 = vsel %vm706, %v2869, %v2873
        %v2875 = vshrl.u32 %v2562, 16
        %v2877 = vrot.slane %v2875, 4
        %v2878 = vor.u32 %v2877, %v2873
        %v2879 = vrot.slane %v2878, 4
        %v2881 = vshll.u32 %v2563, 16
        %v2883 = vrot.slane %v2881, 5
        %v2884 = vsel %vm706, %v2879, %v2883
        %v2886 = vshrl.u32 %v2564, 16
        %v2888 = vrot.slane %v2886, 4
        %v2889 = vshll.u32 %v2564, 16
        %v2891 = vrot.slane %v2889, 5
        %v2892 = vor.u32 %v2888, %v2891
        %v2893 = vrot.slane %v2892, 4
        %v2895 = vshll.u32 %v2565, 16
        %v2897 = vrot.slane %v2895, 5
        %v2898 = vsel %vm706, %v2893, %v2897
        %v2899 = vshrl.u32 %v2565, 16
        %v2901 = vrot.slane %v2899, 4
        %v2902 = vor.u32 %v2901, %v2897
        %v2903 = vrot.slane %v2902, 4
        %v2905 = vshll.u32 %v2566, 16
        %v2907 = vrot.slane %v2905, 5
        %v2908 = vsel %vm706, %v2903, %v2907
        %v2910 = vshrl.u32 %v2567, 16
        %v2912 = vrot.slane %v2910, 4
        %v2913 = vshll.u32 %v2567, 16
        %v2915 = vrot.slane %v2913, 5
        %v2916 = vor.u32 %v2912, %v2915
        %v2917 = vrot.slane %v2916, 4
        %v2919 = vshll.u32 %v2568, 16
        %v2921 = vrot.slane %v2919, 5
        %v2922 = vsel %vm706, %v2917, %v2921
        %v2923 = vshrl.u32 %v2568, 16
        %v2925 = vrot.slane %v2923, 4
        %v2926 = vor.u32 %v2925, %v2921
        %v2927 = vrot.slane %v2926, 4
        %v2929 = vshll.u32 %v2569, 16
        %v2931 = vrot.slane %v2929, 5
        %v2932 = vsel %vm706, %v2927, %v2931
        %v2934 = vshrl.u32 %v2570, 16
        %v2936 = vrot.slane %v2934, 4
        %v2937 = vshll.u32 %v2570, 16
        %v2939 = vrot.slane %v2937, 5
        %v2940 = vor.u32 %v2936, %v2939
        %v2941 = vrot.slane %v2940, 4
        %v2943 = vshll.u32 %v2571, 16
        %v2945 = vrot.slane %v2943, 5
        %v2946 = vsel %vm706, %v2941, %v2945
        %v2947 = vshrl.u32 %v2571, 16
        %v2949 = vrot.slane %v2947, 4
        %v2950 = vor.u32 %v2949, %v2945
        %v2951 = vrot.slane %v2950, 4
        %v2953 = vshll.u32 %v2572, 16
        %v2955 = vrot.slane %v2953, 5
        %v2956 = vsel %vm706, %v2951, %v2955
        %s2957 = scalar_lea.vmem %s233, 256
        %v2958 = vld [vmem:[%s2957] sm:$0xf]
        %v2959 = vld [vmem:[%s2957 + $0x4] sm:$0xf]
        %v2960 = vld [vmem:[%s2957 + $0x8] sm:$0xf]
        %v2961 = vld [vmem:[%s2957 + $0xc] sm:$0xf]
        %v2962 = vld [vmem:[%s2957 + $0x10] sm:$0xf]
        %v2963 = vld [vmem:[%s2957 + $0x14] sm:$0xf]
        %v2964 = vld [vmem:[%s2957 + $0x18] sm:$0xf]
        %v2965 = vld [vmem:[%s2957 + $0x1c] sm:$0xf]
        %v2966 = vld [vmem:[%s2957 + $0x20] sm:$0xf]
        %v2967 = vld [vmem:[%s2957 + $0x24] sm:$0xf]
        %v2968 = vld [vmem:[%s2957 + $0x28] sm:$0xf]
        %v2969 = vld [vmem:[%s2957 + $0x2c] sm:$0xf]
        %v2970 = vld [vmem:[%s2957 + $0x30] sm:$0xf]
        %v2971 = vld [vmem:[%s2957 + $0x34] sm:$0xf]
        %v2972 = vld [vmem:[%s2957 + $0x38] sm:$0xf]
        %v2973 = vld [vmem:[%s2957 + $0x3c] sm:$0xf]
        %v2974 = vunpack.c.l.b16 %v2586
        %v2975 = vunpack.c.l.b16 %v2596
        %v2976 = vunpack.c.l.b16 %v2610
        %v2977 = vunpack.c.l.b16 %v2620
        %v2978 = vunpack.c.l.b16 %v2634
        %v2979 = vunpack.c.l.b16 %v2644
        %v2980 = vunpack.c.l.b16 %v2658
        %v2981 = vunpack.c.l.b16 %v2668
        %v2982 = vunpack.c.l.b16 %v2682
        %v2983 = vunpack.c.l.b16 %v2692
        %v2984 = vunpack.c.l.b16 %v2706
        %v2985 = vunpack.c.l.b16 %v2716
        %v2986 = vunpack.c.l.b16 %v2730
        %v2987 = vunpack.c.l.b16 %v2740
        %v2988 = vunpack.c.l.b16 %v2754
        %v2989 = vunpack.c.l.b16 %v2764
        %v2990 = vunpack.c.l.b16 %v2778
        %v2991 = vunpack.c.l.b16 %v2788
        %v2992 = vunpack.c.l.b16 %v2802
        %v2993 = vunpack.c.l.b16 %v2812
        %v2994 = vunpack.c.l.b16 %v2826
        %v2995 = vunpack.c.l.b16 %v2836
        %v2996 = vunpack.c.l.b16 %v2850
        %v2997 = vunpack.c.l.b16 %v2860
        %v2998 = vunpack.c.l.b16 %v2874
        %v2999 = vunpack.c.l.b16 %v2884
        %v3000 = vunpack.c.l.b16 %v2898
        %v3001 = vunpack.c.l.b16 %v2908
        %v3002 = vunpack.c.l.b16 %v2922
        %v3003 = vunpack.c.l.b16 %v2932
        %v3004 = vunpack.c.l.b16 %v2946
        %v3005 = vunpack.c.l.b16 %v2956
        %v3006 = vpack.c.b16 %v2975, %v2974
        %v3007 = vpack.c.b16 %v2977, %v2976
        %v3008 = vpack.c.b16 %v2979, %v2978
        %v3009 = vpack.c.b16 %v2981, %v2980
        %v3010 = vpack.c.b16 %v2983, %v2982
        %v3011 = vpack.c.b16 %v2985, %v2984
        %v3012 = vpack.c.b16 %v2987, %v2986
        %v3013 = vpack.c.b16 %v2989, %v2988
        %v3014 = vpack.c.b16 %v2991, %v2990
        %v3015 = vpack.c.b16 %v2993, %v2992
        %v3016 = vpack.c.b16 %v2995, %v2994
        %v3017 = vpack.c.b16 %v2997, %v2996
        %v3018 = vpack.c.b16 %v2999, %v2998
        %v3019 = vpack.c.b16 %v3001, %v3000
        %v3020 = vpack.c.b16 %v3003, %v3002
        %v3021 = vpack.c.b16 %v3005, %v3004
        %v3054 = vunpack.c.l.b16 %v2958
        %v3055 = vunpack.c.l.b16 %v2959
        %v3056 = vunpack.c.l.b16 %v2960
        %v3057 = vunpack.c.l.b16 %v2961
        %v3058 = vunpack.c.l.b16 %v2962
        %v3059 = vunpack.c.l.b16 %v2963
        %v3060 = vunpack.c.l.b16 %v2964
        %v3061 = vunpack.c.l.b16 %v2965
        %v3062 = vunpack.c.l.b16 %v2966
        %v3063 = vunpack.c.l.b16 %v2967
        %v3064 = vunpack.c.l.b16 %v2968
        %v3065 = vunpack.c.l.b16 %v2969
        %v3066 = vunpack.c.l.b16 %v2970
        %v3067 = vunpack.c.l.b16 %v2971
        %v3068 = vunpack.c.l.b16 %v2972
        %v3069 = vunpack.c.l.b16 %v2973
        %v3070 = vpack.c.b16 %v3055, %v3054
        %v3071 = vpack.c.b16 %v3057, %v3056
        %v3072 = vpack.c.b16 %v3059, %v3058
        %v3073 = vpack.c.b16 %v3061, %v3060
        %v3074 = vpack.c.b16 %v3063, %v3062
        %v3075 = vpack.c.b16 %v3065, %v3064
        %v3076 = vpack.c.b16 %v3067, %v3066
        %v3077 = vpack.c.b16 %v3069, %v3068
        %3086 = vmatprep.subr.bf16.mxu0 0
        %3087 = vmatpush1.bf16.msra.mxu0 %v3070
        %3088 = vmatprep.subr.bf16.mxu0 0
        %3089 = vmatpush1.bf16.msra.mxu0 %v3071
        %3090 = vmatprep.subr.bf16.mxu0 0
        %3091 = vmatpush1.bf16.msra.mxu0 %v3072
        %3092 = vmatprep.subr.bf16.mxu0 0
        %3093 = vmatpush1.bf16.msra.mxu0 %v3073
        %3094 = vmatprep.subr.bf16.mxu0 0
        %3095 = vmatpush1.bf16.msra.mxu0 %v3074
        %3096 = vmatprep.subr.bf16.mxu0 0
        %3097 = vmatpush1.bf16.msra.mxu0 %v3075
        %3098 = vmatprep.subr.bf16.mxu0 0
        %3099 = vmatpush1.bf16.msra.mxu0 %v3076
        %3100 = vmatprep.subr.bf16.mxu0 0
        %3101 = vmatpush1.bf16.msra.mxu0 %v3077
        %3102 = vmatprep.subr.bf16.mxu0 0
        %3103 = vmatpush1.bf16.msra.mxu0 0
        %3104 = vmatprep.subr.bf16.mxu0 0
        %3105 = vmatpush1.bf16.msra.mxu0 0
        %3106 = vmatprep.subr.bf16.mxu0 0
        %3107 = vmatpush1.bf16.msra.mxu0 0
        %3108 = vmatprep.subr.bf16.mxu0 0
        %3109 = vmatpush1.bf16.msra.mxu0 0
        %3110 = vmatprep.subr.bf16.mxu0 0
        %3111 = vmatpush1.bf16.msra.mxu0 0
        %3112 = vmatprep.subr.bf16.mxu0 0
        %3113 = vmatpush1.bf16.msra.mxu0 0
        %3114 = vmatprep.subr.bf16.mxu0 0
        %3115 = vmatpush1.bf16.msra.mxu0 0
        %3116 = vmatprep.subr.bf16.mxu0 0
        %3117 = vmatpush1.bf16.msra.mxu0 0
        %3118 = vmatprep.mubr.bf16.mxu0 0
        %3119 = vmatmul.mubr.bf16.gmra.mrb[0].mxu0 %v3006
        %v3120 = vpop.f32.mrb[0].mxu0
        %v3121 = vadd.f32 0.0, %v3120
        %v3122 = vpop.f32.mrb[0].mxu0
        %v3123 = vpop.f32.mrb[0].mxu0
        %v3124 = vadd.f32 0.0, %v3123
        %v3125 = vpop.f32.mrb[0].mxu0
        %3126 = vmatprep.mubr.bf16.mxu0 0
        %3127 = vmatmul.mubr.bf16.gmra.mrb[0].mxu0 %v3007
        %v3128 = vpop.f32.mrb[0].mxu0
        %v3129 = vadd.f32 0.0, %v3128
        %v3130 = vpop.f32.mrb[0].mxu0
        %v3131 = vpop.f32.mrb[0].mxu0
        %v3132 = vadd.f32 0.0, %v3131
        %v3133 = vpop.f32.mrb[0].mxu0
        %3134 = vmatprep.mubr.bf16.mxu0 0
        %3135 = vmatmul.mubr.bf16.gmra.mrb[0].mxu0 %v3008
        %v3136 = vpop.f32.mrb[0].mxu0
        %v3137 = vadd.f32 0.0, %v3136
        %v3138 = vpop.f32.mrb[0].mxu0
        %v3139 = vpop.f32.mrb[0].mxu0
        %v3140 = vadd.f32 0.0, %v3139
        %v3141 = vpop.f32.mrb[0].mxu0
        %3142 = vmatprep.mubr.bf16.mxu0 0
        %3143 = vmatmul.mubr.bf16.gmra.mrb[0].mxu0 %v3009
        %v3144 = vpop.f32.mrb[0].mxu0
        %v3145 = vadd.f32 0.0, %v3144
        %v3146 = vpop.f32.mrb[0].mxu0
        %v3147 = vpop.f32.mrb[0].mxu0
        %v3148 = vadd.f32 0.0, %v3147
        %v3149 = vpop.f32.mrb[0].mxu0
        %3150 = vmatprep.mubr.bf16.mxu0 0
        %3151 = vmatmul.mubr.bf16.gmra.mrb[0].mxu0 %v3010
        %v3152 = vpop.f32.mrb[0].mxu0
        %v3153 = vadd.f32 0.0, %v3152
        %v3154 = vpop.f32.mrb[0].mxu0
        %v3155 = vpop.f32.mrb[0].mxu0
        %v3156 = vadd.f32 0.0, %v3155
        %v3157 = vpop.f32.mrb[0].mxu0
        %3158 = vmatprep.mubr.bf16.mxu0 0
        %3159 = vmatmul.mubr.bf16.gmra.mrb[0].mxu0 %v3011
        %v3160 = vpop.f32.mrb[0].mxu0
        %v3161 = vadd.f32 0.0, %v3160
        %v3162 = vpop.f32.mrb[0].mxu0
        %v3163 = vpop.f32.mrb[0].mxu0
        %v3164 = vadd.f32 0.0, %v3163
        %v3165 = vpop.f32.mrb[0].mxu0
        %3166 = vmatprep.mubr.bf16.mxu0 0
        %3167 = vmatmul.mubr.bf16.gmra.mrb[0].mxu0 %v3012
        %v3168 = vpop.f32.mrb[0].mxu0
        %v3169 = vadd.f32 0.0, %v3168
        %v3170 = vpop.f32.mrb[0].mxu0
        %v3171 = vpop.f32.mrb[0].mxu0
        %v3172 = vadd.f32 0.0, %v3171
        %v3173 = vpop.f32.mrb[0].mxu0
        %3174 = vmatprep.mubr.bf16.mxu0 0
        %3175 = vmatmul.mubr.bf16.gmra.mrb[0].mxu0 %v3013
        %v3176 = vpop.f32.mrb[0].mxu0
        %v3177 = vadd.f32 0.0, %v3176
        %v3178 = vpop.f32.mrb[0].mxu0
        %v3179 = vpop.f32.mrb[0].mxu0
        %v3180 = vadd.f32 0.0, %v3179
        %v3181 = vpop.f32.mrb[0].mxu0
        %3182 = vmatprep.mubr.bf16.mxu0 0
        %3183 = vmatmul.mubr.bf16.gmra.mrb[0].mxu0 %v3014
        %v3184 = vpop.f32.mrb[0].mxu0
        %v3185 = vadd.f32 0.0, %v3184
        %v3186 = vpop.f32.mrb[0].mxu0
        %v3187 = vpop.f32.mrb[0].mxu0
        %v3188 = vadd.f32 0.0, %v3187
        %v3189 = vpop.f32.mrb[0].mxu0
        %3190 = vmatprep.mubr.bf16.mxu0 0
        %3191 = vmatmul.mubr.bf16.gmra.mrb[0].mxu0 %v3015
        %v3192 = vpop.f32.mrb[0].mxu0
        %v3193 = vadd.f32 0.0, %v3192
        %v3194 = vpop.f32.mrb[0].mxu0
        %v3195 = vpop.f32.mrb[0].mxu0
        %v3196 = vadd.f32 0.0, %v3195
        %v3197 = vpop.f32.mrb[0].mxu0
        %3198 = vmatprep.mubr.bf16.mxu0 0
        %3199 = vmatmul.mubr.bf16.gmra.mrb[0].mxu0 %v3016
        %v3200 = vpop.f32.mrb[0].mxu0
        %v3201 = vadd.f32 0.0, %v3200
        %v3202 = vpop.f32.mrb[0].mxu0
        %v3203 = vpop.f32.mrb[0].mxu0
        %v3204 = vadd.f32 0.0, %v3203
        %v3205 = vpop.f32.mrb[0].mxu0
        %3206 = vmatprep.mubr.bf16.mxu0 0
        %3207 = vmatmul.mubr.bf16.gmra.mrb[0].mxu0 %v3017
        %v3208 = vpop.f32.mrb[0].mxu0
        %v3209 = vadd.f32 0.0, %v3208
        %v3210 = vpop.f32.mrb[0].mxu0
        %v3211 = vpop.f32.mrb[0].mxu0
        %v3212 = vadd.f32 0.0, %v3211
        %v3213 = vpop.f32.mrb[0].mxu0
        %3214 = vmatprep.mubr.bf16.mxu0 0
        %3215 = vmatmul.mubr.bf16.gmra.mrb[0].mxu0 %v3018
        %v3216 = vpop.f32.mrb[0].mxu0
        %v3217 = vadd.f32 0.0, %v3216
        %v3218 = vpop.f32.mrb[0].mxu0
        %v3219 = vpop.f32.mrb[0].mxu0
        %v3220 = vadd.f32 0.0, %v3219
        %v3221 = vpop.f32.mrb[0].mxu0
        %3222 = vmatprep.mubr.bf16.mxu0 0
        %3223 = vmatmul.mubr.bf16.gmra.mrb[0].mxu0 %v3019
        %v3224 = vpop.f32.mrb[0].mxu0
        %v3225 = vadd.f32 0.0, %v3224
        %v3226 = vpop.f32.mrb[0].mxu0
        %v3227 = vpop.f32.mrb[0].mxu0
        %v3228 = vadd.f32 0.0, %v3227
        %v3229 = vpop.f32.mrb[0].mxu0
        %3230 = vmatprep.mubr.bf16.mxu0 0
        %3231 = vmatmul.mubr.bf16.gmra.mrb[0].mxu0 %v3020
        %v3232 = vpop.f32.mrb[0].mxu0
        %v3233 = vadd.f32 0.0, %v3232
        %v3234 = vpop.f32.mrb[0].mxu0
        %v3235 = vpop.f32.mrb[0].mxu0
        %v3236 = vadd.f32 0.0, %v3235
        %v3237 = vpop.f32.mrb[0].mxu0
        %3238 = vmatprep.mubr.bf16.mxu0 0
        %3239 = vmatmul.mubr.bf16.gmra.mrb[0].mxu0 %v3021
        %v3240 = vpop.f32.mrb[0].mxu0
        %v3241 = vadd.f32 0.0, %v3240
        %v3242 = vpop.f32.mrb[0].mxu0
        %v3243 = vpop.f32.mrb[0].mxu0
        %v3244 = vadd.f32 0.0, %v3243
        %v3245 = vpop.f32.mrb[0].mxu0
        %3246 = vdwg.mxu0
        %v3247 = vadd.f32 %v2493, %v3121
        %v3248 = vadd.f32 %v2494, %v3124
        %v3249 = vadd.f32 %v2495, %v3129
        %v3250 = vadd.f32 %v2496, %v3132
        %v3251 = vadd.f32 %v2497, %v3137
        %v3252 = vadd.f32 %v2498, %v3140
        %v3253 = vadd.f32 %v2499, %v3145
        %v3254 = vadd.f32 %v2500, %v3148
        %v3255 = vadd.f32 %v2501, %v3153
        %v3256 = vadd.f32 %v2502, %v3156
        %v3257 = vadd.f32 %v2503, %v3161
        %v3258 = vadd.f32 %v2504, %v3164
        %v3259 = vadd.f32 %v2505, %v3169
        %v3260 = vadd.f32 %v2506, %v3172
        %v3261 = vadd.f32 %v2507, %v3177
        %v3262 = vadd.f32 %v2508, %v3180
        %v3263 = vadd.f32 %v2509, %v3185
        %v3264 = vadd.f32 %v2510, %v3188
        %v3265 = vadd.f32 %v2511, %v3193
        %v3266 = vadd.f32 %v2512, %v3196
        %v3267 = vadd.f32 %v2513, %v3201
        %v3268 = vadd.f32 %v2514, %v3204
        %v3269 = vadd.f32 %v2515, %v3209
        %v3270 = vadd.f32 %v2516, %v3212
        %v3271 = vadd.f32 %v2517, %v3217
        %v3272 = vadd.f32 %v2518, %v3220
        %v3273 = vadd.f32 %v2519, %v3225
        %v3274 = vadd.f32 %v2520, %v3228
        %v3275 = vadd.f32 %v2521, %v3233
        %v3276 = vadd.f32 %v2522, %v3236
        %v3277 = vadd.f32 %v2523, %v3241
        %v3278 = vadd.f32 %v2524, %v3244
        %3279 = vst [vmem:[#allocation2] sm:$0xff] %v3247
        %3280 = vst [vmem:[#allocation2 + $0x8] sm:$0xff] %v3248
        %3281 = vst [vmem:[#allocation2 + $0x10] sm:$0xff] %v3249
        %3282 = vst [vmem:[#allocation2 + $0x18] sm:$0xff] %v3250
        %3283 = vst [vmem:[#allocation2 + $0x20] sm:$0xff] %v3251
        %3284 = vst [vmem:[#allocation2 + $0x28] sm:$0xff] %v3252
        %3285 = vst [vmem:[#allocation2 + $0x30] sm:$0xff] %v3253
        %3286 = vst [vmem:[#allocation2 + $0x38] sm:$0xff] %v3254
        %3287 = vst [vmem:[#allocation2 + $0x40] sm:$0xff] %v3255
        %3288 = vst [vmem:[#allocation2 + $0x48] sm:$0xff] %v3256
        %3289 = vst [vmem:[#allocation2 + $0x50] sm:$0xff] %v3257
        %3290 = vst [vmem:[#allocation2 + $0x58] sm:$0xff] %v3258
        %3291 = vst [vmem:[#allocation2 + $0x60] sm:$0xff] %v3259
        %3292 = vst [vmem:[#allocation2 + $0x68] sm:$0xff] %v3260
        %3293 = vst [vmem:[#allocation2 + $0x70] sm:$0xff] %v3261
        %3294 = vst [vmem:[#allocation2 + $0x78] sm:$0xff] %v3262
        %3295 = vst [vmem:[#allocation2 + $0x80] sm:$0xff] %v3263
        %3296 = vst [vmem:[#allocation2 + $0x88] sm:$0xff] %v3264
        %3297 = vst [vmem:[#allocation2 + $0x90] sm:$0xff] %v3265
        %3298 = vst [vmem:[#allocation2 + $0x98] sm:$0xff] %v3266
        %3299 = vst [vmem:[#allocation2 + $0xa0] sm:$0xff] %v3267
        %3300 = vst [vmem:[#allocation2 + $0xa8] sm:$0xff] %v3268
        %3301 = vst [vmem:[#allocation2 + $0xb0] sm:$0xff] %v3269
        %3302 = vst [vmem:[#allocation2 + $0xb8] sm:$0xff] %v3270
        %3303 = vst [vmem:[#allocation2 + $0xc0] sm:$0xff] %v3271
        %3304 = vst [vmem:[#allocation2 + $0xc8] sm:$0xff] %v3272
        %3305 = vst [vmem:[#allocation2 + $0xd0] sm:$0xff] %v3273
        %3306 = vst [vmem:[#allocation2 + $0xd8] sm:$0xff] %v3274
        %3307 = vst [vmem:[#allocation2 + $0xe0] sm:$0xff] %v3275
        %3308 = vst [vmem:[#allocation2 + $0xe8] sm:$0xff] %v3276
        %3309 = vst [vmem:[#allocation2 + $0xf0] sm:$0xff] %v3277
        %3310 = vst [vmem:[#allocation2 + $0xf8] sm:$0xff] %v3278
        %v3311 = vld [vmem:[#allocation2] sm:$0xff]
        %v3312 = vld [vmem:[#allocation2 + $0x8] sm:$0xff]
        %v3313 = vld [vmem:[#allocation2 + $0x10] sm:$0xff]
        %v3314 = vld [vmem:[#allocation2 + $0x18] sm:$0xff]
        %v3315 = vld [vmem:[#allocation2 + $0x20] sm:$0xff]
        %v3316 = vld [vmem:[#allocation2 + $0x28] sm:$0xff]
        %v3317 = vld [vmem:[#allocation2 + $0x30] sm:$0xff]
        %v3318 = vld [vmem:[#allocation2 + $0x38] sm:$0xff]
        %v3319 = vld [vmem:[#allocation2 + $0x40] sm:$0xff]
        %v3320 = vld [vmem:[#allocation2 + $0x48] sm:$0xff]
        %v3321 = vld [vmem:[#allocation2 + $0x50] sm:$0xff]
        %v3322 = vld [vmem:[#allocation2 + $0x58] sm:$0xff]
        %v3323 = vld [vmem:[#allocation2 + $0x60] sm:$0xff]
        %v3324 = vld [vmem:[#allocation2 + $0x68] sm:$0xff]
        %v3325 = vld [vmem:[#allocation2 + $0x70] sm:$0xff]
        %v3326 = vld [vmem:[#allocation2 + $0x78] sm:$0xff]
        %v3327 = vld [vmem:[#allocation2 + $0x80] sm:$0xff]
        %v3328 = vld [vmem:[#allocation2 + $0x88] sm:$0xff]
        %v3329 = vld [vmem:[#allocation2 + $0x90] sm:$0xff]
        %v3330 = vld [vmem:[#allocation2 + $0x98] sm:$0xff]
        %v3331 = vld [vmem:[#allocation2 + $0xa0] sm:$0xff]
        %v3332 = vld [vmem:[#allocation2 + $0xa8] sm:$0xff]
        %v3333 = vld [vmem:[#allocation2 + $0xb0] sm:$0xff]
        %v3334 = vld [vmem:[#allocation2 + $0xb8] sm:$0xff]
        %v3335 = vld [vmem:[#allocation2 + $0xc0] sm:$0xff]
        %v3336 = vld [vmem:[#allocation2 + $0xc8] sm:$0xff]
        %v3337 = vld [vmem:[#allocation2 + $0xd0] sm:$0xff]
        %v3338 = vld [vmem:[#allocation2 + $0xd8] sm:$0xff]
        %v3339 = vld [vmem:[#allocation2 + $0xe0] sm:$0xff]
        %v3340 = vld [vmem:[#allocation2 + $0xe8] sm:$0xff]
        %v3341 = vld [vmem:[#allocation2 + $0xf0] sm:$0xff]
        %v3342 = vld [vmem:[#allocation2 + $0xf8] sm:$0xff]
        %v3343 = vld [vmem:[%s2074] sm:$0xe]
        %v3344 = vld [vmem:[%s2074 + $0x4] sm:$0xf]
        %v3345 = vld [vmem:[%s2074 + $0x8] sm:$0x1]
        %v3346 = vld [vmem:[%s2074 + $0xc] sm:$0xe]
        %v3347 = vld [vmem:[%s2074 + $0x10] sm:$0xf]
        %v3348 = vld [vmem:[%s2074 + $0x14] sm:$0x1]
        %v3349 = vld [vmem:[%s2074 + $0x18] sm:$0xe]
        %v3350 = vld [vmem:[%s2074 + $0x1c] sm:$0xf]
        %v3351 = vld [vmem:[%s2074 + $0x20] sm:$0x1]
        %v3352 = vld [vmem:[%s2074 + $0x24] sm:$0xe]
        %v3353 = vld [vmem:[%s2074 + $0x28] sm:$0xf]
        %v3354 = vld [vmem:[%s2074 + $0x2c] sm:$0x1]
        %v3355 = vld [vmem:[%s2074 + $0x30] sm:$0xe]
        %v3356 = vld [vmem:[%s2074 + $0x34] sm:$0xf]
        %v3357 = vld [vmem:[%s2074 + $0x38] sm:$0x1]
        %v3358 = vld [vmem:[%s2074 + $0x3c] sm:$0xe]
        %v3359 = vld [vmem:[%s2074 + $0x40] sm:$0xf]
        %v3360 = vld [vmem:[%s2074 + $0x44] sm:$0x1]
        %v3361 = vld [vmem:[%s2074 + $0x48] sm:$0xe]
        %v3362 = vld [vmem:[%s2074 + $0x4c] sm:$0xf]
        %v3363 = vld [vmem:[%s2074 + $0x50] sm:$0x1]
        %v3364 = vld [vmem:[%s2074 + $0x54] sm:$0xe]
        %v3365 = vld [vmem:[%s2074 + $0x58] sm:$0xf]
        %v3366 = vld [vmem:[%s2074 + $0x5c] sm:$0x1]
        %v3367 = vld [vmem:[%s2074 + $0x60] sm:$0xe]
        %v3368 = vld [vmem:[%s2074 + $0x64] sm:$0xf]
        %v3369 = vld [vmem:[%s2074 + $0x68] sm:$0x1]
        %v3370 = vld [vmem:[%s2074 + $0x6c] sm:$0xe]
        %v3371 = vld [vmem:[%s2074 + $0x70] sm:$0xf]
        %v3372 = vld [vmem:[%s2074 + $0x74] sm:$0x1]
        %v3373 = vld [vmem:[%s2074 + $0x78] sm:$0xe]
        %v3374 = vld [vmem:[%s2074 + $0x7c] sm:$0xf]
        %v3375 = vld [vmem:[%s2074 + $0x80] sm:$0x1]
        %v3376 = vld [vmem:[%s2074 + $0x84] sm:$0xe]
        %v3377 = vld [vmem:[%s2074 + $0x88] sm:$0xf]
        %v3378 = vld [vmem:[%s2074 + $0x8c] sm:$0x1]
        %v3379 = vld [vmem:[%s2074 + $0x90] sm:$0xe]
        %v3380 = vld [vmem:[%s2074 + $0x94] sm:$0xf]
        %v3381 = vld [vmem:[%s2074 + $0x98] sm:$0x1]
        %v3382 = vld [vmem:[%s2074 + $0x9c] sm:$0xe]
        %v3383 = vld [vmem:[%s2074 + $0xa0] sm:$0xf]
        %v3384 = vld [vmem:[%s2074 + $0xa4] sm:$0x1]
        %v3385 = vld [vmem:[%s2074 + $0xa8] sm:$0xe]
        %v3386 = vld [vmem:[%s2074 + $0xac] sm:$0xf]
        %v3387 = vld [vmem:[%s2074 + $0xb0] sm:$0x1]
        %v3388 = vld [vmem:[%s2074 + $0xb4] sm:$0xe]
        %v3389 = vld [vmem:[%s2074 + $0xb8] sm:$0xf]
        %v3390 = vld [vmem:[%s2074 + $0xbc] sm:$0x1]
        %v3439 = vrot.slane %v3343, 5
        %v3440 = vrot.slane %v3439, 4
        %v3441 = vrot.slane %v3344, 5
        %v3442 = vsel %vm1575, %v3440, %v3441
        %v3443 = vrot.slane %v3441, 4
        %v3444 = vrot.slane %v3345, 5
        %v3445 = vsel %vm1575, %v3443, %v3444
        %v3446 = vrot.slane %v3346, 5
        %v3447 = vrot.slane %v3446, 4
        %v3448 = vrot.slane %v3347, 5
        %v3449 = vsel %vm1575, %v3447, %v3448
        %v3450 = vrot.slane %v3448, 4
        %v3451 = vrot.slane %v3348, 5
        %v3452 = vsel %vm1575, %v3450, %v3451
        %v3453 = vrot.slane %v3349, 5
        %v3454 = vrot.slane %v3453, 4
        %v3455 = vrot.slane %v3350, 5
        %v3456 = vsel %vm1575, %v3454, %v3455
        %v3457 = vrot.slane %v3455, 4
        %v3458 = vrot.slane %v3351, 5
        %v3459 = vsel %vm1575, %v3457, %v3458
        %v3460 = vrot.slane %v3352, 5
        %v3461 = vrot.slane %v3460, 4
        %v3462 = vrot.slane %v3353, 5
        %v3463 = vsel %vm1575, %v3461, %v3462
        %v3464 = vrot.slane %v3462, 4
        %v3465 = vrot.slane %v3354, 5
        %v3466 = vsel %vm1575, %v3464, %v3465
        %v3467 = vrot.slane %v3355, 5
        %v3468 = vrot.slane %v3467, 4
        %v3469 = vrot.slane %v3356, 5
        %v3470 = vsel %vm1575, %v3468, %v3469
        %v3471 = vrot.slane %v3469, 4
        %v3472 = vrot.slane %v3357, 5
        %v3473 = vsel %vm1575, %v3471, %v3472
        %v3474 = vrot.slane %v3358, 5
        %v3475 = vrot.slane %v3474, 4
        %v3476 = vrot.slane %v3359, 5
        %v3477 = vsel %vm1575, %v3475, %v3476
        %v3478 = vrot.slane %v3476, 4
        %v3479 = vrot.slane %v3360, 5
        %v3480 = vsel %vm1575, %v3478, %v3479
        %v3481 = vrot.slane %v3361, 5
        %v3482 = vrot.slane %v3481, 4
        %v3483 = vrot.slane %v3362, 5
        %v3484 = vsel %vm1575, %v3482, %v3483
        %v3485 = vrot.slane %v3483, 4
        %v3486 = vrot.slane %v3363, 5
        %v3487 = vsel %vm1575, %v3485, %v3486
        %v3488 = vrot.slane %v3364, 5
        %v3489 = vrot.slane %v3488, 4
        %v3490 = vrot.slane %v3365, 5
        %v3491 = vsel %vm1575, %v3489, %v3490
        %v3492 = vrot.slane %v3490, 4
        %v3493 = vrot.slane %v3366, 5
        %v3494 = vsel %vm1575, %v3492, %v3493
        %v3495 = vrot.slane %v3367, 5
        %v3496 = vrot.slane %v3495, 4
        %v3497 = vrot.slane %v3368, 5
        %v3498 = vsel %vm1575, %v3496, %v3497
        %v3499 = vrot.slane %v3497, 4
        %v3500 = vrot.slane %v3369, 5
        %v3501 = vsel %vm1575, %v3499, %v3500
        %v3502 = vrot.slane %v3370, 5
        %v3503 = vrot.slane %v3502, 4
        %v3504 = vrot.slane %v3371, 5
        %v3505 = vsel %vm1575, %v3503, %v3504
        %v3506 = vrot.slane %v3504, 4
        %v3507 = vrot.slane %v3372, 5
        %v3508 = vsel %vm1575, %v3506, %v3507
        %v3509 = vrot.slane %v3373, 5
        %v3510 = vrot.slane %v3509, 4
        %v3511 = vrot.slane %v3374, 5
        %v3512 = vsel %vm1575, %v3510, %v3511
        %v3513 = vrot.slane %v3511, 4
        %v3514 = vrot.slane %v3375, 5
        %v3515 = vsel %vm1575, %v3513, %v3514
        %v3516 = vrot.slane %v3376, 5
        %v3517 = vrot.slane %v3516, 4
        %v3518 = vrot.slane %v3377, 5
        %v3519 = vsel %vm1575, %v3517, %v3518
        %v3520 = vrot.slane %v3518, 4
        %v3521 = vrot.slane %v3378, 5
        %v3522 = vsel %vm1575, %v3520, %v3521
        %v3523 = vrot.slane %v3379, 5
        %v3524 = vrot.slane %v3523, 4
        %v3525 = vrot.slane %v3380, 5
        %v3526 = vsel %vm1575, %v3524, %v3525
        %v3527 = vrot.slane %v3525, 4
        %v3528 = vrot.slane %v3381, 5
        %v3529 = vsel %vm1575, %v3527, %v3528
        %v3530 = vrot.slane %v3382, 5
        %v3531 = vrot.slane %v3530, 4
        %v3532 = vrot.slane %v3383, 5
        %v3533 = vsel %vm1575, %v3531, %v3532
        %v3534 = vrot.slane %v3532, 4
        %v3535 = vrot.slane %v3384, 5
        %v3536 = vsel %vm1575, %v3534, %v3535
        %v3537 = vrot.slane %v3385, 5
        %v3538 = vrot.slane %v3537, 4
        %v3539 = vrot.slane %v3386, 5
        %v3540 = vsel %vm1575, %v3538, %v3539
        %v3541 = vrot.slane %v3539, 4
        %v3542 = vrot.slane %v3387, 5
        %v3543 = vsel %vm1575, %v3541, %v3542
        %v3544 = vrot.slane %v3388, 5
        %v3545 = vrot.slane %v3544, 4
        %v3546 = vrot.slane %v3389, 5
        %v3547 = vsel %vm1575, %v3545, %v3546
        %v3548 = vrot.slane %v3546, 4
        %v3549 = vrot.slane %v3390, 5
        %v3550 = vsel %vm1575, %v3548, %v3549
        %s3551 = scalar_lea.vmem %s233, 320
        %v3552 = vld [vmem:[%s3551] sm:$0xf]
        %v3553 = vld [vmem:[%s3551 + $0x4] sm:$0xf]
        %v3554 = vld [vmem:[%s3551 + $0x8] sm:$0xf]
        %v3555 = vld [vmem:[%s3551 + $0xc] sm:$0xf]
        %v3556 = vld [vmem:[%s3551 + $0x10] sm:$0xf]
        %v3557 = vld [vmem:[%s3551 + $0x14] sm:$0xf]
        %v3558 = vld [vmem:[%s3551 + $0x18] sm:$0xf]
        %v3559 = vld [vmem:[%s3551 + $0x1c] sm:$0xf]
        %v3560 = vld [vmem:[%s3551 + $0x20] sm:$0xf]
        %v3561 = vld [vmem:[%s3551 + $0x24] sm:$0xf]
        %v3562 = vld [vmem:[%s3551 + $0x28] sm:$0xf]
        %v3563 = vld [vmem:[%s3551 + $0x2c] sm:$0xf]
        %v3564 = vld [vmem:[%s3551 + $0x30] sm:$0xf]
        %v3565 = vld [vmem:[%s3551 + $0x34] sm:$0xf]
        %v3566 = vld [vmem:[%s3551 + $0x38] sm:$0xf]
        %v3567 = vld [vmem:[%s3551 + $0x3c] sm:$0xf]
        %v3568 = vunpack.c.l.b16 %v3442
        %v3569 = vunpack.c.l.b16 %v3445
        %v3570 = vunpack.c.l.b16 %v3449
        %v3571 = vunpack.c.l.b16 %v3452
        %v3572 = vunpack.c.l.b16 %v3456
        %v3573 = vunpack.c.l.b16 %v3459
        %v3574 = vunpack.c.l.b16 %v3463
        %v3575 = vunpack.c.l.b16 %v3466
        %v3576 = vunpack.c.l.b16 %v3470
        %v3577 = vunpack.c.l.b16 %v3473
        %v3578 = vunpack.c.l.b16 %v3477
        %v3579 = vunpack.c.l.b16 %v3480
        %v3580 = vunpack.c.l.b16 %v3484
        %v3581 = vunpack.c.l.b16 %v3487
        %v3582 = vunpack.c.l.b16 %v3491
        %v3583 = vunpack.c.l.b16 %v3494
        %v3584 = vunpack.c.l.b16 %v3498
        %v3585 = vunpack.c.l.b16 %v3501
        %v3586 = vunpack.c.l.b16 %v3505
        %v3587 = vunpack.c.l.b16 %v3508
        %v3588 = vunpack.c.l.b16 %v3512
        %v3589 = vunpack.c.l.b16 %v3515
        %v3590 = vunpack.c.l.b16 %v3519
        %v3591 = vunpack.c.l.b16 %v3522
        %v3592 = vunpack.c.l.b16 %v3526
        %v3593 = vunpack.c.l.b16 %v3529
        %v3594 = vunpack.c.l.b16 %v3533
        %v3595 = vunpack.c.l.b16 %v3536
        %v3596 = vunpack.c.l.b16 %v3540
        %v3597 = vunpack.c.l.b16 %v3543
        %v3598 = vunpack.c.l.b16 %v3547
        %v3599 = vunpack.c.l.b16 %v3550
        %v3600 = vpack.c.b16 %v3569, %v3568
        %v3601 = vpack.c.b16 %v3571, %v3570
        %v3602 = vpack.c.b16 %v3573, %v3572
        %v3603 = vpack.c.b16 %v3575, %v3574
        %v3604 = vpack.c.b16 %v3577, %v3576
        %v3605 = vpack.c.b16 %v3579, %v3578
        %v3606 = vpack.c.b16 %v3581, %v3580
        %v3607 = vpack.c.b16 %v3583, %v3582
        %v3608 = vpack.c.b16 %v3585, %v3584
        %v3609 = vpack.c.b16 %v3587, %v3586
        %v3610 = vpack.c.b16 %v3589, %v3588
        %v3611 = vpack.c.b16 %v3591, %v3590
        %v3612 = vpack.c.b16 %v3593, %v3592
        %v3613 = vpack.c.b16 %v3595, %v3594
        %v3614 = vpack.c.b16 %v3597, %v3596
        %v3615 = vpack.c.b16 %v3599, %v3598
        %v3648 = vunpack.c.l.b16 %v3552
        %v3649 = vunpack.c.l.b16 %v3553
        %v3650 = vunpack.c.l.b16 %v3554
        %v3651 = vunpack.c.l.b16 %v3555
        %v3652 = vunpack.c.l.b16 %v3556
        %v3653 = vunpack.c.l.b16 %v3557
        %v3654 = vunpack.c.l.b16 %v3558
        %v3655 = vunpack.c.l.b16 %v3559
        %v3656 = vunpack.c.l.b16 %v3560
        %v3657 = vunpack.c.l.b16 %v3561
        %v3658 = vunpack.c.l.b16 %v3562
        %v3659 = vunpack.c.l.b16 %v3563
        %v3660 = vunpack.c.l.b16 %v3564
        %v3661 = vunpack.c.l.b16 %v3565
        %v3662 = vunpack.c.l.b16 %v3566
        %v3663 = vunpack.c.l.b16 %v3567
        %v3664 = vpack.c.b16 %v3649, %v3648
        %v3665 = vpack.c.b16 %v3651, %v3650
        %v3666 = vpack.c.b16 %v3653, %v3652
        %v3667 = vpack.c.b16 %v3655, %v3654
        %v3668 = vpack.c.b16 %v3657, %v3656
        %v3669 = vpack.c.b16 %v3659, %v3658
        %v3670 = vpack.c.b16 %v3661, %v3660
        %v3671 = vpack.c.b16 %v3663, %v3662
        %3680 = vmatprep.subr.bf16.mxu0 0
        %3681 = vmatpush1.bf16.msra.mxu0 %v3664
        %3682 = vmatprep.subr.bf16.mxu0 0
        %3683 = vmatpush1.bf16.msra.mxu0 %v3665
        %3684 = vmatprep.subr.bf16.mxu0 0
        %3685 = vmatpush1.bf16.msra.mxu0 %v3666
        %3686 = vmatprep.subr.bf16.mxu0 0
        %3687 = vmatpush1.bf16.msra.mxu0 %v3667
        %3688 = vmatprep.subr.bf16.mxu0 0
        %3689 = vmatpush1.bf16.msra.mxu0 %v3668
        %3690 = vmatprep.subr.bf16.mxu0 0
        %3691 = vmatpush1.bf16.msra.mxu0 %v3669
        %3692 = vmatprep.subr.bf16.mxu0 0
        %3693 = vmatpush1.bf16.msra.mxu0 %v3670
        %3694 = vmatprep.subr.bf16.mxu0 0
        %3695 = vmatpush1.bf16.msra.mxu0 %v3671
        %3696 = vmatprep.subr.bf16.mxu0 0
        %3697 = vmatpush1.bf16.msra.mxu0 0
        %3698 = vmatprep.subr.bf16.mxu0 0
        %3699 = vmatpush1.bf16.msra.mxu0 0
        %3700 = vmatprep.subr.bf16.mxu0 0
        %3701 = vmatpush1.bf16.msra.mxu0 0
        %3702 = vmatprep.subr.bf16.mxu0 0
        %3703 = vmatpush1.bf16.msra.mxu0 0
        %3704 = vmatprep.subr.bf16.mxu0 0
        %3705 = vmatpush1.bf16.msra.mxu0 0
        %3706 = vmatprep.subr.bf16.mxu0 0
        %3707 = vmatpush1.bf16.msra.mxu0 0
        %3708 = vmatprep.subr.bf16.mxu0 0
        %3709 = vmatpush1.bf16.msra.mxu0 0
        %3710 = vmatprep.subr.bf16.mxu0 0
        %3711 = vmatpush1.bf16.msra.mxu0 0
        %3712 = vmatprep.mubr.bf16.mxu0 0
        %3713 = vmatmul.mubr.bf16.gmra.mrb[0].mxu0 %v3600
        %v3714 = vpop.f32.mrb[0].mxu0
        %v3715 = vadd.f32 0.0, %v3714
        %v3716 = vpop.f32.mrb[0].mxu0
        %v3717 = vpop.f32.mrb[0].mxu0
        %v3718 = vadd.f32 0.0, %v3717
        %v3719 = vpop.f32.mrb[0].mxu0
        %3720 = vmatprep.mubr.bf16.mxu0 0
        %3721 = vmatmul.mubr.bf16.gmra.mrb[0].mxu0 %v3601
        %v3722 = vpop.f32.mrb[0].mxu0
        %v3723 = vadd.f32 0.0, %v3722
        %v3724 = vpop.f32.mrb[0].mxu0
        %v3725 = vpop.f32.mrb[0].mxu0
        %v3726 = vadd.f32 0.0, %v3725
        %v3727 = vpop.f32.mrb[0].mxu0
        %3728 = vmatprep.mubr.bf16.mxu0 0
        %3729 = vmatmul.mubr.bf16.gmra.mrb[0].mxu0 %v3602
        %v3730 = vpop.f32.mrb[0].mxu0
        %v3731 = vadd.f32 0.0, %v3730
        %v3732 = vpop.f32.mrb[0].mxu0
        %v3733 = vpop.f32.mrb[0].mxu0
        %v3734 = vadd.f32 0.0, %v3733
        %v3735 = vpop.f32.mrb[0].mxu0
        %3736 = vmatprep.mubr.bf16.mxu0 0
        %3737 = vmatmul.mubr.bf16.gmra.mrb[0].mxu0 %v3603
        %v3738 = vpop.f32.mrb[0].mxu0
        %v3739 = vadd.f32 0.0, %v3738
        %v3740 = vpop.f32.mrb[0].mxu0
        %v3741 = vpop.f32.mrb[0].mxu0
        %v3742 = vadd.f32 0.0, %v3741
        %v3743 = vpop.f32.mrb[0].mxu0
        %3744 = vmatprep.mubr.bf16.mxu0 0
        %3745 = vmatmul.mubr.bf16.gmra.mrb[0].mxu0 %v3604
        %v3746 = vpop.f32.mrb[0].mxu0
        %v3747 = vadd.f32 0.0, %v3746
        %v3748 = vpop.f32.mrb[0].mxu0
        %v3749 = vpop.f32.mrb[0].mxu0
        %v3750 = vadd.f32 0.0, %v3749
        %v3751 = vpop.f32.mrb[0].mxu0
        %3752 = vmatprep.mubr.bf16.mxu0 0
        %3753 = vmatmul.mubr.bf16.gmra.mrb[0].mxu0 %v3605
        %v3754 = vpop.f32.mrb[0].mxu0
        %v3755 = vadd.f32 0.0, %v3754
        %v3756 = vpop.f32.mrb[0].mxu0
        %v3757 = vpop.f32.mrb[0].mxu0
        %v3758 = vadd.f32 0.0, %v3757
        %v3759 = vpop.f32.mrb[0].mxu0
        %3760 = vmatprep.mubr.bf16.mxu0 0
        %3761 = vmatmul.mubr.bf16.gmra.mrb[0].mxu0 %v3606
        %v3762 = vpop.f32.mrb[0].mxu0
        %v3763 = vadd.f32 0.0, %v3762
        %v3764 = vpop.f32.mrb[0].mxu0
        %v3765 = vpop.f32.mrb[0].mxu0
        %v3766 = vadd.f32 0.0, %v3765
        %v3767 = vpop.f32.mrb[0].mxu0
        %3768 = vmatprep.mubr.bf16.mxu0 0
        %3769 = vmatmul.mubr.bf16.gmra.mrb[0].mxu0 %v3607
        %v3770 = vpop.f32.mrb[0].mxu0
        %v3771 = vadd.f32 0.0, %v3770
        %v3772 = vpop.f32.mrb[0].mxu0
        %v3773 = vpop.f32.mrb[0].mxu0
        %v3774 = vadd.f32 0.0, %v3773
        %v3775 = vpop.f32.mrb[0].mxu0
        %3776 = vmatprep.mubr.bf16.mxu0 0
        %3777 = vmatmul.mubr.bf16.gmra.mrb[0].mxu0 %v3608
        %v3778 = vpop.f32.mrb[0].mxu0
        %v3779 = vadd.f32 0.0, %v3778
        %v3780 = vpop.f32.mrb[0].mxu0
        %v3781 = vpop.f32.mrb[0].mxu0
        %v3782 = vadd.f32 0.0, %v3781
        %v3783 = vpop.f32.mrb[0].mxu0
        %3784 = vmatprep.mubr.bf16.mxu0 0
        %3785 = vmatmul.mubr.bf16.gmra.mrb[0].mxu0 %v3609
        %v3786 = vpop.f32.mrb[0].mxu0
        %v3787 = vadd.f32 0.0, %v3786
        %v3788 = vpop.f32.mrb[0].mxu0
        %v3789 = vpop.f32.mrb[0].mxu0
        %v3790 = vadd.f32 0.0, %v3789
        %v3791 = vpop.f32.mrb[0].mxu0
        %3792 = vmatprep.mubr.bf16.mxu0 0
        %3793 = vmatmul.mubr.bf16.gmra.mrb[0].mxu0 %v3610
        %v3794 = vpop.f32.mrb[0].mxu0
        %v3795 = vadd.f32 0.0, %v3794
        %v3796 = vpop.f32.mrb[0].mxu0
        %v3797 = vpop.f32.mrb[0].mxu0
        %v3798 = vadd.f32 0.0, %v3797
        %v3799 = vpop.f32.mrb[0].mxu0
        %3800 = vmatprep.mubr.bf16.mxu0 0
        %3801 = vmatmul.mubr.bf16.gmra.mrb[0].mxu0 %v3611
        %v3802 = vpop.f32.mrb[0].mxu0
        %v3803 = vadd.f32 0.0, %v3802
        %v3804 = vpop.f32.mrb[0].mxu0
        %v3805 = vpop.f32.mrb[0].mxu0
        %v3806 = vadd.f32 0.0, %v3805
        %v3807 = vpop.f32.mrb[0].mxu0
        %3808 = vmatprep.mubr.bf16.mxu0 0
        %3809 = vmatmul.mubr.bf16.gmra.mrb[0].mxu0 %v3612
        %v3810 = vpop.f32.mrb[0].mxu0
        %v3811 = vadd.f32 0.0, %v3810
        %v3812 = vpop.f32.mrb[0].mxu0
        %v3813 = vpop.f32.mrb[0].mxu0
        %v3814 = vadd.f32 0.0, %v3813
        %v3815 = vpop.f32.mrb[0].mxu0
        %3816 = vmatprep.mubr.bf16.mxu0 0
        %3817 = vmatmul.mubr.bf16.gmra.mrb[0].mxu0 %v3613
        %v3818 = vpop.f32.mrb[0].mxu0
        %v3819 = vadd.f32 0.0, %v3818
        %v3820 = vpop.f32.mrb[0].mxu0
        %v3821 = vpop.f32.mrb[0].mxu0
        %v3822 = vadd.f32 0.0, %v3821
        %v3823 = vpop.f32.mrb[0].mxu0
        %3824 = vmatprep.mubr.bf16.mxu0 0
        %3825 = vmatmul.mubr.bf16.gmra.mrb[0].mxu0 %v3614
        %v3826 = vpop.f32.mrb[0].mxu0
        %v3827 = vadd.f32 0.0, %v3826
        %v3828 = vpop.f32.mrb[0].mxu0
        %v3829 = vpop.f32.mrb[0].mxu0
        %v3830 = vadd.f32 0.0, %v3829
        %v3831 = vpop.f32.mrb[0].mxu0
        %3832 = vmatprep.mubr.bf16.mxu0 0
        %3833 = vmatmul.mubr.bf16.gmra.mrb[0].mxu0 %v3615
        %v3834 = vpop.f32.mrb[0].mxu0
        %v3835 = vadd.f32 0.0, %v3834
        %v3836 = vpop.f32.mrb[0].mxu0
        %v3837 = vpop.f32.mrb[0].mxu0
        %v3838 = vadd.f32 0.0, %v3837
        %v3839 = vpop.f32.mrb[0].mxu0
        %3840 = vdwg.mxu0
        %v3841 = vadd.f32 %v3311, %v3715
        %v3842 = vadd.f32 %v3312, %v3718
        %v3843 = vadd.f32 %v3313, %v3723
        %v3844 = vadd.f32 %v3314, %v3726
        %v3845 = vadd.f32 %v3315, %v3731
        %v3846 = vadd.f32 %v3316, %v3734
        %v3847 = vadd.f32 %v3317, %v3739
        %v3848 = vadd.f32 %v3318, %v3742
        %v3849 = vadd.f32 %v3319, %v3747
        %v3850 = vadd.f32 %v3320, %v3750
        %v3851 = vadd.f32 %v3321, %v3755
        %v3852 = vadd.f32 %v3322, %v3758
        %v3853 = vadd.f32 %v3323, %v3763
        %v3854 = vadd.f32 %v3324, %v3766
        %v3855 = vadd.f32 %v3325, %v3771
        %v3856 = vadd.f32 %v3326, %v3774
        %v3857 = vadd.f32 %v3327, %v3779
        %v3858 = vadd.f32 %v3328, %v3782
        %v3859 = vadd.f32 %v3329, %v3787
        %v3860 = vadd.f32 %v3330, %v3790
        %v3861 = vadd.f32 %v3331, %v3795
        %v3862 = vadd.f32 %v3332, %v3798
        %v3863 = vadd.f32 %v3333, %v3803
        %v3864 = vadd.f32 %v3334, %v3806
        %v3865 = vadd.f32 %v3335, %v3811
        %v3866 = vadd.f32 %v3336, %v3814
        %v3867 = vadd.f32 %v3337, %v3819
        %v3868 = vadd.f32 %v3338, %v3822
        %v3869 = vadd.f32 %v3339, %v3827
        %v3870 = vadd.f32 %v3340, %v3830
        %v3871 = vadd.f32 %v3341, %v3835
        %v3872 = vadd.f32 %v3342, %v3838
        %3873 = vst [vmem:[#allocation2] sm:$0xff] %v3841
        %3874 = vst [vmem:[#allocation2 + $0x8] sm:$0xff] %v3842
        %3875 = vst [vmem:[#allocation2 + $0x10] sm:$0xff] %v3843
        %3876 = vst [vmem:[#allocation2 + $0x18] sm:$0xff] %v3844
        %3877 = vst [vmem:[#allocation2 + $0x20] sm:$0xff] %v3845
        %3878 = vst [vmem:[#allocation2 + $0x28] sm:$0xff] %v3846
        %3879 = vst [vmem:[#allocation2 + $0x30] sm:$0xff] %v3847
        %3880 = vst [vmem:[#allocation2 + $0x38] sm:$0xff] %v3848
        %3881 = vst [vmem:[#allocation2 + $0x40] sm:$0xff] %v3849
        %3882 = vst [vmem:[#allocation2 + $0x48] sm:$0xff] %v3850
        %3883 = vst [vmem:[#allocation2 + $0x50] sm:$0xff] %v3851
        %3884 = vst [vmem:[#allocation2 + $0x58] sm:$0xff] %v3852
        %3885 = vst [vmem:[#allocation2 + $0x60] sm:$0xff] %v3853
        %3886 = vst [vmem:[#allocation2 + $0x68] sm:$0xff] %v3854
        %3887 = vst [vmem:[#allocation2 + $0x70] sm:$0xff] %v3855
        %3888 = vst [vmem:[#allocation2 + $0x78] sm:$0xff] %v3856
        %3889 = vst [vmem:[#allocation2 + $0x80] sm:$0xff] %v3857
        %3890 = vst [vmem:[#allocation2 + $0x88] sm:$0xff] %v3858
        %3891 = vst [vmem:[#allocation2 + $0x90] sm:$0xff] %v3859
        %3892 = vst [vmem:[#allocation2 + $0x98] sm:$0xff] %v3860
        %3893 = vst [vmem:[#allocation2 + $0xa0] sm:$0xff] %v3861
        %3894 = vst [vmem:[#allocation2 + $0xa8] sm:$0xff] %v3862
        %3895 = vst [vmem:[#allocation2 + $0xb0] sm:$0xff] %v3863
        %3896 = vst [vmem:[#allocation2 + $0xb8] sm:$0xff] %v3864
        %3897 = vst [vmem:[#allocation2 + $0xc0] sm:$0xff] %v3865
        %3898 = vst [vmem:[#allocation2 + $0xc8] sm:$0xff] %v3866
        %3899 = vst [vmem:[#allocation2 + $0xd0] sm:$0xff] %v3867
        %3900 = vst [vmem:[#allocation2 + $0xd8] sm:$0xff] %v3868
        %3901 = vst [vmem:[#allocation2 + $0xe0] sm:$0xff] %v3869
        %3902 = vst [vmem:[#allocation2 + $0xe8] sm:$0xff] %v3870
        %3903 = vst [vmem:[#allocation2 + $0xf0] sm:$0xff] %v3871
        %3904 = vst [vmem:[#allocation2 + $0xf8] sm:$0xff] %v3872
        %v3905 = vld [vmem:[#allocation2] sm:$0xff]
        %v3906 = vld [vmem:[#allocation2 + $0x8] sm:$0xff]
        %v3907 = vld [vmem:[#allocation2 + $0x10] sm:$0xff]
        %v3908 = vld [vmem:[#allocation2 + $0x18] sm:$0xff]
        %v3909 = vld [vmem:[#allocation2 + $0x20] sm:$0xff]
        %v3910 = vld [vmem:[#allocation2 + $0x28] sm:$0xff]
        %v3911 = vld [vmem:[#allocation2 + $0x30] sm:$0xff]
        %v3912 = vld [vmem:[#allocation2 + $0x38] sm:$0xff]
        %v3913 = vld [vmem:[#allocation2 + $0x40] sm:$0xff]
        %v3914 = vld [vmem:[#allocation2 + $0x48] sm:$0xff]
        %v3915 = vld [vmem:[#allocation2 + $0x50] sm:$0xff]
        %v3916 = vld [vmem:[#allocation2 + $0x58] sm:$0xff]
        %v3917 = vld [vmem:[#allocation2 + $0x60] sm:$0xff]
        %v3918 = vld [vmem:[#allocation2 + $0x68] sm:$0xff]
        %v3919 = vld [vmem:[#allocation2 + $0x70] sm:$0xff]
        %v3920 = vld [vmem:[#allocation2 + $0x78] sm:$0xff]
        %v3921 = vld [vmem:[#allocation2 + $0x80] sm:$0xff]
        %v3922 = vld [vmem:[#allocation2 + $0x88] sm:$0xff]
        %v3923 = vld [vmem:[#allocation2 + $0x90] sm:$0xff]
        %v3924 = vld [vmem:[#allocation2 + $0x98] sm:$0xff]
        %v3925 = vld [vmem:[#allocation2 + $0xa0] sm:$0xff]
        %v3926 = vld [vmem:[#allocation2 + $0xa8] sm:$0xff]
        %v3927 = vld [vmem:[#allocation2 + $0xb0] sm:$0xff]
        %v3928 = vld [vmem:[#allocation2 + $0xb8] sm:$0xff]
        %v3929 = vld [vmem:[#allocation2 + $0xc0] sm:$0xff]
        %v3930 = vld [vmem:[#allocation2 + $0xc8] sm:$0xff]
        %v3931 = vld [vmem:[#allocation2 + $0xd0] sm:$0xff]
        %v3932 = vld [vmem:[#allocation2 + $0xd8] sm:$0xff]
        %v3933 = vld [vmem:[#allocation2 + $0xe0] sm:$0xff]
        %v3934 = vld [vmem:[#allocation2 + $0xe8] sm:$0xff]
        %v3935 = vld [vmem:[#allocation2 + $0xf0] sm:$0xff]
        %v3936 = vld [vmem:[#allocation2 + $0xf8] sm:$0xff]
        %s3937 = scalar_lea.vmem %s229, 24
        %v3938 = vld [vmem:[%s3937] sm:$0xf]
        %v3939 = vld [vmem:[%s3937 + $0x4] sm:$0xf]
        %v3940 = vld [vmem:[%s3937 + $0xc] sm:$0xf]
        %v3941 = vld [vmem:[%s3937 + $0x10] sm:$0xf]
        %v3942 = vld [vmem:[%s3937 + $0x18] sm:$0xf]
        %v3943 = vld [vmem:[%s3937 + $0x1c] sm:$0xf]
        %v3944 = vld [vmem:[%s3937 + $0x24] sm:$0xf]
        %v3945 = vld [vmem:[%s3937 + $0x28] sm:$0xf]
        %v3946 = vld [vmem:[%s3937 + $0x30] sm:$0xf]
        %v3947 = vld [vmem:[%s3937 + $0x34] sm:$0xf]
        %v3948 = vld [vmem:[%s3937 + $0x3c] sm:$0xf]
        %v3949 = vld [vmem:[%s3937 + $0x40] sm:$0xf]
        %v3950 = vld [vmem:[%s3937 + $0x48] sm:$0xf]
        %v3951 = vld [vmem:[%s3937 + $0x4c] sm:$0xf]
        %v3952 = vld [vmem:[%s3937 + $0x54] sm:$0xf]
        %v3953 = vld [vmem:[%s3937 + $0x58] sm:$0xf]
        %v3954 = vld [vmem:[%s3937 + $0x60] sm:$0xf]
        %v3955 = vld [vmem:[%s3937 + $0x64] sm:$0xf]
        %v3956 = vld [vmem:[%s3937 + $0x6c] sm:$0xf]
        %v3957 = vld [vmem:[%s3937 + $0x70] sm:$0xf]
        %v3958 = vld [vmem:[%s3937 + $0x78] sm:$0xf]
        %v3959 = vld [vmem:[%s3937 + $0x7c] sm:$0xf]
        %v3960 = vld [vmem:[%s3937 + $0x84] sm:$0xf]
        %v3961 = vld [vmem:[%s3937 + $0x88] sm:$0xf]
        %v3962 = vld [vmem:[%s3937 + $0x90] sm:$0xf]
        %v3963 = vld [vmem:[%s3937 + $0x94] sm:$0xf]
        %v3964 = vld [vmem:[%s3937 + $0x9c] sm:$0xf]
        %v3965 = vld [vmem:[%s3937 + $0xa0] sm:$0xf]
        %v3966 = vld [vmem:[%s3937 + $0xa8] sm:$0xf]
        %v3967 = vld [vmem:[%s3937 + $0xac] sm:$0xf]
        %v3968 = vld [vmem:[%s3937 + $0xb4] sm:$0xf]
        %v3969 = vld [vmem:[%s3937 + $0xb8] sm:$0xf]
        %s3970 = scalar_lea.vmem %s233, 384
        %v3971 = vld [vmem:[%s3970] sm:$0xf]
        %v3972 = vld [vmem:[%s3970 + $0x4] sm:$0xf]
        %v3973 = vld [vmem:[%s3970 + $0x8] sm:$0xf]
        %v3974 = vld [vmem:[%s3970 + $0xc] sm:$0xf]
        %v3975 = vld [vmem:[%s3970 + $0x10] sm:$0xf]
        %v3976 = vld [vmem:[%s3970 + $0x14] sm:$0xf]
        %v3977 = vld [vmem:[%s3970 + $0x18] sm:$0xf]
        %v3978 = vld [vmem:[%s3970 + $0x1c] sm:$0xf]
        %v3979 = vld [vmem:[%s3970 + $0x20] sm:$0xf]
        %v3980 = vld [vmem:[%s3970 + $0x24] sm:$0xf]
        %v3981 = vld [vmem:[%s3970 + $0x28] sm:$0xf]
        %v3982 = vld [vmem:[%s3970 + $0x2c] sm:$0xf]
        %v3983 = vld [vmem:[%s3970 + $0x30] sm:$0xf]
        %v3984 = vld [vmem:[%s3970 + $0x34] sm:$0xf]
        %v3985 = vld [vmem:[%s3970 + $0x38] sm:$0xf]
        %v3986 = vld [vmem:[%s3970 + $0x3c] sm:$0xf]
        %v4019 = vunpack.c.l.b16 %v3938
        %v4020 = vunpack.c.l.b16 %v3939
        %v4021 = vunpack.c.l.b16 %v3940
        %v4022 = vunpack.c.l.b16 %v3941
        %v4023 = vunpack.c.l.b16 %v3942
        %v4024 = vunpack.c.l.b16 %v3943
        %v4025 = vunpack.c.l.b16 %v3944
        %v4026 = vunpack.c.l.b16 %v3945
        %v4027 = vunpack.c.l.b16 %v3946
        %v4028 = vunpack.c.l.b16 %v3947
        %v4029 = vunpack.c.l.b16 %v3948
        %v4030 = vunpack.c.l.b16 %v3949
        %v4031 = vunpack.c.l.b16 %v3950
        %v4032 = vunpack.c.l.b16 %v3951
        %v4033 = vunpack.c.l.b16 %v3952
        %v4034 = vunpack.c.l.b16 %v3953
        %v4035 = vunpack.c.l.b16 %v3954
        %v4036 = vunpack.c.l.b16 %v3955
        %v4037 = vunpack.c.l.b16 %v3956
        %v4038 = vunpack.c.l.b16 %v3957
        %v4039 = vunpack.c.l.b16 %v3958
        %v4040 = vunpack.c.l.b16 %v3959
        %v4041 = vunpack.c.l.b16 %v3960
        %v4042 = vunpack.c.l.b16 %v3961
        %v4043 = vunpack.c.l.b16 %v3962
        %v4044 = vunpack.c.l.b16 %v3963
        %v4045 = vunpack.c.l.b16 %v3964
        %v4046 = vunpack.c.l.b16 %v3965
        %v4047 = vunpack.c.l.b16 %v3966
        %v4048 = vunpack.c.l.b16 %v3967
        %v4049 = vunpack.c.l.b16 %v3968
        %v4050 = vunpack.c.l.b16 %v3969
        %v4051 = vpack.c.b16 %v4020, %v4019
        %v4052 = vpack.c.b16 %v4022, %v4021
        %v4053 = vpack.c.b16 %v4024, %v4023
        %v4054 = vpack.c.b16 %v4026, %v4025
        %v4055 = vpack.c.b16 %v4028, %v4027
        %v4056 = vpack.c.b16 %v4030, %v4029
        %v4057 = vpack.c.b16 %v4032, %v4031
        %v4058 = vpack.c.b16 %v4034, %v4033
        %v4059 = vpack.c.b16 %v4036, %v4035
        %v4060 = vpack.c.b16 %v4038, %v4037
        %v4061 = vpack.c.b16 %v4040, %v4039
        %v4062 = vpack.c.b16 %v4042, %v4041
        %v4063 = vpack.c.b16 %v4044, %v4043
        %v4064 = vpack.c.b16 %v4046, %v4045
        %v4065 = vpack.c.b16 %v4048, %v4047
        %v4066 = vpack.c.b16 %v4050, %v4049
        %v4099 = vunpack.c.l.b16 %v3971
        %v4100 = vunpack.c.l.b16 %v3972
        %v4101 = vunpack.c.l.b16 %v3973
        %v4102 = vunpack.c.l.b16 %v3974
        %v4103 = vunpack.c.l.b16 %v3975
        %v4104 = vunpack.c.l.b16 %v3976
        %v4105 = vunpack.c.l.b16 %v3977
        %v4106 = vunpack.c.l.b16 %v3978
        %v4107 = vunpack.c.l.b16 %v3979
        %v4108 = vunpack.c.l.b16 %v3980
        %v4109 = vunpack.c.l.b16 %v3981
        %v4110 = vunpack.c.l.b16 %v3982
        %v4111 = vunpack.c.l.b16 %v3983
        %v4112 = vunpack.c.l.b16 %v3984
        %v4113 = vunpack.c.l.b16 %v3985
        %v4114 = vunpack.c.l.b16 %v3986
        %v4115 = vpack.c.b16 %v4100, %v4099
        %v4116 = vpack.c.b16 %v4102, %v4101
        %v4117 = vpack.c.b16 %v4104, %v4103
        %v4118 = vpack.c.b16 %v4106, %v4105
        %v4119 = vpack.c.b16 %v4108, %v4107
        %v4120 = vpack.c.b16 %v4110, %v4109
        %v4121 = vpack.c.b16 %v4112, %v4111
        %v4122 = vpack.c.b16 %v4114, %v4113
        %4131 = vmatprep.subr.bf16.mxu0 0
        %4132 = vmatpush1.bf16.msra.mxu0 %v4115
        %4133 = vmatprep.subr.bf16.mxu0 0
        %4134 = vmatpush1.bf16.msra.mxu0 %v4116
        %4135 = vmatprep.subr.bf16.mxu0 0
        %4136 = vmatpush1.bf16.msra.mxu0 %v4117
        %4137 = vmatprep.subr.bf16.mxu0 0
        %4138 = vmatpush1.bf16.msra.mxu0 %v4118
        %4139 = vmatprep.subr.bf16.mxu0 0
        %4140 = vmatpush1.bf16.msra.mxu0 %v4119
        %4141 = vmatprep.subr.bf16.mxu0 0
        %4142 = vmatpush1.bf16.msra.mxu0 %v4120
        %4143 = vmatprep.subr.bf16.mxu0 0
        %4144 = vmatpush1.bf16.msra.mxu0 %v4121
        %4145 = vmatprep.subr.bf16.mxu0 0
        %4146 = vmatpush1.bf16.msra.mxu0 %v4122
        %4147 = vmatprep.subr.bf16.mxu0 0
        %4148 = vmatpush1.bf16.msra.mxu0 0
        %4149 = vmatprep.subr.bf16.mxu0 0
        %4150 = vmatpush1.bf16.msra.mxu0 0
        %4151 = vmatprep.subr.bf16.mxu0 0
        %4152 = vmatpush1.bf16.msra.mxu0 0
        %4153 = vmatprep.subr.bf16.mxu0 0
        %4154 = vmatpush1.bf16.msra.mxu0 0
        %4155 = vmatprep.subr.bf16.mxu0 0
        %4156 = vmatpush1.bf16.msra.mxu0 0
        %4157 = vmatprep.subr.bf16.mxu0 0
        %4158 = vmatpush1.bf16.msra.mxu0 0
        %4159 = vmatprep.subr.bf16.mxu0 0
        %4160 = vmatpush1.bf16.msra.mxu0 0
        %4161 = vmatprep.subr.bf16.mxu0 0
        %4162 = vmatpush1.bf16.msra.mxu0 0
        %4163 = vmatprep.mubr.bf16.mxu0 0
        %4164 = vmatmul.mubr.bf16.gmra.mrb[0].mxu0 %v4051
        %v4165 = vpop.f32.mrb[0].mxu0
        %v4166 = vadd.f32 0.0, %v4165
        %v4167 = vpop.f32.mrb[0].mxu0
        %v4168 = vpop.f32.mrb[0].mxu0
        %v4169 = vadd.f32 0.0, %v4168
        %v4170 = vpop.f32.mrb[0].mxu0
        %4171 = vmatprep.mubr.bf16.mxu0 0
        %4172 = vmatmul.mubr.bf16.gmra.mrb[0].mxu0 %v4052
        %v4173 = vpop.f32.mrb[0].mxu0
        %v4174 = vadd.f32 0.0, %v4173
        %v4175 = vpop.f32.mrb[0].mxu0
        %v4176 = vpop.f32.mrb[0].mxu0
        %v4177 = vadd.f32 0.0, %v4176
        %v4178 = vpop.f32.mrb[0].mxu0
        %4179 = vmatprep.mubr.bf16.mxu0 0
        %4180 = vmatmul.mubr.bf16.gmra.mrb[0].mxu0 %v4053
        %v4181 = vpop.f32.mrb[0].mxu0
        %v4182 = vadd.f32 0.0, %v4181
        %v4183 = vpop.f32.mrb[0].mxu0
        %v4184 = vpop.f32.mrb[0].mxu0
        %v4185 = vadd.f32 0.0, %v4184
        %v4186 = vpop.f32.mrb[0].mxu0
        %4187 = vmatprep.mubr.bf16.mxu0 0
        %4188 = vmatmul.mubr.bf16.gmra.mrb[0].mxu0 %v4054
        %v4189 = vpop.f32.mrb[0].mxu0
        %v4190 = vadd.f32 0.0, %v4189
        %v4191 = vpop.f32.mrb[0].mxu0
        %v4192 = vpop.f32.mrb[0].mxu0
        %v4193 = vadd.f32 0.0, %v4192
        %v4194 = vpop.f32.mrb[0].mxu0
        %4195 = vmatprep.mubr.bf16.mxu0 0
        %4196 = vmatmul.mubr.bf16.gmra.mrb[0].mxu0 %v4055
        %v4197 = vpop.f32.mrb[0].mxu0
        %v4198 = vadd.f32 0.0, %v4197
        %v4199 = vpop.f32.mrb[0].mxu0
        %v4200 = vpop.f32.mrb[0].mxu0
        %v4201 = vadd.f32 0.0, %v4200
        %v4202 = vpop.f32.mrb[0].mxu0
        %4203 = vmatprep.mubr.bf16.mxu0 0
        %4204 = vmatmul.mubr.bf16.gmra.mrb[0].mxu0 %v4056
        %v4205 = vpop.f32.mrb[0].mxu0
        %v4206 = vadd.f32 0.0, %v4205
        %v4207 = vpop.f32.mrb[0].mxu0
        %v4208 = vpop.f32.mrb[0].mxu0
        %v4209 = vadd.f32 0.0, %v4208
        %v4210 = vpop.f32.mrb[0].mxu0
        %4211 = vmatprep.mubr.bf16.mxu0 0
        %4212 = vmatmul.mubr.bf16.gmra.mrb[0].mxu0 %v4057
        %v4213 = vpop.f32.mrb[0].mxu0
        %v4214 = vadd.f32 0.0, %v4213
        %v4215 = vpop.f32.mrb[0].mxu0
        %v4216 = vpop.f32.mrb[0].mxu0
        %v4217 = vadd.f32 0.0, %v4216
        %v4218 = vpop.f32.mrb[0].mxu0
        %4219 = vmatprep.mubr.bf16.mxu0 0
        %4220 = vmatmul.mubr.bf16.gmra.mrb[0].mxu0 %v4058
        %v4221 = vpop.f32.mrb[0].mxu0
        %v4222 = vadd.f32 0.0, %v4221
        %v4223 = vpop.f32.mrb[0].mxu0
        %v4224 = vpop.f32.mrb[0].mxu0
        %v4225 = vadd.f32 0.0, %v4224
        %v4226 = vpop.f32.mrb[0].mxu0
        %4227 = vmatprep.mubr.bf16.mxu0 0
        %4228 = vmatmul.mubr.bf16.gmra.mrb[0].mxu0 %v4059
        %v4229 = vpop.f32.mrb[0].mxu0
        %v4230 = vadd.f32 0.0, %v4229
        %v4231 = vpop.f32.mrb[0].mxu0
        %v4232 = vpop.f32.mrb[0].mxu0
        %v4233 = vadd.f32 0.0, %v4232
        %v4234 = vpop.f32.mrb[0].mxu0
        %4235 = vmatprep.mubr.bf16.mxu0 0
        %4236 = vmatmul.mubr.bf16.gmra.mrb[0].mxu0 %v4060
        %v4237 = vpop.f32.mrb[0].mxu0
        %v4238 = vadd.f32 0.0, %v4237
        %v4239 = vpop.f32.mrb[0].mxu0
        %v4240 = vpop.f32.mrb[0].mxu0
        %v4241 = vadd.f32 0.0, %v4240
        %v4242 = vpop.f32.mrb[0].mxu0
        %4243 = vmatprep.mubr.bf16.mxu0 0
        %4244 = vmatmul.mubr.bf16.gmra.mrb[0].mxu0 %v4061
        %v4245 = vpop.f32.mrb[0].mxu0
        %v4246 = vadd.f32 0.0, %v4245
        %v4247 = vpop.f32.mrb[0].mxu0
        %v4248 = vpop.f32.mrb[0].mxu0
        %v4249 = vadd.f32 0.0, %v4248
        %v4250 = vpop.f32.mrb[0].mxu0
        %4251 = vmatprep.mubr.bf16.mxu0 0
        %4252 = vmatmul.mubr.bf16.gmra.mrb[0].mxu0 %v4062
        %v4253 = vpop.f32.mrb[0].mxu0
        %v4254 = vadd.f32 0.0, %v4253
        %v4255 = vpop.f32.mrb[0].mxu0
        %v4256 = vpop.f32.mrb[0].mxu0
        %v4257 = vadd.f32 0.0, %v4256
        %v4258 = vpop.f32.mrb[0].mxu0
        %4259 = vmatprep.mubr.bf16.mxu0 0
        %4260 = vmatmul.mubr.bf16.gmra.mrb[0].mxu0 %v4063
        %v4261 = vpop.f32.mrb[0].mxu0
        %v4262 = vadd.f32 0.0, %v4261
        %v4263 = vpop.f32.mrb[0].mxu0
        %v4264 = vpop.f32.mrb[0].mxu0
        %v4265 = vadd.f32 0.0, %v4264
        %v4266 = vpop.f32.mrb[0].mxu0
        %4267 = vmatprep.mubr.bf16.mxu0 0
        %4268 = vmatmul.mubr.bf16.gmra.mrb[0].mxu0 %v4064
        %v4269 = vpop.f32.mrb[0].mxu0
        %v4270 = vadd.f32 0.0, %v4269
        %v4271 = vpop.f32.mrb[0].mxu0
        %v4272 = vpop.f32.mrb[0].mxu0
        %v4273 = vadd.f32 0.0, %v4272
        %v4274 = vpop.f32.mrb[0].mxu0
        %4275 = vmatprep.mubr.bf16.mxu0 0
        %4276 = vmatmul.mubr.bf16.gmra.mrb[0].mxu0 %v4065
        %v4277 = vpop.f32.mrb[0].mxu0
        %v4278 = vadd.f32 0.0, %v4277
        %v4279 = vpop.f32.mrb[0].mxu0
        %v4280 = vpop.f32.mrb[0].mxu0
        %v4281 = vadd.f32 0.0, %v4280
        %v4282 = vpop.f32.mrb[0].mxu0
        %4283 = vmatprep.mubr.bf16.mxu0 0
        %4284 = vmatmul.mubr.bf16.gmra.mrb[0].mxu0 %v4066
        %v4285 = vpop.f32.mrb[0].mxu0
        %v4286 = vadd.f32 0.0, %v4285
        %v4287 = vpop.f32.mrb[0].mxu0
        %v4288 = vpop.f32.mrb[0].mxu0
        %v4289 = vadd.f32 0.0, %v4288
        %v4290 = vpop.f32.mrb[0].mxu0
        %4291 = vdwg.mxu0
        %v4292 = vadd.f32 %v3905, %v4166
        %v4293 = vadd.f32 %v3906, %v4169
        %v4294 = vadd.f32 %v3907, %v4174
        %v4295 = vadd.f32 %v3908, %v4177
        %v4296 = vadd.f32 %v3909, %v4182
        %v4297 = vadd.f32 %v3910, %v4185
        %v4298 = vadd.f32 %v3911, %v4190
        %v4299 = vadd.f32 %v3912, %v4193
        %v4300 = vadd.f32 %v3913, %v4198
        %v4301 = vadd.f32 %v3914, %v4201
        %v4302 = vadd.f32 %v3915, %v4206
        %v4303 = vadd.f32 %v3916, %v4209
        %v4304 = vadd.f32 %v3917, %v4214
        %v4305 = vadd.f32 %v3918, %v4217
        %v4306 = vadd.f32 %v3919, %v4222
        %v4307 = vadd.f32 %v3920, %v4225
        %v4308 = vadd.f32 %v3921, %v4230
        %v4309 = vadd.f32 %v3922, %v4233
        %v4310 = vadd.f32 %v3923, %v4238
        %v4311 = vadd.f32 %v3924, %v4241
        %v4312 = vadd.f32 %v3925, %v4246
        %v4313 = vadd.f32 %v3926, %v4249
        %v4314 = vadd.f32 %v3927, %v4254
        %v4315 = vadd.f32 %v3928, %v4257
        %v4316 = vadd.f32 %v3929, %v4262
        %v4317 = vadd.f32 %v3930, %v4265
        %v4318 = vadd.f32 %v3931, %v4270
        %v4319 = vadd.f32 %v3932, %v4273
        %v4320 = vadd.f32 %v3933, %v4278
        %v4321 = vadd.f32 %v3934, %v4281
        %v4322 = vadd.f32 %v3935, %v4286
        %v4323 = vadd.f32 %v3936, %v4289
        %4324 = vst [vmem:[#allocation2] sm:$0xff] %v4292
        %4325 = vst [vmem:[#allocation2 + $0x8] sm:$0xff] %v4293
        %4326 = vst [vmem:[#allocation2 + $0x10] sm:$0xff] %v4294
        %4327 = vst [vmem:[#allocation2 + $0x18] sm:$0xff] %v4295
        %4328 = vst [vmem:[#allocation2 + $0x20] sm:$0xff] %v4296
        %4329 = vst [vmem:[#allocation2 + $0x28] sm:$0xff] %v4297
        %4330 = vst [vmem:[#allocation2 + $0x30] sm:$0xff] %v4298
        %4331 = vst [vmem:[#allocation2 + $0x38] sm:$0xff] %v4299
        %4332 = vst [vmem:[#allocation2 + $0x40] sm:$0xff] %v4300
        %4333 = vst [vmem:[#allocation2 + $0x48] sm:$0xff] %v4301
        %4334 = vst [vmem:[#allocation2 + $0x50] sm:$0xff] %v4302
        %4335 = vst [vmem:[#allocation2 + $0x58] sm:$0xff] %v4303
        %4336 = vst [vmem:[#allocation2 + $0x60] sm:$0xff] %v4304
        %4337 = vst [vmem:[#allocation2 + $0x68] sm:$0xff] %v4305
        %4338 = vst [vmem:[#allocation2 + $0x70] sm:$0xff] %v4306
        %4339 = vst [vmem:[#allocation2 + $0x78] sm:$0xff] %v4307
        %4340 = vst [vmem:[#allocation2 + $0x80] sm:$0xff] %v4308
        %4341 = vst [vmem:[#allocation2 + $0x88] sm:$0xff] %v4309
        %4342 = vst [vmem:[#allocation2 + $0x90] sm:$0xff] %v4310
        %4343 = vst [vmem:[#allocation2 + $0x98] sm:$0xff] %v4311
        %4344 = vst [vmem:[#allocation2 + $0xa0] sm:$0xff] %v4312
        %4345 = vst [vmem:[#allocation2 + $0xa8] sm:$0xff] %v4313
        %4346 = vst [vmem:[#allocation2 + $0xb0] sm:$0xff] %v4314
        %4347 = vst [vmem:[#allocation2 + $0xb8] sm:$0xff] %v4315
        %4348 = vst [vmem:[#allocation2 + $0xc0] sm:$0xff] %v4316
        %4349 = vst [vmem:[#allocation2 + $0xc8] sm:$0xff] %v4317
        %4350 = vst [vmem:[#allocation2 + $0xd0] sm:$0xff] %v4318
        %4351 = vst [vmem:[#allocation2 + $0xd8] sm:$0xff] %v4319
        %4352 = vst [vmem:[#allocation2 + $0xe0] sm:$0xff] %v4320
        %4353 = vst [vmem:[#allocation2 + $0xe8] sm:$0xff] %v4321
        %4354 = vst [vmem:[#allocation2 + $0xf0] sm:$0xff] %v4322
        %4355 = vst [vmem:[#allocation2 + $0xf8] sm:$0xff] %v4323
        %v4356 = vld [vmem:[#allocation2] sm:$0xff]
        %v4357 = vld [vmem:[#allocation2 + $0x8] sm:$0xff]
        %v4358 = vld [vmem:[#allocation2 + $0x10] sm:$0xff]
        %v4359 = vld [vmem:[#allocation2 + $0x18] sm:$0xff]
        %v4360 = vld [vmem:[#allocation2 + $0x20] sm:$0xff]
        %v4361 = vld [vmem:[#allocation2 + $0x28] sm:$0xff]
        %v4362 = vld [vmem:[#allocation2 + $0x30] sm:$0xff]
        %v4363 = vld [vmem:[#allocation2 + $0x38] sm:$0xff]
        %v4364 = vld [vmem:[#allocation2 + $0x40] sm:$0xff]
        %v4365 = vld [vmem:[#allocation2 + $0x48] sm:$0xff]
        %v4366 = vld [vmem:[#allocation2 + $0x50] sm:$0xff]
        %v4367 = vld [vmem:[#allocation2 + $0x58] sm:$0xff]
        %v4368 = vld [vmem:[#allocation2 + $0x60] sm:$0xff]
        %v4369 = vld [vmem:[#allocation2 + $0x68] sm:$0xff]
        %v4370 = vld [vmem:[#allocation2 + $0x70] sm:$0xff]
        %v4371 = vld [vmem:[#allocation2 + $0x78] sm:$0xff]
        %v4372 = vld [vmem:[#allocation2 + $0x80] sm:$0xff]
        %v4373 = vld [vmem:[#allocation2 + $0x88] sm:$0xff]
        %v4374 = vld [vmem:[#allocation2 + $0x90] sm:$0xff]
        %v4375 = vld [vmem:[#allocation2 + $0x98] sm:$0xff]
        %v4376 = vld [vmem:[#allocation2 + $0xa0] sm:$0xff]
        %v4377 = vld [vmem:[#allocation2 + $0xa8] sm:$0xff]
        %v4378 = vld [vmem:[#allocation2 + $0xb0] sm:$0xff]
        %v4379 = vld [vmem:[#allocation2 + $0xb8] sm:$0xff]
        %v4380 = vld [vmem:[#allocation2 + $0xc0] sm:$0xff]
        %v4381 = vld [vmem:[#allocation2 + $0xc8] sm:$0xff]
        %v4382 = vld [vmem:[#allocation2 + $0xd0] sm:$0xff]
        %v4383 = vld [vmem:[#allocation2 + $0xd8] sm:$0xff]
        %v4384 = vld [vmem:[#allocation2 + $0xe0] sm:$0xff]
        %v4385 = vld [vmem:[#allocation2 + $0xe8] sm:$0xff]
        %v4386 = vld [vmem:[#allocation2 + $0xf0] sm:$0xff]
        %v4387 = vld [vmem:[#allocation2 + $0xf8] sm:$0xff]
        %v4388 = vld [vmem:[%s3937] sm:$0xf]
        %v4389 = vld [vmem:[%s3937 + $0x4] sm:$0xf]
        %v4390 = vld [vmem:[%s3937 + $0x8] sm:$0x1]
        %v4391 = vld [vmem:[%s3937 + $0xc] sm:$0xf]
        %v4392 = vld [vmem:[%s3937 + $0x10] sm:$0xf]
        %v4393 = vld [vmem:[%s3937 + $0x14] sm:$0x1]
        %v4394 = vld [vmem:[%s3937 + $0x18] sm:$0xf]
        %v4395 = vld [vmem:[%s3937 + $0x1c] sm:$0xf]
        %v4396 = vld [vmem:[%s3937 + $0x20] sm:$0x1]
        %v4397 = vld [vmem:[%s3937 + $0x24] sm:$0xf]
        %v4398 = vld [vmem:[%s3937 + $0x28] sm:$0xf]
        %v4399 = vld [vmem:[%s3937 + $0x2c] sm:$0x1]
        %v4400 = vld [vmem:[%s3937 + $0x30] sm:$0xf]
        %v4401 = vld [vmem:[%s3937 + $0x34] sm:$0xf]
        %v4402 = vld [vmem:[%s3937 + $0x38] sm:$0x1]
        %v4403 = vld [vmem:[%s3937 + $0x3c] sm:$0xf]
        %v4404 = vld [vmem:[%s3937 + $0x40] sm:$0xf]
        %v4405 = vld [vmem:[%s3937 + $0x44] sm:$0x1]
        %v4406 = vld [vmem:[%s3937 + $0x48] sm:$0xf]
        %v4407 = vld [vmem:[%s3937 + $0x4c] sm:$0xf]
        %v4408 = vld [vmem:[%s3937 + $0x50] sm:$0x1]
        %v4409 = vld [vmem:[%s3937 + $0x54] sm:$0xf]
        %v4410 = vld [vmem:[%s3937 + $0x58] sm:$0xf]
        %v4411 = vld [vmem:[%s3937 + $0x5c] sm:$0x1]
        %v4412 = vld [vmem:[%s3937 + $0x60] sm:$0xf]
        %v4413 = vld [vmem:[%s3937 + $0x64] sm:$0xf]
        %v4414 = vld [vmem:[%s3937 + $0x68] sm:$0x1]
        %v4415 = vld [vmem:[%s3937 + $0x6c] sm:$0xf]
        %v4416 = vld [vmem:[%s3937 + $0x70] sm:$0xf]
        %v4417 = vld [vmem:[%s3937 + $0x74] sm:$0x1]
        %v4418 = vld [vmem:[%s3937 + $0x78] sm:$0xf]
        %v4419 = vld [vmem:[%s3937 + $0x7c] sm:$0xf]
        %v4420 = vld [vmem:[%s3937 + $0x80] sm:$0x1]
        %v4421 = vld [vmem:[%s3937 + $0x84] sm:$0xf]
        %v4422 = vld [vmem:[%s3937 + $0x88] sm:$0xf]
        %v4423 = vld [vmem:[%s3937 + $0x8c] sm:$0x1]
        %v4424 = vld [vmem:[%s3937 + $0x90] sm:$0xf]
        %v4425 = vld [vmem:[%s3937 + $0x94] sm:$0xf]
        %v4426 = vld [vmem:[%s3937 + $0x98] sm:$0x1]
        %v4427 = vld [vmem:[%s3937 + $0x9c] sm:$0xf]
        %v4428 = vld [vmem:[%s3937 + $0xa0] sm:$0xf]
        %v4429 = vld [vmem:[%s3937 + $0xa4] sm:$0x1]
        %v4430 = vld [vmem:[%s3937 + $0xa8] sm:$0xf]
        %v4431 = vld [vmem:[%s3937 + $0xac] sm:$0xf]
        %v4432 = vld [vmem:[%s3937 + $0xb0] sm:$0x1]
        %v4433 = vld [vmem:[%s3937 + $0xb4] sm:$0xf]
        %v4434 = vld [vmem:[%s3937 + $0xb8] sm:$0xf]
        %v4435 = vld [vmem:[%s3937 + $0xbc] sm:$0x1]
        %v4437 = vshrl.u32 %v4388, 16
        %v4439 = vrot.slane %v4437, 4
        %v4440 = vshll.u32 %v4388, 16
        %v4442 = vrot.slane %v4440, 5
        %v4443 = vor.u32 %v4439, %v4442
        %v4444 = vrot.slane %v4443, 4
        %v4446 = vshll.u32 %v4389, 16
        %v4448 = vrot.slane %v4446, 5
        %v4449 = vsel %vm706, %v4444, %v4448
        %v4450 = vshrl.u32 %v4389, 16
        %v4452 = vrot.slane %v4450, 4
        %v4453 = vor.u32 %v4452, %v4448
        %v4454 = vrot.slane %v4453, 4
        %v4456 = vshll.u32 %v4390, 16
        %v4458 = vrot.slane %v4456, 5
        %v4459 = vsel %vm706, %v4454, %v4458
        %v4461 = vshrl.u32 %v4391, 16
        %v4463 = vrot.slane %v4461, 4
        %v4464 = vshll.u32 %v4391, 16
        %v4466 = vrot.slane %v4464, 5
        %v4467 = vor.u32 %v4463, %v4466
        %v4468 = vrot.slane %v4467, 4
        %v4470 = vshll.u32 %v4392, 16
        %v4472 = vrot.slane %v4470, 5
        %v4473 = vsel %vm706, %v4468, %v4472
        %v4474 = vshrl.u32 %v4392, 16
        %v4476 = vrot.slane %v4474, 4
        %v4477 = vor.u32 %v4476, %v4472
        %v4478 = vrot.slane %v4477, 4
        %v4480 = vshll.u32 %v4393, 16
        %v4482 = vrot.slane %v4480, 5
        %v4483 = vsel %vm706, %v4478, %v4482
        %v4485 = vshrl.u32 %v4394, 16
        %v4487 = vrot.slane %v4485, 4
        %v4488 = vshll.u32 %v4394, 16
        %v4490 = vrot.slane %v4488, 5
        %v4491 = vor.u32 %v4487, %v4490
        %v4492 = vrot.slane %v4491, 4
        %v4494 = vshll.u32 %v4395, 16
        %v4496 = vrot.slane %v4494, 5
        %v4497 = vsel %vm706, %v4492, %v4496
        %v4498 = vshrl.u32 %v4395, 16
        %v4500 = vrot.slane %v4498, 4
        %v4501 = vor.u32 %v4500, %v4496
        %v4502 = vrot.slane %v4501, 4
        %v4504 = vshll.u32 %v4396, 16
        %v4506 = vrot.slane %v4504, 5
        %v4507 = vsel %vm706, %v4502, %v4506
        %v4509 = vshrl.u32 %v4397, 16
        %v4511 = vrot.slane %v4509, 4
        %v4512 = vshll.u32 %v4397, 16
        %v4514 = vrot.slane %v4512, 5
        %v4515 = vor.u32 %v4511, %v4514
        %v4516 = vrot.slane %v4515, 4
        %v4518 = vshll.u32 %v4398, 16
        %v4520 = vrot.slane %v4518, 5
        %v4521 = vsel %vm706, %v4516, %v4520
        %v4522 = vshrl.u32 %v4398, 16
        %v4524 = vrot.slane %v4522, 4
        %v4525 = vor.u32 %v4524, %v4520
        %v4526 = vrot.slane %v4525, 4
        %v4528 = vshll.u32 %v4399, 16
        %v4530 = vrot.slane %v4528, 5
        %v4531 = vsel %vm706, %v4526, %v4530
        %v4533 = vshrl.u32 %v4400, 16
        %v4535 = vrot.slane %v4533, 4
        %v4536 = vshll.u32 %v4400, 16
        %v4538 = vrot.slane %v4536, 5
        %v4539 = vor.u32 %v4535, %v4538
        %v4540 = vrot.slane %v4539, 4
        %v4542 = vshll.u32 %v4401, 16
        %v4544 = vrot.slane %v4542, 5
        %v4545 = vsel %vm706, %v4540, %v4544
        %v4546 = vshrl.u32 %v4401, 16
        %v4548 = vrot.slane %v4546, 4
        %v4549 = vor.u32 %v4548, %v4544
        %v4550 = vrot.slane %v4549, 4
        %v4552 = vshll.u32 %v4402, 16
        %v4554 = vrot.slane %v4552, 5
        %v4555 = vsel %vm706, %v4550, %v4554
        %v4557 = vshrl.u32 %v4403, 16
        %v4559 = vrot.slane %v4557, 4
        %v4560 = vshll.u32 %v4403, 16
        %v4562 = vrot.slane %v4560, 5
        %v4563 = vor.u32 %v4559, %v4562
        %v4564 = vrot.slane %v4563, 4
        %v4566 = vshll.u32 %v4404, 16
        %v4568 = vrot.slane %v4566, 5
        %v4569 = vsel %vm706, %v4564, %v4568
        %v4570 = vshrl.u32 %v4404, 16
        %v4572 = vrot.slane %v4570, 4
        %v4573 = vor.u32 %v4572, %v4568
        %v4574 = vrot.slane %v4573, 4
        %v4576 = vshll.u32 %v4405, 16
        %v4578 = vrot.slane %v4576, 5
        %v4579 = vsel %vm706, %v4574, %v4578
        %v4581 = vshrl.u32 %v4406, 16
        %v4583 = vrot.slane %v4581, 4
        %v4584 = vshll.u32 %v4406, 16
        %v4586 = vrot.slane %v4584, 5
        %v4587 = vor.u32 %v4583, %v4586
        %v4588 = vrot.slane %v4587, 4
        %v4590 = vshll.u32 %v4407, 16
        %v4592 = vrot.slane %v4590, 5
        %v4593 = vsel %vm706, %v4588, %v4592
        %v4594 = vshrl.u32 %v4407, 16
        %v4596 = vrot.slane %v4594, 4
        %v4597 = vor.u32 %v4596, %v4592
        %v4598 = vrot.slane %v4597, 4
        %v4600 = vshll.u32 %v4408, 16
        %v4602 = vrot.slane %v4600, 5
        %v4603 = vsel %vm706, %v4598, %v4602
        %v4605 = vshrl.u32 %v4409, 16
        %v4607 = vrot.slane %v4605, 4
        %v4608 = vshll.u32 %v4409, 16
        %v4610 = vrot.slane %v4608, 5
        %v4611 = vor.u32 %v4607, %v4610
        %v4612 = vrot.slane %v4611, 4
        %v4614 = vshll.u32 %v4410, 16
        %v4616 = vrot.slane %v4614, 5
        %v4617 = vsel %vm706, %v4612, %v4616
        %v4618 = vshrl.u32 %v4410, 16
        %v4620 = vrot.slane %v4618, 4
        %v4621 = vor.u32 %v4620, %v4616
        %v4622 = vrot.slane %v4621, 4
        %v4624 = vshll.u32 %v4411, 16
        %v4626 = vrot.slane %v4624, 5
        %v4627 = vsel %vm706, %v4622, %v4626
        %v4629 = vshrl.u32 %v4412, 16
        %v4631 = vrot.slane %v4629, 4
        %v4632 = vshll.u32 %v4412, 16
        %v4634 = vrot.slane %v4632, 5
        %v4635 = vor.u32 %v4631, %v4634
        %v4636 = vrot.slane %v4635, 4
        %v4638 = vshll.u32 %v4413, 16
        %v4640 = vrot.slane %v4638, 5
        %v4641 = vsel %vm706, %v4636, %v4640
        %v4642 = vshrl.u32 %v4413, 16
        %v4644 = vrot.slane %v4642, 4
        %v4645 = vor.u32 %v4644, %v4640
        %v4646 = vrot.slane %v4645, 4
        %v4648 = vshll.u32 %v4414, 16
        %v4650 = vrot.slane %v4648, 5
        %v4651 = vsel %vm706, %v4646, %v4650
        %v4653 = vshrl.u32 %v4415, 16
        %v4655 = vrot.slane %v4653, 4
        %v4656 = vshll.u32 %v4415, 16
        %v4658 = vrot.slane %v4656, 5
        %v4659 = vor.u32 %v4655, %v4658
        %v4660 = vrot.slane %v4659, 4
        %v4662 = vshll.u32 %v4416, 16
        %v4664 = vrot.slane %v4662, 5
        %v4665 = vsel %vm706, %v4660, %v4664
        %v4666 = vshrl.u32 %v4416, 16
        %v4668 = vrot.slane %v4666, 4
        %v4669 = vor.u32 %v4668, %v4664
        %v4670 = vrot.slane %v4669, 4
        %v4672 = vshll.u32 %v4417, 16
        %v4674 = vrot.slane %v4672, 5
        %v4675 = vsel %vm706, %v4670, %v4674
        %v4677 = vshrl.u32 %v4418, 16
        %v4679 = vrot.slane %v4677, 4
        %v4680 = vshll.u32 %v4418, 16
        %v4682 = vrot.slane %v4680, 5
        %v4683 = vor.u32 %v4679, %v4682
        %v4684 = vrot.slane %v4683, 4
        %v4686 = vshll.u32 %v4419, 16
        %v4688 = vrot.slane %v4686, 5
        %v4689 = vsel %vm706, %v4684, %v4688
        %v4690 = vshrl.u32 %v4419, 16
        %v4692 = vrot.slane %v4690, 4
        %v4693 = vor.u32 %v4692, %v4688
        %v4694 = vrot.slane %v4693, 4
        %v4696 = vshll.u32 %v4420, 16
        %v4698 = vrot.slane %v4696, 5
        %v4699 = vsel %vm706, %v4694, %v4698
        %v4701 = vshrl.u32 %v4421, 16
        %v4703 = vrot.slane %v4701, 4
        %v4704 = vshll.u32 %v4421, 16
        %v4706 = vrot.slane %v4704, 5
        %v4707 = vor.u32 %v4703, %v4706
        %v4708 = vrot.slane %v4707, 4
        %v4710 = vshll.u32 %v4422, 16
        %v4712 = vrot.slane %v4710, 5
        %v4713 = vsel %vm706, %v4708, %v4712
        %v4714 = vshrl.u32 %v4422, 16
        %v4716 = vrot.slane %v4714, 4
        %v4717 = vor.u32 %v4716, %v4712
        %v4718 = vrot.slane %v4717, 4
        %v4720 = vshll.u32 %v4423, 16
        %v4722 = vrot.slane %v4720, 5
        %v4723 = vsel %vm706, %v4718, %v4722
        %v4725 = vshrl.u32 %v4424, 16
        %v4727 = vrot.slane %v4725, 4
        %v4728 = vshll.u32 %v4424, 16
        %v4730 = vrot.slane %v4728, 5
        %v4731 = vor.u32 %v4727, %v4730
        %v4732 = vrot.slane %v4731, 4
        %v4734 = vshll.u32 %v4425, 16
        %v4736 = vrot.slane %v4734, 5
        %v4737 = vsel %vm706, %v4732, %v4736
        %v4738 = vshrl.u32 %v4425, 16
        %v4740 = vrot.slane %v4738, 4
        %v4741 = vor.u32 %v4740, %v4736
        %v4742 = vrot.slane %v4741, 4
        %v4744 = vshll.u32 %v4426, 16
        %v4746 = vrot.slane %v4744, 5
        %v4747 = vsel %vm706, %v4742, %v4746
        %v4749 = vshrl.u32 %v4427, 16
        %v4751 = vrot.slane %v4749, 4
        %v4752 = vshll.u32 %v4427, 16
        %v4754 = vrot.slane %v4752, 5
        %v4755 = vor.u32 %v4751, %v4754
        %v4756 = vrot.slane %v4755, 4
        %v4758 = vshll.u32 %v4428, 16
        %v4760 = vrot.slane %v4758, 5
        %v4761 = vsel %vm706, %v4756, %v4760
        %v4762 = vshrl.u32 %v4428, 16
        %v4764 = vrot.slane %v4762, 4
        %v4765 = vor.u32 %v4764, %v4760
        %v4766 = vrot.slane %v4765, 4
        %v4768 = vshll.u32 %v4429, 16
        %v4770 = vrot.slane %v4768, 5
        %v4771 = vsel %vm706, %v4766, %v4770
        %v4773 = vshrl.u32 %v4430, 16
        %v4775 = vrot.slane %v4773, 4
        %v4776 = vshll.u32 %v4430, 16
        %v4778 = vrot.slane %v4776, 5
        %v4779 = vor.u32 %v4775, %v4778
        %v4780 = vrot.slane %v4779, 4
        %v4782 = vshll.u32 %v4431, 16
        %v4784 = vrot.slane %v4782, 5
        %v4785 = vsel %vm706, %v4780, %v4784
        %v4786 = vshrl.u32 %v4431, 16
        %v4788 = vrot.slane %v4786, 4
        %v4789 = vor.u32 %v4788, %v4784
        %v4790 = vrot.slane %v4789, 4
        %v4792 = vshll.u32 %v4432, 16
        %v4794 = vrot.slane %v4792, 5
        %v4795 = vsel %vm706, %v4790, %v4794
        %v4797 = vshrl.u32 %v4433, 16
        %v4799 = vrot.slane %v4797, 4
        %v4800 = vshll.u32 %v4433, 16
        %v4802 = vrot.slane %v4800, 5
        %v4803 = vor.u32 %v4799, %v4802
        %v4804 = vrot.slane %v4803, 4
        %v4806 = vshll.u32 %v4434, 16
        %v4808 = vrot.slane %v4806, 5
        %v4809 = vsel %vm706, %v4804, %v4808
        %v4810 = vshrl.u32 %v4434, 16
        %v4812 = vrot.slane %v4810, 4
        %v4813 = vor.u32 %v4812, %v4808
        %v4814 = vrot.slane %v4813, 4
        %v4816 = vshll.u32 %v4435, 16
        %v4818 = vrot.slane %v4816, 5
        %v4819 = vsel %vm706, %v4814, %v4818
        %s4820 = scalar_lea.vmem %s233, 448
        %v4821 = vld [vmem:[%s4820] sm:$0xf]
        %v4822 = vld [vmem:[%s4820 + $0x4] sm:$0xf]
        %v4823 = vld [vmem:[%s4820 + $0x8] sm:$0xf]
        %v4824 = vld [vmem:[%s4820 + $0xc] sm:$0xf]
        %v4825 = vld [vmem:[%s4820 + $0x10] sm:$0xf]
        %v4826 = vld [vmem:[%s4820 + $0x14] sm:$0xf]
        %v4827 = vld [vmem:[%s4820 + $0x18] sm:$0xf]
        %v4828 = vld [vmem:[%s4820 + $0x1c] sm:$0xf]
        %v4829 = vld [vmem:[%s4820 + $0x20] sm:$0xf]
        %v4830 = vld [vmem:[%s4820 + $0x24] sm:$0xf]
        %v4831 = vld [vmem:[%s4820 + $0x28] sm:$0xf]
        %v4832 = vld [vmem:[%s4820 + $0x2c] sm:$0xf]
        %v4833 = vld [vmem:[%s4820 + $0x30] sm:$0xf]
        %v4834 = vld [vmem:[%s4820 + $0x34] sm:$0xf]
        %v4835 = vld [vmem:[%s4820 + $0x38] sm:$0xf]
        %v4836 = vld [vmem:[%s4820 + $0x3c] sm:$0xf]
        %v4837 = vunpack.c.l.b16 %v4449
        %v4838 = vunpack.c.l.b16 %v4459
        %v4839 = vunpack.c.l.b16 %v4473
        %v4840 = vunpack.c.l.b16 %v4483
        %v4841 = vunpack.c.l.b16 %v4497
        %v4842 = vunpack.c.l.b16 %v4507
        %v4843 = vunpack.c.l.b16 %v4521
        %v4844 = vunpack.c.l.b16 %v4531
        %v4845 = vunpack.c.l.b16 %v4545
        %v4846 = vunpack.c.l.b16 %v4555
        %v4847 = vunpack.c.l.b16 %v4569
        %v4848 = vunpack.c.l.b16 %v4579
        %v4849 = vunpack.c.l.b16 %v4593
        %v4850 = vunpack.c.l.b16 %v4603
        %v4851 = vunpack.c.l.b16 %v4617
        %v4852 = vunpack.c.l.b16 %v4627
        %v4853 = vunpack.c.l.b16 %v4641
        %v4854 = vunpack.c.l.b16 %v4651
        %v4855 = vunpack.c.l.b16 %v4665
        %v4856 = vunpack.c.l.b16 %v4675
        %v4857 = vunpack.c.l.b16 %v4689
        %v4858 = vunpack.c.l.b16 %v4699
        %v4859 = vunpack.c.l.b16 %v4713
        %v4860 = vunpack.c.l.b16 %v4723
        %v4861 = vunpack.c.l.b16 %v4737
        %v4862 = vunpack.c.l.b16 %v4747
        %v4863 = vunpack.c.l.b16 %v4761
        %v4864 = vunpack.c.l.b16 %v4771
        %v4865 = vunpack.c.l.b16 %v4785
        %v4866 = vunpack.c.l.b16 %v4795
        %v4867 = vunpack.c.l.b16 %v4809
        %v4868 = vunpack.c.l.b16 %v4819
        %v4869 = vpack.c.b16 %v4838, %v4837
        %v4870 = vpack.c.b16 %v4840, %v4839
        %v4871 = vpack.c.b16 %v4842, %v4841
        %v4872 = vpack.c.b16 %v4844, %v4843
        %v4873 = vpack.c.b16 %v4846, %v4845
        %v4874 = vpack.c.b16 %v4848, %v4847
        %v4875 = vpack.c.b16 %v4850, %v4849
        %v4876 = vpack.c.b16 %v4852, %v4851
        %v4877 = vpack.c.b16 %v4854, %v4853
        %v4878 = vpack.c.b16 %v4856, %v4855
        %v4879 = vpack.c.b16 %v4858, %v4857
        %v4880 = vpack.c.b16 %v4860, %v4859
        %v4881 = vpack.c.b16 %v4862, %v4861
        %v4882 = vpack.c.b16 %v4864, %v4863
        %v4883 = vpack.c.b16 %v4866, %v4865
        %v4884 = vpack.c.b16 %v4868, %v4867
        %v4917 = vunpack.c.l.b16 %v4821
        %v4918 = vunpack.c.l.b16 %v4822
        %v4919 = vunpack.c.l.b16 %v4823
        %v4920 = vunpack.c.l.b16 %v4824
        %v4921 = vunpack.c.l.b16 %v4825
        %v4922 = vunpack.c.l.b16 %v4826
        %v4923 = vunpack.c.l.b16 %v4827
        %v4924 = vunpack.c.l.b16 %v4828
        %v4925 = vunpack.c.l.b16 %v4829
        %v4926 = vunpack.c.l.b16 %v4830
        %v4927 = vunpack.c.l.b16 %v4831
        %v4928 = vunpack.c.l.b16 %v4832
        %v4929 = vunpack.c.l.b16 %v4833
        %v4930 = vunpack.c.l.b16 %v4834
        %v4931 = vunpack.c.l.b16 %v4835
        %v4932 = vunpack.c.l.b16 %v4836
        %v4933 = vpack.c.b16 %v4918, %v4917
        %v4934 = vpack.c.b16 %v4920, %v4919
        %v4935 = vpack.c.b16 %v4922, %v4921
        %v4936 = vpack.c.b16 %v4924, %v4923
        %v4937 = vpack.c.b16 %v4926, %v4925
        %v4938 = vpack.c.b16 %v4928, %v4927
        %v4939 = vpack.c.b16 %v4930, %v4929
        %v4940 = vpack.c.b16 %v4932, %v4931
        %4949 = vmatprep.subr.bf16.mxu0 0
        %4950 = vmatpush1.bf16.msra.mxu0 %v4933
        %4951 = vmatprep.subr.bf16.mxu0 0
        %4952 = vmatpush1.bf16.msra.mxu0 %v4934
        %4953 = vmatprep.subr.bf16.mxu0 0
        %4954 = vmatpush1.bf16.msra.mxu0 %v4935
        %4955 = vmatprep.subr.bf16.mxu0 0
        %4956 = vmatpush1.bf16.msra.mxu0 %v4936
        %4957 = vmatprep.subr.bf16.mxu0 0
        %4958 = vmatpush1.bf16.msra.mxu0 %v4937
        %4959 = vmatprep.subr.bf16.mxu0 0
        %4960 = vmatpush1.bf16.msra.mxu0 %v4938
        %4961 = vmatprep.subr.bf16.mxu0 0
        %4962 = vmatpush1.bf16.msra.mxu0 %v4939
        %4963 = vmatprep.subr.bf16.mxu0 0
        %4964 = vmatpush1.bf16.msra.mxu0 %v4940
        %4965 = vmatprep.subr.bf16.mxu0 0
        %4966 = vmatpush1.bf16.msra.mxu0 0
        %4967 = vmatprep.subr.bf16.mxu0 0
        %4968 = vmatpush1.bf16.msra.mxu0 0
        %4969 = vmatprep.subr.bf16.mxu0 0
        %4970 = vmatpush1.bf16.msra.mxu0 0
        %4971 = vmatprep.subr.bf16.mxu0 0
        %4972 = vmatpush1.bf16.msra.mxu0 0
        %4973 = vmatprep.subr.bf16.mxu0 0
        %4974 = vmatpush1.bf16.msra.mxu0 0
        %4975 = vmatprep.subr.bf16.mxu0 0
        %4976 = vmatpush1.bf16.msra.mxu0 0
        %4977 = vmatprep.subr.bf16.mxu0 0
        %4978 = vmatpush1.bf16.msra.mxu0 0
        %4979 = vmatprep.subr.bf16.mxu0 0
        %4980 = vmatpush1.bf16.msra.mxu0 0
        %4981 = vmatprep.mubr.bf16.mxu0 0
        %4982 = vmatmul.mubr.bf16.gmra.mrb[0].mxu0 %v4869
        %v4983 = vpop.f32.mrb[0].mxu0
        %v4984 = vadd.f32 0.0, %v4983
        %v4985 = vpop.f32.mrb[0].mxu0
        %v4986 = vpop.f32.mrb[0].mxu0
        %v4987 = vadd.f32 0.0, %v4986
        %v4988 = vpop.f32.mrb[0].mxu0
        %4989 = vmatprep.mubr.bf16.mxu0 0
        %4990 = vmatmul.mubr.bf16.gmra.mrb[0].mxu0 %v4870
        %v4991 = vpop.f32.mrb[0].mxu0
        %v4992 = vadd.f32 0.0, %v4991
        %v4993 = vpop.f32.mrb[0].mxu0
        %v4994 = vpop.f32.mrb[0].mxu0
        %v4995 = vadd.f32 0.0, %v4994
        %v4996 = vpop.f32.mrb[0].mxu0
        %4997 = vmatprep.mubr.bf16.mxu0 0
        %4998 = vmatmul.mubr.bf16.gmra.mrb[0].mxu0 %v4871
        %v4999 = vpop.f32.mrb[0].mxu0
        %v5000 = vadd.f32 0.0, %v4999
        %v5001 = vpop.f32.mrb[0].mxu0
        %v5002 = vpop.f32.mrb[0].mxu0
        %v5003 = vadd.f32 0.0, %v5002
        %v5004 = vpop.f32.mrb[0].mxu0
        %5005 = vmatprep.mubr.bf16.mxu0 0
        %5006 = vmatmul.mubr.bf16.gmra.mrb[0].mxu0 %v4872
        %v5007 = vpop.f32.mrb[0].mxu0
        %v5008 = vadd.f32 0.0, %v5007
        %v5009 = vpop.f32.mrb[0].mxu0
        %v5010 = vpop.f32.mrb[0].mxu0
        %v5011 = vadd.f32 0.0, %v5010
        %v5012 = vpop.f32.mrb[0].mxu0
        %5013 = vmatprep.mubr.bf16.mxu0 0
        %5014 = vmatmul.mubr.bf16.gmra.mrb[0].mxu0 %v4873
        %v5015 = vpop.f32.mrb[0].mxu0
        %v5016 = vadd.f32 0.0, %v5015
        %v5017 = vpop.f32.mrb[0].mxu0
        %v5018 = vpop.f32.mrb[0].mxu0
        %v5019 = vadd.f32 0.0, %v5018
        %v5020 = vpop.f32.mrb[0].mxu0
        %5021 = vmatprep.mubr.bf16.mxu0 0
        %5022 = vmatmul.mubr.bf16.gmra.mrb[0].mxu0 %v4874
        %v5023 = vpop.f32.mrb[0].mxu0
        %v5024 = vadd.f32 0.0, %v5023
        %v5025 = vpop.f32.mrb[0].mxu0
        %v5026 = vpop.f32.mrb[0].mxu0
        %v5027 = vadd.f32 0.0, %v5026
        %v5028 = vpop.f32.mrb[0].mxu0
        %5029 = vmatprep.mubr.bf16.mxu0 0
        %5030 = vmatmul.mubr.bf16.gmra.mrb[0].mxu0 %v4875
        %v5031 = vpop.f32.mrb[0].mxu0
        %v5032 = vadd.f32 0.0, %v5031
        %v5033 = vpop.f32.mrb[0].mxu0
        %v5034 = vpop.f32.mrb[0].mxu0
        %v5035 = vadd.f32 0.0, %v5034
        %v5036 = vpop.f32.mrb[0].mxu0
        %5037 = vmatprep.mubr.bf16.mxu0 0
        %5038 = vmatmul.mubr.bf16.gmra.mrb[0].mxu0 %v4876
        %v5039 = vpop.f32.mrb[0].mxu0
        %v5040 = vadd.f32 0.0, %v5039
        %v5041 = vpop.f32.mrb[0].mxu0
        %v5042 = vpop.f32.mrb[0].mxu0
        %v5043 = vadd.f32 0.0, %v5042
        %v5044 = vpop.f32.mrb[0].mxu0
        %5045 = vmatprep.mubr.bf16.mxu0 0
        %5046 = vmatmul.mubr.bf16.gmra.mrb[0].mxu0 %v4877
        %v5047 = vpop.f32.mrb[0].mxu0
        %v5048 = vadd.f32 0.0, %v5047
        %v5049 = vpop.f32.mrb[0].mxu0
        %v5050 = vpop.f32.mrb[0].mxu0
        %v5051 = vadd.f32 0.0, %v5050
        %v5052 = vpop.f32.mrb[0].mxu0
        %5053 = vmatprep.mubr.bf16.mxu0 0
        %5054 = vmatmul.mubr.bf16.gmra.mrb[0].mxu0 %v4878
        %v5055 = vpop.f32.mrb[0].mxu0
        %v5056 = vadd.f32 0.0, %v5055
        %v5057 = vpop.f32.mrb[0].mxu0
        %v5058 = vpop.f32.mrb[0].mxu0
        %v5059 = vadd.f32 0.0, %v5058
        %v5060 = vpop.f32.mrb[0].mxu0
        %5061 = vmatprep.mubr.bf16.mxu0 0
        %5062 = vmatmul.mubr.bf16.gmra.mrb[0].mxu0 %v4879
        %v5063 = vpop.f32.mrb[0].mxu0
        %v5064 = vadd.f32 0.0, %v5063
        %v5065 = vpop.f32.mrb[0].mxu0
        %v5066 = vpop.f32.mrb[0].mxu0
        %v5067 = vadd.f32 0.0, %v5066
        %v5068 = vpop.f32.mrb[0].mxu0
        %5069 = vmatprep.mubr.bf16.mxu0 0
        %5070 = vmatmul.mubr.bf16.gmra.mrb[0].mxu0 %v4880
        %v5071 = vpop.f32.mrb[0].mxu0
        %v5072 = vadd.f32 0.0, %v5071
        %v5073 = vpop.f32.mrb[0].mxu0
        %v5074 = vpop.f32.mrb[0].mxu0
        %v5075 = vadd.f32 0.0, %v5074
        %v5076 = vpop.f32.mrb[0].mxu0
        %5077 = vmatprep.mubr.bf16.mxu0 0
        %5078 = vmatmul.mubr.bf16.gmra.mrb[0].mxu0 %v4881
        %v5079 = vpop.f32.mrb[0].mxu0
        %v5080 = vadd.f32 0.0, %v5079
        %v5081 = vpop.f32.mrb[0].mxu0
        %v5082 = vpop.f32.mrb[0].mxu0
        %v5083 = vadd.f32 0.0, %v5082
        %v5084 = vpop.f32.mrb[0].mxu0
        %5085 = vmatprep.mubr.bf16.mxu0 0
        %5086 = vmatmul.mubr.bf16.gmra.mrb[0].mxu0 %v4882
        %v5087 = vpop.f32.mrb[0].mxu0
        %v5088 = vadd.f32 0.0, %v5087
        %v5089 = vpop.f32.mrb[0].mxu0
        %v5090 = vpop.f32.mrb[0].mxu0
        %v5091 = vadd.f32 0.0, %v5090
        %v5092 = vpop.f32.mrb[0].mxu0
        %5093 = vmatprep.mubr.bf16.mxu0 0
        %5094 = vmatmul.mubr.bf16.gmra.mrb[0].mxu0 %v4883
        %v5095 = vpop.f32.mrb[0].mxu0
        %v5096 = vadd.f32 0.0, %v5095
        %v5097 = vpop.f32.mrb[0].mxu0
        %v5098 = vpop.f32.mrb[0].mxu0
        %v5099 = vadd.f32 0.0, %v5098
        %v5100 = vpop.f32.mrb[0].mxu0
        %5101 = vmatprep.mubr.bf16.mxu0 0
        %5102 = vmatmul.mubr.bf16.gmra.mrb[0].mxu0 %v4884
        %v5103 = vpop.f32.mrb[0].mxu0
        %v5104 = vadd.f32 0.0, %v5103
        %v5105 = vpop.f32.mrb[0].mxu0
        %v5106 = vpop.f32.mrb[0].mxu0
        %v5107 = vadd.f32 0.0, %v5106
        %v5108 = vpop.f32.mrb[0].mxu0
        %5109 = vdwg.mxu0
        %v5110 = vadd.f32 %v4356, %v4984
        %v5111 = vadd.f32 %v4357, %v4987
        %v5112 = vadd.f32 %v4358, %v4992
        %v5113 = vadd.f32 %v4359, %v4995
        %v5114 = vadd.f32 %v4360, %v5000
        %v5115 = vadd.f32 %v4361, %v5003
        %v5116 = vadd.f32 %v4362, %v5008
        %v5117 = vadd.f32 %v4363, %v5011
        %v5118 = vadd.f32 %v4364, %v5016
        %v5119 = vadd.f32 %v4365, %v5019
        %v5120 = vadd.f32 %v4366, %v5024
        %v5121 = vadd.f32 %v4367, %v5027
        %v5122 = vadd.f32 %v4368, %v5032
        %v5123 = vadd.f32 %v4369, %v5035
        %v5124 = vadd.f32 %v4370, %v5040
        %v5125 = vadd.f32 %v4371, %v5043
        %v5126 = vadd.f32 %v4372, %v5048
        %v5127 = vadd.f32 %v4373, %v5051
        %v5128 = vadd.f32 %v4374, %v5056
        %v5129 = vadd.f32 %v4375, %v5059
        %v5130 = vadd.f32 %v4376, %v5064
        %v5131 = vadd.f32 %v4377, %v5067
        %v5132 = vadd.f32 %v4378, %v5072
        %v5133 = vadd.f32 %v4379, %v5075
        %v5134 = vadd.f32 %v4380, %v5080
        %v5135 = vadd.f32 %v4381, %v5083
        %v5136 = vadd.f32 %v4382, %v5088
        %v5137 = vadd.f32 %v4383, %v5091
        %v5138 = vadd.f32 %v4384, %v5096
        %v5139 = vadd.f32 %v4385, %v5099
        %v5140 = vadd.f32 %v4386, %v5104
        %v5141 = vadd.f32 %v4387, %v5107
        %5142 = vst [vmem:[#allocation2] sm:$0xff] %v5110
        %5143 = vst [vmem:[#allocation2 + $0x8] sm:$0xff] %v5111
        %5144 = vst [vmem:[#allocation2 + $0x10] sm:$0xff] %v5112
        %5145 = vst [vmem:[#allocation2 + $0x18] sm:$0xff] %v5113
        %5146 = vst [vmem:[#allocation2 + $0x20] sm:$0xff] %v5114
        %5147 = vst [vmem:[#allocation2 + $0x28] sm:$0xff] %v5115
        %5148 = vst [vmem:[#allocation2 + $0x30] sm:$0xff] %v5116
        %5149 = vst [vmem:[#allocation2 + $0x38] sm:$0xff] %v5117
        %5150 = vst [vmem:[#allocation2 + $0x40] sm:$0xff] %v5118
        %5151 = vst [vmem:[#allocation2 + $0x48] sm:$0xff] %v5119
        %5152 = vst [vmem:[#allocation2 + $0x50] sm:$0xff] %v5120
        %5153 = vst [vmem:[#allocation2 + $0x58] sm:$0xff] %v5121
        %5154 = vst [vmem:[#allocation2 + $0x60] sm:$0xff] %v5122
        %5155 = vst [vmem:[#allocation2 + $0x68] sm:$0xff] %v5123
        %5156 = vst [vmem:[#allocation2 + $0x70] sm:$0xff] %v5124
        %5157 = vst [vmem:[#allocation2 + $0x78] sm:$0xff] %v5125
        %5158 = vst [vmem:[#allocation2 + $0x80] sm:$0xff] %v5126
        %5159 = vst [vmem:[#allocation2 + $0x88] sm:$0xff] %v5127
        %5160 = vst [vmem:[#allocation2 + $0x90] sm:$0xff] %v5128
        %5161 = vst [vmem:[#allocation2 + $0x98] sm:$0xff] %v5129
        %5162 = vst [vmem:[#allocation2 + $0xa0] sm:$0xff] %v5130
        %5163 = vst [vmem:[#allocation2 + $0xa8] sm:$0xff] %v5131
        %5164 = vst [vmem:[#allocation2 + $0xb0] sm:$0xff] %v5132
        %5165 = vst [vmem:[#allocation2 + $0xb8] sm:$0xff] %v5133
        %5166 = vst [vmem:[#allocation2 + $0xc0] sm:$0xff] %v5134
        %5167 = vst [vmem:[#allocation2 + $0xc8] sm:$0xff] %v5135
        %5168 = vst [vmem:[#allocation2 + $0xd0] sm:$0xff] %v5136
        %5169 = vst [vmem:[#allocation2 + $0xd8] sm:$0xff] %v5137
        %5170 = vst [vmem:[#allocation2 + $0xe0] sm:$0xff] %v5138
        %5171 = vst [vmem:[#allocation2 + $0xe8] sm:$0xff] %v5139
        %5172 = vst [vmem:[#allocation2 + $0xf0] sm:$0xff] %v5140
        %5173 = vst [vmem:[#allocation2 + $0xf8] sm:$0xff] %v5141
        %v5174 = vld [vmem:[#allocation2] sm:$0xff]
        %v5175 = vld [vmem:[#allocation2 + $0x8] sm:$0xff]
        %v5176 = vld [vmem:[#allocation2 + $0x10] sm:$0xff]
        %v5177 = vld [vmem:[#allocation2 + $0x18] sm:$0xff]
        %v5178 = vld [vmem:[#allocation2 + $0x20] sm:$0xff]
        %v5179 = vld [vmem:[#allocation2 + $0x28] sm:$0xff]
        %v5180 = vld [vmem:[#allocation2 + $0x30] sm:$0xff]
        %v5181 = vld [vmem:[#allocation2 + $0x38] sm:$0xff]
        %v5182 = vld [vmem:[#allocation2 + $0x40] sm:$0xff]
        %v5183 = vld [vmem:[#allocation2 + $0x48] sm:$0xff]
        %v5184 = vld [vmem:[#allocation2 + $0x50] sm:$0xff]
        %v5185 = vld [vmem:[#allocation2 + $0x58] sm:$0xff]
        %v5186 = vld [vmem:[#allocation2 + $0x60] sm:$0xff]
        %v5187 = vld [vmem:[#allocation2 + $0x68] sm:$0xff]
        %v5188 = vld [vmem:[#allocation2 + $0x70] sm:$0xff]
        %v5189 = vld [vmem:[#allocation2 + $0x78] sm:$0xff]
        %v5190 = vld [vmem:[#allocation2 + $0x80] sm:$0xff]
        %v5191 = vld [vmem:[#allocation2 + $0x88] sm:$0xff]
        %v5192 = vld [vmem:[#allocation2 + $0x90] sm:$0xff]
        %v5193 = vld [vmem:[#allocation2 + $0x98] sm:$0xff]
        %v5194 = vld [vmem:[#allocation2 + $0xa0] sm:$0xff]
        %v5195 = vld [vmem:[#allocation2 + $0xa8] sm:$0xff]
        %v5196 = vld [vmem:[#allocation2 + $0xb0] sm:$0xff]
        %v5197 = vld [vmem:[#allocation2 + $0xb8] sm:$0xff]
        %v5198 = vld [vmem:[#allocation2 + $0xc0] sm:$0xff]
        %v5199 = vld [vmem:[#allocation2 + $0xc8] sm:$0xff]
        %v5200 = vld [vmem:[#allocation2 + $0xd0] sm:$0xff]
        %v5201 = vld [vmem:[#allocation2 + $0xd8] sm:$0xff]
        %v5202 = vld [vmem:[#allocation2 + $0xe0] sm:$0xff]
        %v5203 = vld [vmem:[#allocation2 + $0xe8] sm:$0xff]
        %v5204 = vld [vmem:[#allocation2 + $0xf0] sm:$0xff]
        %v5205 = vld [vmem:[#allocation2 + $0xf8] sm:$0xff]
        %v5206 = vld [vmem:[%s3937] sm:$0xe]
        %v5207 = vld [vmem:[%s3937 + $0x4] sm:$0xf]
        %v5208 = vld [vmem:[%s3937 + $0x8] sm:$0x1]
        %v5209 = vld [vmem:[%s3937 + $0xc] sm:$0xe]
        %v5210 = vld [vmem:[%s3937 + $0x10] sm:$0xf]
        %v5211 = vld [vmem:[%s3937 + $0x14] sm:$0x1]
        %v5212 = vld [vmem:[%s3937 + $0x18] sm:$0xe]
        %v5213 = vld [vmem:[%s3937 + $0x1c] sm:$0xf]
        %v5214 = vld [vmem:[%s3937 + $0x20] sm:$0x1]
        %v5215 = vld [vmem:[%s3937 + $0x24] sm:$0xe]
        %v5216 = vld [vmem:[%s3937 + $0x28] sm:$0xf]
        %v5217 = vld [vmem:[%s3937 + $0x2c] sm:$0x1]
        %v5218 = vld [vmem:[%s3937 + $0x30] sm:$0xe]
        %v5219 = vld [vmem:[%s3937 + $0x34] sm:$0xf]
        %v5220 = vld [vmem:[%s3937 + $0x38] sm:$0x1]
        %v5221 = vld [vmem:[%s3937 + $0x3c] sm:$0xe]
        %v5222 = vld [vmem:[%s3937 + $0x40] sm:$0xf]
        %v5223 = vld [vmem:[%s3937 + $0x44] sm:$0x1]
        %v5224 = vld [vmem:[%s3937 + $0x48] sm:$0xe]
        %v5225 = vld [vmem:[%s3937 + $0x4c] sm:$0xf]
        %v5226 = vld [vmem:[%s3937 + $0x50] sm:$0x1]
        %v5227 = vld [vmem:[%s3937 + $0x54] sm:$0xe]
        %v5228 = vld [vmem:[%s3937 + $0x58] sm:$0xf]
        %v5229 = vld [vmem:[%s3937 + $0x5c] sm:$0x1]
        %v5230 = vld [vmem:[%s3937 + $0x60] sm:$0xe]
        %v5231 = vld [vmem:[%s3937 + $0x64] sm:$0xf]
        %v5232 = vld [vmem:[%s3937 + $0x68] sm:$0x1]
        %v5233 = vld [vmem:[%s3937 + $0x6c] sm:$0xe]
        %v5234 = vld [vmem:[%s3937 + $0x70] sm:$0xf]
        %v5235 = vld [vmem:[%s3937 + $0x74] sm:$0x1]
        %v5236 = vld [vmem:[%s3937 + $0x78] sm:$0xe]
        %v5237 = vld [vmem:[%s3937 + $0x7c] sm:$0xf]
        %v5238 = vld [vmem:[%s3937 + $0x80] sm:$0x1]
        %v5239 = vld [vmem:[%s3937 + $0x84] sm:$0xe]
        %v5240 = vld [vmem:[%s3937 + $0x88] sm:$0xf]
        %v5241 = vld [vmem:[%s3937 + $0x8c] sm:$0x1]
        %v5242 = vld [vmem:[%s3937 + $0x90] sm:$0xe]
        %v5243 = vld [vmem:[%s3937 + $0x94] sm:$0xf]
        %v5244 = vld [vmem:[%s3937 + $0x98] sm:$0x1]
        %v5245 = vld [vmem:[%s3937 + $0x9c] sm:$0xe]
        %v5246 = vld [vmem:[%s3937 + $0xa0] sm:$0xf]
        %v5247 = vld [vmem:[%s3937 + $0xa4] sm:$0x1]
        %v5248 = vld [vmem:[%s3937 + $0xa8] sm:$0xe]
        %v5249 = vld [vmem:[%s3937 + $0xac] sm:$0xf]
        %v5250 = vld [vmem:[%s3937 + $0xb0] sm:$0x1]
        %v5251 = vld [vmem:[%s3937 + $0xb4] sm:$0xe]
        %v5252 = vld [vmem:[%s3937 + $0xb8] sm:$0xf]
        %v5253 = vld [vmem:[%s3937 + $0xbc] sm:$0x1]
        %v5302 = vrot.slane %v5206, 5
        %v5303 = vrot.slane %v5302, 4
        %v5304 = vrot.slane %v5207, 5
        %v5305 = vsel %vm1575, %v5303, %v5304
        %v5306 = vrot.slane %v5304, 4
        %v5307 = vrot.slane %v5208, 5
        %v5308 = vsel %vm1575, %v5306, %v5307
        %v5309 = vrot.slane %v5209, 5
        %v5310 = vrot.slane %v5309, 4
        %v5311 = vrot.slane %v5210, 5
        %v5312 = vsel %vm1575, %v5310, %v5311
        %v5313 = vrot.slane %v5311, 4
        %v5314 = vrot.slane %v5211, 5
        %v5315 = vsel %vm1575, %v5313, %v5314
        %v5316 = vrot.slane %v5212, 5
        %v5317 = vrot.slane %v5316, 4
        %v5318 = vrot.slane %v5213, 5
        %v5319 = vsel %vm1575, %v5317, %v5318
        %v5320 = vrot.slane %v5318, 4
        %v5321 = vrot.slane %v5214, 5
        %v5322 = vsel %vm1575, %v5320, %v5321
        %v5323 = vrot.slane %v5215, 5
        %v5324 = vrot.slane %v5323, 4
        %v5325 = vrot.slane %v5216, 5
        %v5326 = vsel %vm1575, %v5324, %v5325
        %v5327 = vrot.slane %v5325, 4
        %v5328 = vrot.slane %v5217, 5
        %v5329 = vsel %vm1575, %v5327, %v5328
        %v5330 = vrot.slane %v5218, 5
        %v5331 = vrot.slane %v5330, 4
        %v5332 = vrot.slane %v5219, 5
        %v5333 = vsel %vm1575, %v5331, %v5332
        %v5334 = vrot.slane %v5332, 4
        %v5335 = vrot.slane %v5220, 5
        %v5336 = vsel %vm1575, %v5334, %v5335
        %v5337 = vrot.slane %v5221, 5
        %v5338 = vrot.slane %v5337, 4
        %v5339 = vrot.slane %v5222, 5
        %v5340 = vsel %vm1575, %v5338, %v5339
        %v5341 = vrot.slane %v5339, 4
        %v5342 = vrot.slane %v5223, 5
        %v5343 = vsel %vm1575, %v5341, %v5342
        %v5344 = vrot.slane %v5224, 5
        %v5345 = vrot.slane %v5344, 4
        %v5346 = vrot.slane %v5225, 5
        %v5347 = vsel %vm1575, %v5345, %v5346
        %v5348 = vrot.slane %v5346, 4
        %v5349 = vrot.slane %v5226, 5
        %v5350 = vsel %vm1575, %v5348, %v5349
        %v5351 = vrot.slane %v5227, 5
        %v5352 = vrot.slane %v5351, 4
        %v5353 = vrot.slane %v5228, 5
        %v5354 = vsel %vm1575, %v5352, %v5353
        %v5355 = vrot.slane %v5353, 4
        %v5356 = vrot.slane %v5229, 5
        %v5357 = vsel %vm1575, %v5355, %v5356
        %v5358 = vrot.slane %v5230, 5
        %v5359 = vrot.slane %v5358, 4
        %v5360 = vrot.slane %v5231, 5
        %v5361 = vsel %vm1575, %v5359, %v5360
        %v5362 = vrot.slane %v5360, 4
        %v5363 = vrot.slane %v5232, 5
        %v5364 = vsel %vm1575, %v5362, %v5363
        %v5365 = vrot.slane %v5233, 5
        %v5366 = vrot.slane %v5365, 4
        %v5367 = vrot.slane %v5234, 5
        %v5368 = vsel %vm1575, %v5366, %v5367
        %v5369 = vrot.slane %v5367, 4
        %v5370 = vrot.slane %v5235, 5
        %v5371 = vsel %vm1575, %v5369, %v5370
        %v5372 = vrot.slane %v5236, 5
        %v5373 = vrot.slane %v5372, 4
        %v5374 = vrot.slane %v5237, 5
        %v5375 = vsel %vm1575, %v5373, %v5374
        %v5376 = vrot.slane %v5374, 4
        %v5377 = vrot.slane %v5238, 5
        %v5378 = vsel %vm1575, %v5376, %v5377
        %v5379 = vrot.slane %v5239, 5
        %v5380 = vrot.slane %v5379, 4
        %v5381 = vrot.slane %v5240, 5
        %v5382 = vsel %vm1575, %v5380, %v5381
        %v5383 = vrot.slane %v5381, 4
        %v5384 = vrot.slane %v5241, 5
        %v5385 = vsel %vm1575, %v5383, %v5384
        %v5386 = vrot.slane %v5242, 5
        %v5387 = vrot.slane %v5386, 4
        %v5388 = vrot.slane %v5243, 5
        %v5389 = vsel %vm1575, %v5387, %v5388
        %v5390 = vrot.slane %v5388, 4
        %v5391 = vrot.slane %v5244, 5
        %v5392 = vsel %vm1575, %v5390, %v5391
        %v5393 = vrot.slane %v5245, 5
        %v5394 = vrot.slane %v5393, 4
        %v5395 = vrot.slane %v5246, 5
        %v5396 = vsel %vm1575, %v5394, %v5395
        %v5397 = vrot.slane %v5395, 4
        %v5398 = vrot.slane %v5247, 5
        %v5399 = vsel %vm1575, %v5397, %v5398
        %v5400 = vrot.slane %v5248, 5
        %v5401 = vrot.slane %v5400, 4
        %v5402 = vrot.slane %v5249, 5
        %v5403 = vsel %vm1575, %v5401, %v5402
        %v5404 = vrot.slane %v5402, 4
        %v5405 = vrot.slane %v5250, 5
        %v5406 = vsel %vm1575, %v5404, %v5405
        %v5407 = vrot.slane %v5251, 5
        %v5408 = vrot.slane %v5407, 4
        %v5409 = vrot.slane %v5252, 5
        %v5410 = vsel %vm1575, %v5408, %v5409
        %v5411 = vrot.slane %v5409, 4
        %v5412 = vrot.slane %v5253, 5
        %v5413 = vsel %vm1575, %v5411, %v5412
        %s5414 = scalar_lea.vmem %s233, 512
        %v5415 = vld [vmem:[%s5414] sm:$0xf]
        %v5416 = vld [vmem:[%s5414 + $0x4] sm:$0xf]
        %v5417 = vld [vmem:[%s5414 + $0x8] sm:$0xf]
        %v5418 = vld [vmem:[%s5414 + $0xc] sm:$0xf]
        %v5419 = vld [vmem:[%s5414 + $0x10] sm:$0xf]
        %v5420 = vld [vmem:[%s5414 + $0x14] sm:$0xf]
        %v5421 = vld [vmem:[%s5414 + $0x18] sm:$0xf]
        %v5422 = vld [vmem:[%s5414 + $0x1c] sm:$0xf]
        %v5423 = vld [vmem:[%s5414 + $0x20] sm:$0xf]
        %v5424 = vld [vmem:[%s5414 + $0x24] sm:$0xf]
        %v5425 = vld [vmem:[%s5414 + $0x28] sm:$0xf]
        %v5426 = vld [vmem:[%s5414 + $0x2c] sm:$0xf]
        %v5427 = vld [vmem:[%s5414 + $0x30] sm:$0xf]
        %v5428 = vld [vmem:[%s5414 + $0x34] sm:$0xf]
        %v5429 = vld [vmem:[%s5414 + $0x38] sm:$0xf]
        %v5430 = vld [vmem:[%s5414 + $0x3c] sm:$0xf]
        %v5431 = vunpack.c.l.b16 %v5305
        %v5432 = vunpack.c.l.b16 %v5308
        %v5433 = vunpack.c.l.b16 %v5312
        %v5434 = vunpack.c.l.b16 %v5315
        %v5435 = vunpack.c.l.b16 %v5319
        %v5436 = vunpack.c.l.b16 %v5322
        %v5437 = vunpack.c.l.b16 %v5326
        %v5438 = vunpack.c.l.b16 %v5329
        %v5439 = vunpack.c.l.b16 %v5333
        %v5440 = vunpack.c.l.b16 %v5336
        %v5441 = vunpack.c.l.b16 %v5340
        %v5442 = vunpack.c.l.b16 %v5343
        %v5443 = vunpack.c.l.b16 %v5347
        %v5444 = vunpack.c.l.b16 %v5350
        %v5445 = vunpack.c.l.b16 %v5354
        %v5446 = vunpack.c.l.b16 %v5357
        %v5447 = vunpack.c.l.b16 %v5361
        %v5448 = vunpack.c.l.b16 %v5364
        %v5449 = vunpack.c.l.b16 %v5368
        %v5450 = vunpack.c.l.b16 %v5371
        %v5451 = vunpack.c.l.b16 %v5375
        %v5452 = vunpack.c.l.b16 %v5378
        %v5453 = vunpack.c.l.b16 %v5382
        %v5454 = vunpack.c.l.b16 %v5385
        %v5455 = vunpack.c.l.b16 %v5389
        %v5456 = vunpack.c.l.b16 %v5392
        %v5457 = vunpack.c.l.b16 %v5396
        %v5458 = vunpack.c.l.b16 %v5399
        %v5459 = vunpack.c.l.b16 %v5403
        %v5460 = vunpack.c.l.b16 %v5406
        %v5461 = vunpack.c.l.b16 %v5410
        %v5462 = vunpack.c.l.b16 %v5413
        %v5463 = vpack.c.b16 %v5432, %v5431
        %v5464 = vpack.c.b16 %v5434, %v5433
        %v5465 = vpack.c.b16 %v5436, %v5435
        %v5466 = vpack.c.b16 %v5438, %v5437
        %v5467 = vpack.c.b16 %v5440, %v5439
        %v5468 = vpack.c.b16 %v5442, %v5441
        %v5469 = vpack.c.b16 %v5444, %v5443
        %v5470 = vpack.c.b16 %v5446, %v5445
        %v5471 = vpack.c.b16 %v5448, %v5447
        %v5472 = vpack.c.b16 %v5450, %v5449
        %v5473 = vpack.c.b16 %v5452, %v5451
        %v5474 = vpack.c.b16 %v5454, %v5453
        %v5475 = vpack.c.b16 %v5456, %v5455
        %v5476 = vpack.c.b16 %v5458, %v5457
        %v5477 = vpack.c.b16 %v5460, %v5459
        %v5478 = vpack.c.b16 %v5462, %v5461
        %v5511 = vunpack.c.l.b16 %v5415
        %v5512 = vunpack.c.l.b16 %v5416
        %v5513 = vunpack.c.l.b16 %v5417
        %v5514 = vunpack.c.l.b16 %v5418
        %v5515 = vunpack.c.l.b16 %v5419
        %v5516 = vunpack.c.l.b16 %v5420
        %v5517 = vunpack.c.l.b16 %v5421
        %v5518 = vunpack.c.l.b16 %v5422
        %v5519 = vunpack.c.l.b16 %v5423
        %v5520 = vunpack.c.l.b16 %v5424
        %v5521 = vunpack.c.l.b16 %v5425
        %v5522 = vunpack.c.l.b16 %v5426
        %v5523 = vunpack.c.l.b16 %v5427
        %v5524 = vunpack.c.l.b16 %v5428
        %v5525 = vunpack.c.l.b16 %v5429
        %v5526 = vunpack.c.l.b16 %v5430
        %v5527 = vpack.c.b16 %v5512, %v5511
        %v5528 = vpack.c.b16 %v5514, %v5513
        %v5529 = vpack.c.b16 %v5516, %v5515
        %v5530 = vpack.c.b16 %v5518, %v5517
        %v5531 = vpack.c.b16 %v5520, %v5519
        %v5532 = vpack.c.b16 %v5522, %v5521
        %v5533 = vpack.c.b16 %v5524, %v5523
        %v5534 = vpack.c.b16 %v5526, %v5525
        %5543 = vmatprep.subr.bf16.mxu0 0
        %5544 = vmatpush1.bf16.msra.mxu0 %v5527
        %5545 = vmatprep.subr.bf16.mxu0 0
        %5546 = vmatpush1.bf16.msra.mxu0 %v5528
        %5547 = vmatprep.subr.bf16.mxu0 0
        %5548 = vmatpush1.bf16.msra.mxu0 %v5529
        %5549 = vmatprep.subr.bf16.mxu0 0
        %5550 = vmatpush1.bf16.msra.mxu0 %v5530
        %5551 = vmatprep.subr.bf16.mxu0 0
        %5552 = vmatpush1.bf16.msra.mxu0 %v5531
        %5553 = vmatprep.subr.bf16.mxu0 0
        %5554 = vmatpush1.bf16.msra.mxu0 %v5532
        %5555 = vmatprep.subr.bf16.mxu0 0
        %5556 = vmatpush1.bf16.msra.mxu0 %v5533
        %5557 = vmatprep.subr.bf16.mxu0 0
        %5558 = vmatpush1.bf16.msra.mxu0 %v5534
        %5559 = vmatprep.subr.bf16.mxu0 0
        %5560 = vmatpush1.bf16.msra.mxu0 0
        %5561 = vmatprep.subr.bf16.mxu0 0
        %5562 = vmatpush1.bf16.msra.mxu0 0
        %5563 = vmatprep.subr.bf16.mxu0 0
        %5564 = vmatpush1.bf16.msra.mxu0 0
        %5565 = vmatprep.subr.bf16.mxu0 0
        %5566 = vmatpush1.bf16.msra.mxu0 0
        %5567 = vmatprep.subr.bf16.mxu0 0
        %5568 = vmatpush1.bf16.msra.mxu0 0
        %5569 = vmatprep.subr.bf16.mxu0 0
        %5570 = vmatpush1.bf16.msra.mxu0 0
        %5571 = vmatprep.subr.bf16.mxu0 0
        %5572 = vmatpush1.bf16.msra.mxu0 0
        %5573 = vmatprep.subr.bf16.mxu0 0
        %5574 = vmatpush1.bf16.msra.mxu0 0
        %5575 = vmatprep.mubr.bf16.mxu0 0
        %5576 = vmatmul.mubr.bf16.gmra.mrb[0].mxu0 %v5463
        %v5577 = vpop.f32.mrb[0].mxu0
        %v5578 = vadd.f32 0.0, %v5577
        %v5579 = vpop.f32.mrb[0].mxu0
        %v5580 = vpop.f32.mrb[0].mxu0
        %v5581 = vadd.f32 0.0, %v5580
        %v5582 = vpop.f32.mrb[0].mxu0
        %5583 = vmatprep.mubr.bf16.mxu0 0
        %5584 = vmatmul.mubr.bf16.gmra.mrb[0].mxu0 %v5464
        %v5585 = vpop.f32.mrb[0].mxu0
        %v5586 = vadd.f32 0.0, %v5585
        %v5587 = vpop.f32.mrb[0].mxu0
        %v5588 = vpop.f32.mrb[0].mxu0
        %v5589 = vadd.f32 0.0, %v5588
        %v5590 = vpop.f32.mrb[0].mxu0
        %5591 = vmatprep.mubr.bf16.mxu0 0
        %5592 = vmatmul.mubr.bf16.gmra.mrb[0].mxu0 %v5465
        %v5593 = vpop.f32.mrb[0].mxu0
        %v5594 = vadd.f32 0.0, %v5593
        %v5595 = vpop.f32.mrb[0].mxu0
        %v5596 = vpop.f32.mrb[0].mxu0
        %v5597 = vadd.f32 0.0, %v5596
        %v5598 = vpop.f32.mrb[0].mxu0
        %5599 = vmatprep.mubr.bf16.mxu0 0
        %5600 = vmatmul.mubr.bf16.gmra.mrb[0].mxu0 %v5466
        %v5601 = vpop.f32.mrb[0].mxu0
        %v5602 = vadd.f32 0.0, %v5601
        %v5603 = vpop.f32.mrb[0].mxu0
        %v5604 = vpop.f32.mrb[0].mxu0
        %v5605 = vadd.f32 0.0, %v5604
        %v5606 = vpop.f32.mrb[0].mxu0
        %5607 = vmatprep.mubr.bf16.mxu0 0
        %5608 = vmatmul.mubr.bf16.gmra.mrb[0].mxu0 %v5467
        %v5609 = vpop.f32.mrb[0].mxu0
        %v5610 = vadd.f32 0.0, %v5609
        %v5611 = vpop.f32.mrb[0].mxu0
        %v5612 = vpop.f32.mrb[0].mxu0
        %v5613 = vadd.f32 0.0, %v5612
        %v5614 = vpop.f32.mrb[0].mxu0
        %5615 = vmatprep.mubr.bf16.mxu0 0
        %5616 = vmatmul.mubr.bf16.gmra.mrb[0].mxu0 %v5468
        %v5617 = vpop.f32.mrb[0].mxu0
        %v5618 = vadd.f32 0.0, %v5617
        %v5619 = vpop.f32.mrb[0].mxu0
        %v5620 = vpop.f32.mrb[0].mxu0
        %v5621 = vadd.f32 0.0, %v5620
        %v5622 = vpop.f32.mrb[0].mxu0
        %5623 = vmatprep.mubr.bf16.mxu0 0
        %5624 = vmatmul.mubr.bf16.gmra.mrb[0].mxu0 %v5469
        %v5625 = vpop.f32.mrb[0].mxu0
        %v5626 = vadd.f32 0.0, %v5625
        %v5627 = vpop.f32.mrb[0].mxu0
        %v5628 = vpop.f32.mrb[0].mxu0
        %v5629 = vadd.f32 0.0, %v5628
        %v5630 = vpop.f32.mrb[0].mxu0
        %5631 = vmatprep.mubr.bf16.mxu0 0
        %5632 = vmatmul.mubr.bf16.gmra.mrb[0].mxu0 %v5470
        %v5633 = vpop.f32.mrb[0].mxu0
        %v5634 = vadd.f32 0.0, %v5633
        %v5635 = vpop.f32.mrb[0].mxu0
        %v5636 = vpop.f32.mrb[0].mxu0
        %v5637 = vadd.f32 0.0, %v5636
        %v5638 = vpop.f32.mrb[0].mxu0
        %5639 = vmatprep.mubr.bf16.mxu0 0
        %5640 = vmatmul.mubr.bf16.gmra.mrb[0].mxu0 %v5471
        %v5641 = vpop.f32.mrb[0].mxu0
        %v5642 = vadd.f32 0.0, %v5641
        %v5643 = vpop.f32.mrb[0].mxu0
        %v5644 = vpop.f32.mrb[0].mxu0
        %v5645 = vadd.f32 0.0, %v5644
        %v5646 = vpop.f32.mrb[0].mxu0
        %5647 = vmatprep.mubr.bf16.mxu0 0
        %5648 = vmatmul.mubr.bf16.gmra.mrb[0].mxu0 %v5472
        %v5649 = vpop.f32.mrb[0].mxu0
        %v5650 = vadd.f32 0.0, %v5649
        %v5651 = vpop.f32.mrb[0].mxu0
        %v5652 = vpop.f32.mrb[0].mxu0
        %v5653 = vadd.f32 0.0, %v5652
        %v5654 = vpop.f32.mrb[0].mxu0
        %5655 = vmatprep.mubr.bf16.mxu0 0
        %5656 = vmatmul.mubr.bf16.gmra.mrb[0].mxu0 %v5473
        %v5657 = vpop.f32.mrb[0].mxu0
        %v5658 = vadd.f32 0.0, %v5657
        %v5659 = vpop.f32.mrb[0].mxu0
        %v5660 = vpop.f32.mrb[0].mxu0
        %v5661 = vadd.f32 0.0, %v5660
        %v5662 = vpop.f32.mrb[0].mxu0
        %5663 = vmatprep.mubr.bf16.mxu0 0
        %5664 = vmatmul.mubr.bf16.gmra.mrb[0].mxu0 %v5474
        %v5665 = vpop.f32.mrb[0].mxu0
        %v5666 = vadd.f32 0.0, %v5665
        %v5667 = vpop.f32.mrb[0].mxu0
        %v5668 = vpop.f32.mrb[0].mxu0
        %v5669 = vadd.f32 0.0, %v5668
        %v5670 = vpop.f32.mrb[0].mxu0
        %5671 = vmatprep.mubr.bf16.mxu0 0
        %5672 = vmatmul.mubr.bf16.gmra.mrb[0].mxu0 %v5475
        %v5673 = vpop.f32.mrb[0].mxu0
        %v5674 = vadd.f32 0.0, %v5673
        %v5675 = vpop.f32.mrb[0].mxu0
        %v5676 = vpop.f32.mrb[0].mxu0
        %v5677 = vadd.f32 0.0, %v5676
        %v5678 = vpop.f32.mrb[0].mxu0
        %5679 = vmatprep.mubr.bf16.mxu0 0
        %5680 = vmatmul.mubr.bf16.gmra.mrb[0].mxu0 %v5476
        %v5681 = vpop.f32.mrb[0].mxu0
        %v5682 = vadd.f32 0.0, %v5681
        %v5683 = vpop.f32.mrb[0].mxu0
        %v5684 = vpop.f32.mrb[0].mxu0
        %v5685 = vadd.f32 0.0, %v5684
        %v5686 = vpop.f32.mrb[0].mxu0
        %5687 = vmatprep.mubr.bf16.mxu0 0
        %5688 = vmatmul.mubr.bf16.gmra.mrb[0].mxu0 %v5477
        %v5689 = vpop.f32.mrb[0].mxu0
        %v5690 = vadd.f32 0.0, %v5689
        %v5691 = vpop.f32.mrb[0].mxu0
        %v5692 = vpop.f32.mrb[0].mxu0
        %v5693 = vadd.f32 0.0, %v5692
        %v5694 = vpop.f32.mrb[0].mxu0
        %5695 = vmatprep.mubr.bf16.mxu0 0
        %5696 = vmatmul.mubr.bf16.gmra.mrb[0].mxu0 %v5478
        %v5697 = vpop.f32.mrb[0].mxu0
        %v5698 = vadd.f32 0.0, %v5697
        %v5699 = vpop.f32.mrb[0].mxu0
        %v5700 = vpop.f32.mrb[0].mxu0
        %v5701 = vadd.f32 0.0, %v5700
        %v5702 = vpop.f32.mrb[0].mxu0
        %5703 = vdwg.mxu0
        %v5704 = vadd.f32 %v5174, %v5578
        %v5705 = vadd.f32 %v5175, %v5581
        %v5706 = vadd.f32 %v5176, %v5586
        %v5707 = vadd.f32 %v5177, %v5589
        %v5708 = vadd.f32 %v5178, %v5594
        %v5709 = vadd.f32 %v5179, %v5597
        %v5710 = vadd.f32 %v5180, %v5602
        %v5711 = vadd.f32 %v5181, %v5605
        %v5712 = vadd.f32 %v5182, %v5610
        %v5713 = vadd.f32 %v5183, %v5613
        %v5714 = vadd.f32 %v5184, %v5618
        %v5715 = vadd.f32 %v5185, %v5621
        %v5716 = vadd.f32 %v5186, %v5626
        %v5717 = vadd.f32 %v5187, %v5629
        %v5718 = vadd.f32 %v5188, %v5634
        %v5719 = vadd.f32 %v5189, %v5637
        %v5720 = vadd.f32 %v5190, %v5642
        %v5721 = vadd.f32 %v5191, %v5645
        %v5722 = vadd.f32 %v5192, %v5650
        %v5723 = vadd.f32 %v5193, %v5653
        %v5724 = vadd.f32 %v5194, %v5658
        %v5725 = vadd.f32 %v5195, %v5661
        %v5726 = vadd.f32 %v5196, %v5666
        %v5727 = vadd.f32 %v5197, %v5669
        %v5728 = vadd.f32 %v5198, %v5674
        %v5729 = vadd.f32 %v5199, %v5677
        %v5730 = vadd.f32 %v5200, %v5682
        %v5731 = vadd.f32 %v5201, %v5685
        %v5732 = vadd.f32 %v5202, %v5690
        %v5733 = vadd.f32 %v5203, %v5693
        %v5734 = vadd.f32 %v5204, %v5698
        %v5735 = vadd.f32 %v5205, %v5701
        %v5736 = vld [vmem:[%s236] sm:$0x1]
        %v5738 = vlaneseq
        %v5739 = vshrl.u32 %v5738, 7
        %v5740 = vsub.s32 0, %v5739
        %v5741 = vrot.slane %v5736, %v5740
        %v5743 = vadd.f32 %v5704, %v5741
        %v5744 = vadd.f32 %v5705, %v5741
        %v5745 = vadd.f32 %v5706, %v5741
        %v5746 = vadd.f32 %v5707, %v5741
        %v5747 = vadd.f32 %v5708, %v5741
        %v5748 = vadd.f32 %v5709, %v5741
        %v5749 = vadd.f32 %v5710, %v5741
        %v5750 = vadd.f32 %v5711, %v5741
        %v5751 = vadd.f32 %v5712, %v5741
        %v5752 = vadd.f32 %v5713, %v5741
        %v5753 = vadd.f32 %v5714, %v5741
        %v5754 = vadd.f32 %v5715, %v5741
        %v5755 = vadd.f32 %v5716, %v5741
        %v5756 = vadd.f32 %v5717, %v5741
        %v5757 = vadd.f32 %v5718, %v5741
        %v5758 = vadd.f32 %v5719, %v5741
        %v5759 = vadd.f32 %v5720, %v5741
        %v5760 = vadd.f32 %v5721, %v5741
        %v5761 = vadd.f32 %v5722, %v5741
        %v5762 = vadd.f32 %v5723, %v5741
        %v5763 = vadd.f32 %v5724, %v5741
        %v5764 = vadd.f32 %v5725, %v5741
        %v5765 = vadd.f32 %v5726, %v5741
        %v5766 = vadd.f32 %v5727, %v5741
        %v5767 = vadd.f32 %v5728, %v5741
        %v5768 = vadd.f32 %v5729, %v5741
        %v5769 = vadd.f32 %v5730, %v5741
        %v5770 = vadd.f32 %v5731, %v5741
        %v5771 = vadd.f32 %v5732, %v5741
        %v5772 = vadd.f32 %v5733, %v5741
        %v5773 = vadd.f32 %v5734, %v5741
        %v5774 = vadd.f32 %v5735, %v5741
        %vm5775 = vcmp.ge.f32.partialorder %v5743, 0.0
        %vm5776 = vcmp.ge.f32.partialorder %v5744, 0.0
        %vm5777 = vcmp.ge.f32.partialorder %v5745, 0.0
        %vm5778 = vcmp.ge.f32.partialorder %v5746, 0.0
        %vm5779 = vcmp.ge.f32.partialorder %v5747, 0.0
        %vm5780 = vcmp.ge.f32.partialorder %v5748, 0.0
        %vm5781 = vcmp.ge.f32.partialorder %v5749, 0.0
        %vm5782 = vcmp.ge.f32.partialorder %v5750, 0.0
        %vm5783 = vcmp.ge.f32.partialorder %v5751, 0.0
        %vm5784 = vcmp.ge.f32.partialorder %v5752, 0.0
        %vm5785 = vcmp.ge.f32.partialorder %v5753, 0.0
        %vm5786 = vcmp.ge.f32.partialorder %v5754, 0.0
        %vm5787 = vcmp.ge.f32.partialorder %v5755, 0.0
        %vm5788 = vcmp.ge.f32.partialorder %v5756, 0.0
        %vm5789 = vcmp.ge.f32.partialorder %v5757, 0.0
        %vm5790 = vcmp.ge.f32.partialorder %v5758, 0.0
        %vm5791 = vcmp.ge.f32.partialorder %v5759, 0.0
        %vm5792 = vcmp.ge.f32.partialorder %v5760, 0.0
        %vm5793 = vcmp.ge.f32.partialorder %v5761, 0.0
        %vm5794 = vcmp.ge.f32.partialorder %v5762, 0.0
        %vm5795 = vcmp.ge.f32.partialorder %v5763, 0.0
        %vm5796 = vcmp.ge.f32.partialorder %v5764, 0.0
        %vm5797 = vcmp.ge.f32.partialorder %v5765, 0.0
        %vm5798 = vcmp.ge.f32.partialorder %v5766, 0.0
        %vm5799 = vcmp.ge.f32.partialorder %v5767, 0.0
        %vm5800 = vcmp.ge.f32.partialorder %v5768, 0.0
        %vm5801 = vcmp.ge.f32.partialorder %v5769, 0.0
        %vm5802 = vcmp.ge.f32.partialorder %v5770, 0.0
        %vm5803 = vcmp.ge.f32.partialorder %v5771, 0.0
        %vm5804 = vcmp.ge.f32.partialorder %v5772, 0.0
        %vm5805 = vcmp.ge.f32.partialorder %v5773, 0.0
        %vm5806 = vcmp.ge.f32.partialorder %v5774, 0.0
        %v5807 = vmul.f32 %v5743, 0.01
        %v5808 = vmul.f32 %v5744, 0.01
        %v5809 = vmul.f32 %v5745, 0.01
        %v5810 = vmul.f32 %v5746, 0.01
        %v5811 = vmul.f32 %v5747, 0.01
        %v5812 = vmul.f32 %v5748, 0.01
        %v5813 = vmul.f32 %v5749, 0.01
        %v5814 = vmul.f32 %v5750, 0.01
        %v5815 = vmul.f32 %v5751, 0.01
        %v5816 = vmul.f32 %v5752, 0.01
        %v5817 = vmul.f32 %v5753, 0.01
        %v5818 = vmul.f32 %v5754, 0.01
        %v5819 = vmul.f32 %v5755, 0.01
        %v5820 = vmul.f32 %v5756, 0.01
        %v5821 = vmul.f32 %v5757, 0.01
        %v5822 = vmul.f32 %v5758, 0.01
        %v5823 = vmul.f32 %v5759, 0.01
        %v5824 = vmul.f32 %v5760, 0.01
        %v5825 = vmul.f32 %v5761, 0.01
        %v5826 = vmul.f32 %v5762, 0.01
        %v5827 = vmul.f32 %v5763, 0.01
        %v5828 = vmul.f32 %v5764, 0.01
        %v5829 = vmul.f32 %v5765, 0.01
        %v5830 = vmul.f32 %v5766, 0.01
        %v5831 = vmul.f32 %v5767, 0.01
        %v5832 = vmul.f32 %v5768, 0.01
        %v5833 = vmul.f32 %v5769, 0.01
        %v5834 = vmul.f32 %v5770, 0.01
        %v5835 = vmul.f32 %v5771, 0.01
        %v5836 = vmul.f32 %v5772, 0.01
        %v5837 = vmul.f32 %v5773, 0.01
        %v5838 = vmul.f32 %v5774, 0.01
        %v5839 = vsel %vm5775, %v5743, %v5807
        %v5840 = vsel %vm5776, %v5744, %v5808
        %v5841 = vsel %vm5777, %v5745, %v5809
        %v5842 = vsel %vm5778, %v5746, %v5810
        %v5843 = vsel %vm5779, %v5747, %v5811
        %v5844 = vsel %vm5780, %v5748, %v5812
        %v5845 = vsel %vm5781, %v5749, %v5813
        %v5846 = vsel %vm5782, %v5750, %v5814
        %v5847 = vsel %vm5783, %v5751, %v5815
        %v5848 = vsel %vm5784, %v5752, %v5816
        %v5849 = vsel %vm5785, %v5753, %v5817
        %v5850 = vsel %vm5786, %v5754, %v5818
        %v5851 = vsel %vm5787, %v5755, %v5819
        %v5852 = vsel %vm5788, %v5756, %v5820
        %v5853 = vsel %vm5789, %v5757, %v5821
        %v5854 = vsel %vm5790, %v5758, %v5822
        %v5855 = vsel %vm5791, %v5759, %v5823
        %v5856 = vsel %vm5792, %v5760, %v5824
        %v5857 = vsel %vm5793, %v5761, %v5825
        %v5858 = vsel %vm5794, %v5762, %v5826
        %v5859 = vsel %vm5795, %v5763, %v5827
        %v5860 = vsel %vm5796, %v5764, %v5828
        %v5861 = vsel %vm5797, %v5765, %v5829
        %v5862 = vsel %vm5798, %v5766, %v5830
        %v5863 = vsel %vm5799, %v5767, %v5831
        %v5864 = vsel %vm5800, %v5768, %v5832
        %v5865 = vsel %vm5801, %v5769, %v5833
        %v5866 = vsel %vm5802, %v5770, %v5834
        %v5867 = vsel %vm5803, %v5771, %v5835
        %v5868 = vsel %vm5804, %v5772, %v5836
        %v5869 = vsel %vm5805, %v5773, %v5837
        %v5870 = vsel %vm5806, %v5774, %v5838
        %v5871 = vpack.c.bf16 %v5840, %v5839
        %v5872 = vpack.c.bf16 %v5842, %v5841
        %v5873 = vpack.c.bf16 %v5844, %v5843
        %v5874 = vpack.c.bf16 %v5846, %v5845
        %v5875 = vpack.c.bf16 %v5848, %v5847
        %v5876 = vpack.c.bf16 %v5850, %v5849
        %v5877 = vpack.c.bf16 %v5852, %v5851
        %v5878 = vpack.c.bf16 %v5854, %v5853
        %v5879 = vpack.c.bf16 %v5856, %v5855
        %v5880 = vpack.c.bf16 %v5858, %v5857
        %v5881 = vpack.c.bf16 %v5860, %v5859
        %v5882 = vpack.c.bf16 %v5862, %v5861
        %v5883 = vpack.c.bf16 %v5864, %v5863
        %v5884 = vpack.c.bf16 %v5866, %v5865
        %v5885 = vpack.c.bf16 %v5868, %v5867
        %v5886 = vpack.c.bf16 %v5870, %v5869
        %v5903 = vunpack.c.l.b16 %v5871
        %v5904 = vunpack.c.h.b16 %v5871
        %v5905 = vunpack.c.l.b16 %v5872
        %v5906 = vunpack.c.h.b16 %v5872
        %v5907 = vunpack.c.l.b16 %v5873
        %v5908 = vunpack.c.h.b16 %v5873
        %v5909 = vunpack.c.l.b16 %v5874
        %v5910 = vunpack.c.h.b16 %v5874
        %v5911 = vunpack.c.l.b16 %v5875
        %v5912 = vunpack.c.h.b16 %v5875
        %v5913 = vunpack.c.l.b16 %v5876
        %v5914 = vunpack.c.h.b16 %v5876
        %v5915 = vunpack.c.l.b16 %v5877
        %v5916 = vunpack.c.h.b16 %v5877
        %v5917 = vunpack.c.l.b16 %v5878
        %v5918 = vunpack.c.h.b16 %v5878
        %v5919 = vunpack.c.l.b16 %v5879
        %v5920 = vunpack.c.h.b16 %v5879
        %v5921 = vunpack.c.l.b16 %v5880
        %v5922 = vunpack.c.h.b16 %v5880
        %v5923 = vunpack.c.l.b16 %v5881
        %v5924 = vunpack.c.h.b16 %v5881
        %v5925 = vunpack.c.l.b16 %v5882
        %v5926 = vunpack.c.h.b16 %v5882
        %v5927 = vunpack.c.l.b16 %v5883
        %v5928 = vunpack.c.h.b16 %v5883
        %v5929 = vunpack.c.l.b16 %v5884
        %v5930 = vunpack.c.h.b16 %v5884
        %v5931 = vunpack.c.l.b16 %v5885
        %v5932 = vunpack.c.h.b16 %v5885
        %v5933 = vunpack.c.l.b16 %v5886
        %v5934 = vunpack.c.h.b16 %v5886
        %v5935 = vpack.c.b16 %v5903, %v5903
        %v5936 = vpack.c.b16 %v5904, %v5904
        %v5937 = vpack.c.b16 %v5905, %v5905
        %v5938 = vpack.c.b16 %v5906, %v5906
        %v5939 = vpack.c.b16 %v5907, %v5907
        %v5940 = vpack.c.b16 %v5908, %v5908
        %v5941 = vpack.c.b16 %v5909, %v5909
        %v5942 = vpack.c.b16 %v5910, %v5910
        %v5943 = vpack.c.b16 %v5911, %v5911
        %v5944 = vpack.c.b16 %v5912, %v5912
        %v5945 = vpack.c.b16 %v5913, %v5913
        %v5946 = vpack.c.b16 %v5914, %v5914
        %v5947 = vpack.c.b16 %v5915, %v5915
        %v5948 = vpack.c.b16 %v5916, %v5916
        %v5949 = vpack.c.b16 %v5917, %v5917
        %v5950 = vpack.c.b16 %v5918, %v5918
        %v5951 = vpack.c.b16 %v5919, %v5919
        %v5952 = vpack.c.b16 %v5920, %v5920
        %v5953 = vpack.c.b16 %v5921, %v5921
        %v5954 = vpack.c.b16 %v5922, %v5922
        %v5955 = vpack.c.b16 %v5923, %v5923
        %v5956 = vpack.c.b16 %v5924, %v5924
        %v5957 = vpack.c.b16 %v5925, %v5925
        %v5958 = vpack.c.b16 %v5926, %v5926
        %v5959 = vpack.c.b16 %v5927, %v5927
        %v5960 = vpack.c.b16 %v5928, %v5928
        %v5961 = vpack.c.b16 %v5929, %v5929
        %v5962 = vpack.c.b16 %v5930, %v5930
        %v5963 = vpack.c.b16 %v5931, %v5931
        %v5964 = vpack.c.b16 %v5932, %v5932
        %v5965 = vpack.c.b16 %v5933, %v5933
        %v5966 = vpack.c.b16 %v5934, %v5934
        %5999 = vst [vmem:[%s220] sm:$0xf] %v5935
        %6000 = vst [vmem:[%s220 + $0x4] sm:$0xf] %v5936
        %6001 = vst [vmem:[%s220 + $0x8] sm:$0xf] %v5937
        %6002 = vst [vmem:[%s220 + $0xc] sm:$0xf] %v5938
        %6003 = vst [vmem:[%s220 + $0x10] sm:$0xf] %v5939
        %6004 = vst [vmem:[%s220 + $0x14] sm:$0xf] %v5940
        %6005 = vst [vmem:[%s220 + $0x18] sm:$0xf] %v5941
        %6006 = vst [vmem:[%s220 + $0x1c] sm:$0xf] %v5942
        %6007 = vst [vmem:[%s220 + $0x20] sm:$0xf] %v5943
        %6008 = vst [vmem:[%s220 + $0x24] sm:$0xf] %v5944
        %6009 = vst [vmem:[%s220 + $0x28] sm:$0xf] %v5945
        %6010 = vst [vmem:[%s220 + $0x2c] sm:$0xf] %v5946
        %6011 = vst [vmem:[%s220 + $0x30] sm:$0xf] %v5947
        %6012 = vst [vmem:[%s220 + $0x34] sm:$0xf] %v5948
        %6013 = vst [vmem:[%s220 + $0x38] sm:$0xf] %v5949
        %6014 = vst [vmem:[%s220 + $0x3c] sm:$0xf] %v5950
        %6015 = vst [vmem:[%s220 + $0x40] sm:$0xf] %v5951
        %6016 = vst [vmem:[%s220 + $0x44] sm:$0xf] %v5952
        %6017 = vst [vmem:[%s220 + $0x48] sm:$0xf] %v5953
        %6018 = vst [vmem:[%s220 + $0x4c] sm:$0xf] %v5954
        %6019 = vst [vmem:[%s220 + $0x50] sm:$0xf] %v5955
        %6020 = vst [vmem:[%s220 + $0x54] sm:$0xf] %v5956
        %6021 = vst [vmem:[%s220 + $0x58] sm:$0xf] %v5957
        %6022 = vst [vmem:[%s220 + $0x5c] sm:$0xf] %v5958
        %6023 = vst [vmem:[%s220 + $0x60] sm:$0xf] %v5959
        %6024 = vst [vmem:[%s220 + $0x64] sm:$0xf] %v5960
        %6025 = vst [vmem:[%s220 + $0x68] sm:$0xf] %v5961
        %6026 = vst [vmem:[%s220 + $0x6c] sm:$0xf] %v5962
        %6027 = vst [vmem:[%s220 + $0x70] sm:$0xf] %v5963
        %6028 = vst [vmem:[%s220 + $0x74] sm:$0xf] %v5964
        %6029 = vst [vmem:[%s220 + $0x78] sm:$0xf] %v5965
        %6030 = vst [vmem:[%s220 + $0x7c] sm:$0xf] %v5966
        %s6031 = sand.u32 %s128, 1
        %s6032 = scalar_lea.sflag [#allocation4], %s6031
        %s6033 = sand.u32 %s128, 1
        %s6034 = smul.addr %s6033, 128
        %s6035 = scalar_lea.vmem [#allocation3], %s6034
        // Predicated region
        $region33: #{base_conv_apply_nhwc.1} parent=31 // pred_check
          %p6036 = pneg %p138
        $region34: #{base_conv_apply_nhwc.1} parent=31 // pred_check_branch
          %6038 = sbr.rel (%p6036) target = $region36
        $region35: #{base_conv_apply_nhwc.1} parent=31 // pred_region
          %s6039 = smul.u32 16, %s24
          %s6041 = ssub.s32 2048, 2048
          %6042 = vsyncadd %s6032, %s6041
          %s6043 = smul.addr %s6039, 2
          %s6044 = sadd.s32 %s22, %s6043
          %s6045 = smul.addr %s23, 32
          %s6046 = sadd.s32 %s6044, %s6045
          %s6047 = smul.addr %s6046, 64
          %s6048 = scalar_lea.hbm %s3, %s6047
          %s6049 = sshll.u32 %s6035, 4
          %s6050 = int_to_ptr.vmem [resolvable:$true] %s6049
          %6055 = dma.vmem_to_hbm [thread:$0]  %s6050, 2048, %s6048, %s6032, 64, 64, 4
        $region36: #{base_conv_apply_nhwc.1} parent=31 // pred_fallthru
          _
      $region32: #{base_conv_apply_nhwc.1} parent=5 // pred_fallthru
        _
      %p6056 = scmp.le.s32.totalorder 2, %s12
      // Predicated region
      $region37: #{base_conv_apply_nhwc.1} parent=5 // pred_check
        %p6057 = pneg %p6056
      $region38: #{base_conv_apply_nhwc.1} parent=5 // pred_check_branch
        %6059 = sbr.rel (%p6057) target = $region40
      $region39: #{base_conv_apply_nhwc.1} parent=5 // pred_region
        %s6060 = ssub.s32 %s12, 2
        // Predicated region
        $region41: #{base_conv_apply_nhwc.1} parent=39 // pred_check
          %p6061 = pneg %p144
        $region42: #{base_conv_apply_nhwc.1} parent=39 // pred_check_branch
          %6063 = sbr.rel (%p6061) target = $region44
        $region43: #{base_conv_apply_nhwc.1} parent=39 // pred_region
          %s6064 = sand.u32 %s129, 1
          %s6065 = scalar_lea.sflag [#allocation4], %s6064
          %s6066 = sand.u32 %s129, 1
          %s6067 = smul.addr %s6066, 128
          %s6068 = scalar_lea.vmem [#allocation3], %s6067
          %6069 = dma.done %s6065, 2048
        $region44: #{base_conv_apply_nhwc.1} parent=39 // pred_fallthru
          _
      $region40: #{base_conv_apply_nhwc.1} parent=5 // pred_fallthru
        _
    $region6: #{base_conv_apply_nhwc.1} parent=1 // loop_footer
      %s16 = sadd.s32 1, %s12
    $region7: #{base_conv_apply_nhwc.1} parent=1 // loop_footer_branch
      %11 = sbr.rel target = $region3
    $region8: #{base_conv_apply_nhwc.1} parent=1 // loop_exit
      _
    %6070 = vsyncpa [#allocation4], 1
    %s6071 = scalar_lea.sflag [#allocation4], 1
    %6072 = vsyncpa %s6071, 1

</llo_original>
